<compile_context>
chip_gen: v6e
topology: v6e:2x2x1
jax: 0.10.0
libtpu: 0.0.40
codegen_flags: <defaults>
</compile_context>

<pallas_src>
import jax
import jax.numpy as jnp
from jax import lax
from jax.experimental import pallas as pl
from jax.experimental.pallas import tpu as pltpu


# ---------------------------------------------------------------------------
# Kernel
# ---------------------------------------------------------------------------
def _make_lstm_encoder_kernel(num_layers, T, H, num_streams, unroll):
    """Builds the fused multi-layer unidirectional-LSTM kernel body."""

    def _sigmoid(z):
        # sigmoid(x) == 0.5*tanh(x/2) + 0.5 : one EUP op + a VPU FMA, no divide.
        return 0.5 * jnp.tanh(0.5 * z) + 0.5

    def kernel(*refs):
        x_ref = refs[0]                                   # (T, Bblk, 1) f32
        w_refs = refs[1:1 + 3 * num_layers]               # per layer: wih, whh, b
        out_ref = refs[1 + 3 * num_layers]                # (Bblk, H) f32
        scr = refs[2 + 3 * num_layers:]
        gates_scr = scr[0] if num_layers > 1 else None    # (T, Bblk, 4H) f32 packed
        seq_scr = scr[1] if num_layers > 1 else None      # (T, Bblk, H) f32

        B = x_ref.shape[1]
        sub = B // num_streams

        h_final = None
        for layer in range(num_layers):
            wih_ref, whh_ref, b_ref = w_refs[3 * layer:3 * layer + 3]

            if layer == 0:
                # Layer-0 gate pre-activation is recomputed per step (broadcast
                # FMA); hoist the constant (1, 4H) rows out of the loop.
                w0 = wih_ref[...].astype(jnp.float32)     # (1, 4H)
                b0 = b_ref[...]                           # (1, 4H)
            else:
                # Hoisted input projection for ALL timesteps: one MXU matmul,
                # biases folded in, written straight into the packed lane-dense
                # scratch (4H is lane-aligned -> unmasked full-vreg stores).
                flat = seq_scr[...].reshape(T * B, H).astype(wih_ref.dtype)
                gates_scr[...] = (
                    jnp.dot(flat, wih_ref[...],
                            preferred_element_type=jnp.float32)
                    + b_ref[...]).reshape(T, B, 4 * H)

            write_seq = layer < num_layers - 1

            def step(t, carry):
                # Load recurrent weights once per step (bounded live range).
                whh = whh_ref[...]                        # (H, 4H) bf16
                if layer == 0:
                    x_t = x_ref[t]                        # (B, 1) f32
                    xg_full = x_t * w0 + b0               # (B, 4H) broadcast FMA
                else:
                    xg_full = gates_scr[t]                # (B, 4H)

                new_carry = []
                h_news = []
                for s in range(num_streams):
                    h, c = carry[s]
                    # ONE fused recurrent matmul per stream: (sub,H)x(H,4H).
                    rec = jnp.dot(h.astype(jnp.bfloat16), whh,
                                  preferred_element_type=jnp.float32)
                    if num_streams == 1:
                        g = xg_full + rec
                    else:
                        g = xg_full[s * sub:(s + 1) * sub, :] + rec
                    i_t = _sigmoid(g[:, 0 * H:1 * H])     # gate math in f32
                    f_t = _sigmoid(g[:, 1 * H:2 * H])
                    g_t = jnp.tanh(g[:, 2 * H:3 * H])
                    o_t = _sigmoid(g[:, 3 * H:4 * H])
                    c_new = f_t * c + i_t * g_t
                    h_new = o_t * jnp.tanh(c_new)
                    new_carry.append((h_new, c_new))
                    h_news.append(h_new)

                if write_seq:
                    if num_streams > 1:
                        seq_scr[t] = jnp.concatenate(h_news, axis=0)
                    else:
                        seq_scr[t] = h_news[0]
                return tuple(new_carry)

            init = tuple((jnp.zeros((sub, H), jnp.float32),
                          jnp.zeros((sub, H), jnp.float32))
                         for _ in range(num_streams))
            final = lax.fori_loop(0, T, step, init, unroll=unroll)
            if num_streams > 1:
                h_final = jnp.concatenate([final[s][0]
                                           for s in range(num_streams)], axis=0)
            else:
                h_final = final[0][0]

        out_ref[...] = h_final.astype(out_ref.dtype)      # hidden[-1]

    return kernel


# ---------------------------------------------------------------------------
# Wrapper
# ---------------------------------------------------------------------------
def _full_spec(shape):
    n = len(shape)
    return pl.BlockSpec(shape, lambda i, _n=n: (0,) * _n)


def _num_tensorcores():
    """Best-effort detection of multi-TensorCore chips (v7x)."""
    try:
        kind = jax.devices()[0].device_kind.lower()
        if "v7" in kind:
            return 2
    except Exception:
        pass
    return 1


def _pick_batch_block(B, T, H, num_layers, num_cores):
    """Largest sublane-aligned batch block whose resident scratch fits a
    conservative VMEM budget; on multi-TC chips prefer blocks giving grid>=2."""
    budget = 20 << 20                                 # bytes of f32 scratch / block
    per_row = 5 * T * H * 4 if num_layers > 1 else 0  # (4H gates + H seq) per batch row

    cands = [B] + [c for c in (1024, 512, 256, 128, 64, 32, 16, 8)
                   if c < B and B % c == 0]

    def fits(b):
        return per_row * b <= budget

    if num_cores > 1:
        for b in cands:                               # largest block with grid>=cores
            if B // b >= num_cores and fits(b):
                return b
    for b in cands:                                   # single-TC: biggest that fits
        if fits(b):
            return b
    return cands[-1]


def lstm_encoder(x, params, sequence_length, batch_block=None):
    """features = hidden[-1] of a stacked unidirectional LSTM (batch_first)."""
    T = sequence_length
    H = params["layers"][0][1].shape[0]               # whh is (H, 4H)
    num_layers = len(params["layers"])
    B = x.size // T

    # PyTorch: x.reshape(-1, T, 1).  The kernel wants time-major (T, B, 1);
    # this transpose is the only XLA glue op in the forward.
    x_tb = jnp.transpose(x.reshape(B, T, 1).astype(jnp.float32), (1, 0, 2))

    num_cores = _num_tensorcores()
    b_blk = batch_block if batch_block is not None else _pick_batch_block(
        B, T, H, num_layers, num_cores)
    assert B % b_blk == 0, (B, b_blk)
    grid = (B // b_blk,)

    # Interleave 2 independent batch sub-tiles inside the step when the block
    # is big enough (each stream keeps sublane alignment of 8 rows).
    num_streams = 2 if (b_blk >= 16 and b_blk % 16 == 0) else 1

    flat_w = []
    in_specs = [pl.BlockSpec((T, b_blk, 1), lambda i: (0, i, 0))]
    for (wih, whh, b) in params["layers"]:
        flat_w += [wih, whh, b]
        in_specs += [_full_spec(wih.shape), _full_spec(whh.shape),
                     _full_spec(b.shape)]

    scratch = []
    scratch_bytes = 0
    if num_layers > 1:
        scratch = [pltpu.VMEM((T, b_blk, 4 * H), jnp.float32),   # packed hoisted gates
                   pltpu.VMEM((T, b_blk, H), jnp.float32)]       # inter-layer h sequence
        scratch_bytes = 5 * T * b_blk * H * 4

    # Raise the scoped VMEM limit only when the resident working set needs it.
    resident = (scratch_bytes
                + 2 * (T * b_blk * 4)        # double-buffered input block
                + 2 * (b_blk * H * 4)        # double-buffered output block
                + sum(w.size * 4 for w in flat_w))
    vmem_limit = None
    if resident > (12 << 20):
        vmem_limit = int(min(max(2 * resident, 32 << 20), 64 << 20))

    # Full unroll for short sequences / small H; partial unroll otherwise so the
    # LLO scheduler can overlap adjacent steps without vreg spills.
    unroll = True if (T <= 32 and H <= 64) else 4

    kernel = _make_lstm_encoder_kernel(num_layers, T, H, num_streams, unroll)
    return pl.pallas_call(
        kernel,
        out_shape=jax.ShapeDtypeStruct((B, H), jnp.float32),
        grid_spec=pltpu.PrefetchScalarGridSpec(
            num_scalar_prefetch=0,
            grid=grid,
            in_specs=in_specs,
            out_specs=pl.BlockSpec((b_blk, H), lambda i: (i, 0)),
            scratch_shapes=scratch),
        compiler_params=pltpu.CompilerParams(
            dimension_semantics=("parallel",),
            vmem_limit_bytes=vmem_limit),
    )(x_tb, *flat_w)


# ---------------------------------------------------------------------------
# Parameters (kernel layout) and a pure-JAX reference
# ---------------------------------------------------------------------------
def init_params(key, hidden_size, num_layers=1, input_size=1):
    """Kernel-layout weights.  PyTorch correspondence (gate order i, f, g, o):
         wih = weight_ih_l{k}.T                      (d_in, 4H)
         whh = weight_hh_l{k}.T                      (H, 4H)     [bf16]
         b   = (bias_ih_l{k} + bias_hh_l{k})[None]   (1, 4H)     [f32]
       Layer-0 wih stays f32 (used as a VPU broadcast FMA, not a matmul)."""
    H = hidden_size
    bound = 1.0 / (H ** 0.5)
    layers = []
    d_in = input_size
    for layer in range(num_layers):
        key, k1, k2, k3, k4 = jax.random.split(key, 5)
        wih = jax.random.uniform(k1, (d_in, 4 * H), jnp.float32, -bound, bound)
        whh = jax.random.uniform(k2, (H, 4 * H), jnp.float32, -bound, bound)
        b = (jax.random.uniform(k3, (1, 4 * H), jnp.float32, -bound, bound)
             + jax.random.uniform(k4, (1, 4 * H), jnp.float32, -bound, bound))
        if layer > 0:
            wih = wih.astype(jnp.bfloat16)
        whh = whh.astype(jnp.bfloat16)
        layers.append((wih, whh, b))
        d_in = H
    return {"layers": layers}


def lstm_encoder_reference(x, params, sequence_length):
    """Pure-JAX/XLA reference mirroring the kernel's numerics (same dtypes)."""
    T = sequence_length
    B = x.size // T
    H = params["layers"][0][1].shape[0]

    def sigmoid(z):
        return 0.5 * jnp.tanh(0.5 * z) + 0.5

    seq = x.reshape(B, T, 1).astype(jnp.float32)
    h = None
    for li, (wih, whh, b) in enumerate(params["layers"]):
        if li == 0:
            xg = (seq * wih.astype(jnp.float32).reshape(1, 1, 4 * H)
                  + b.reshape(1, 1, 4 * H))
        else:
            xg = (jnp.einsum("btd,dg->btg", seq.astype(wih.dtype), wih,
                             preferred_element_type=jnp.float32)
                  + b.reshape(1, 1, 4 * H))
        h = jnp.zeros((B, H), jnp.float32)
        c = jnp.zeros((B, H), jnp.float32)
        hs = []
        for t in range(T):
            g = xg[:, t, :] + jnp.dot(h.astype(jnp.bfloat16), whh,
                                      preferred_element_type=jnp.float32)
            i_t = sigmoid(g[:, 0 * H:1 * H])
            f_t = sigmoid(g[:, 1 * H:2 * H])
            g_t = jnp.tanh(g[:, 2 * H:3 * H])
            o_t = sigmoid(g[:, 3 * H:4 * H])
            c = f_t * c + i_t * g_t
            h = o_t * jnp.tanh(c)
            hs.append(h)
        seq = jnp.stack(hs, axis=1)
    return h


# ---------------------------------------------------------------------------
if __name__ == "__main__":
    master = jax.random.PRNGKey(0)

    def run_case(batch, T, H, num_layers, key, batch_block=None):
        kx, kp = jax.random.split(key)
        x = jax.random.normal(kx, (batch, T), jnp.float32)
        params = init_params(kp, H, num_layers=num_layers, input_size=1)
        fwd = jax.jit(lambda xx, pp: lstm_encoder(xx, pp, T,
                                                  batch_block=batch_block))
        out = jax.block_until_ready(fwd(x, params))
        assert out.shape == (batch, H), out.shape
        assert bool(jnp.all(jnp.isfinite(out)))
        ref = lstm_encoder_reference(x, params, T)
        err = float(jnp.max(jnp.abs(out - ref)))
        assert bool(jnp.allclose(out, ref, atol=1e-2, rtol=1e-2)), (
            "max abs diff = %g" % err)

    k1, k2 = jax.random.split(master)
    # Toy config matching the module defaults: grid=1, single batch stream.
    run_case(batch=2, T=16, H=32, num_layers=2, key=k1)
    # Larger batch with an explicit block: exercises the grid-tiled path and
    # the 2-stream interleave inside the time loop.
    run_case(batch=32, T=16, H=32, num_layers=2, key=k2, batch_block=16)

    print("KERNEL_OK")
</pallas_src>

<mosaic_0001>
module attributes {stable_mosaic.version = 11 : i64} {
  func.func @kernel(%arg0: i32, %arg1: memref<16x2x1xf32, #tpu.memory_space<vmem>>, %arg2: memref<1x128xf32, #tpu.memory_space<vmem>>, %arg3: memref<32x128xbf16, #tpu.memory_space<vmem>>, %arg4: memref<1x128xf32, #tpu.memory_space<vmem>>, %arg5: memref<32x128xbf16, #tpu.memory_space<vmem>>, %arg6: memref<32x128xbf16, #tpu.memory_space<vmem>>, %arg7: memref<1x128xf32, #tpu.memory_space<vmem>>, %arg8: memref<2x32xf32, #tpu.memory_space<vmem>>, %arg9: memref<16x2x128xf32, #tpu.memory_space<vmem>>, %arg10: memref<16x2x32xf32, #tpu.memory_space<vmem>>) attributes {dimension_semantics = [#tpu.dimension_semantics<parallel>], iteration_bounds = array<i64: 1>, scalar_prefetch = 0 : i64, scratch_operands = 2 : i64, tpu.core_type = #tpu.core_type<tc>, window_params = [{transform_indices = @transform_0, window_bounds = array<i64: 16, 2, 1>}, {pipeline_mode = #tpu.pipeline_mode<synchronous>, transform_indices = @transform_1, window_bounds = array<i64: 1, 128>}, {pipeline_mode = #tpu.pipeline_mode<synchronous>, transform_indices = @transform_2, window_bounds = array<i64: 32, 128>}, {pipeline_mode = #tpu.pipeline_mode<synchronous>, transform_indices = @transform_3, window_bounds = array<i64: 1, 128>}, {pipeline_mode = #tpu.pipeline_mode<synchronous>, transform_indices = @transform_4, window_bounds = array<i64: 32, 128>}, {pipeline_mode = #tpu.pipeline_mode<synchronous>, transform_indices = @transform_5, window_bounds = array<i64: 32, 128>}, {pipeline_mode = #tpu.pipeline_mode<synchronous>, transform_indices = @transform_6, window_bounds = array<i64: 1, 128>}, {transform_indices = @transform_7, window_bounds = array<i64: 2, 32>}]} {
    %c0 = arith.constant 0 : index
    %c0_0 = arith.constant 0 : index
    %0 = vector.load %arg2[%c0, %c0_0] : memref<1x128xf32, #tpu.memory_space<vmem>>, vector<1x128xf32>
    %c0_1 = arith.constant 0 : index
    %c0_2 = arith.constant 0 : index
    %1 = vector.load %arg4[%c0_1, %c0_2] : memref<1x128xf32, #tpu.memory_space<vmem>>, vector<1x128xf32>
    %cst = arith.constant 0.000000e+00 : f32
    %2 = vector.broadcast %cst : f32 to vector<2x32xf32>
    %cst_3 = arith.constant 0.000000e+00 : f32
    %3 = vector.broadcast %cst_3 : f32 to vector<2x32xf32>
    %c0_i32 = arith.constant 0 : i32
    %c0_4 = arith.constant 0 : index
    %c0_5 = arith.constant 0 : index
    %4 = vector.load %arg3[%c0_4, %c0_5] : memref<32x128xbf16, #tpu.memory_space<vmem>>, vector<32x128xbf16>
    %5 = arith.index_cast %c0_i32 : i32 to index
    %c0_6 = arith.constant 0 : index
    %c0_7 = arith.constant 0 : index
    %6 = vector.load %arg1[%5, %c0_6, %c0_7] : memref<16x2x1xf32, #tpu.memory_space<vmem>>, vector<1x2x1xf32>
    %7 = vector.shape_cast %6 : vector<1x2x1xf32> to vector<2x1xf32>
    %8 = vector.broadcast %7 : vector<2x1xf32> to vector<2x128xf32>
    %9 = vector.broadcast %0 : vector<1x128xf32> to vector<2x128xf32>
    %10 = arith.mulf %8, %9 : vector<2x128xf32>
    %11 = vector.broadcast %1 : vector<1x128xf32> to vector<2x128xf32>
    %12 = arith.addf %10, %11 : vector<2x128xf32>
    %13 = arith.truncf %2 : vector<2x32xf32> to vector<2x32xbf16>
    %cst_8 = arith.constant dense<0.000000e+00> : vector<2x128xf32>
    %14 = tpu.matmul %13, %4, %cst_8 {dimension_numbers = #tpu.dot_dimension_numbers<[1], [0], [0], [1], [0, 0, 1, 1], [], []>} : vector<2x32xbf16>, vector<32x128xbf16>, vector<2x128xf32> -> vector<2x128xf32>
    %15 = arith.addf %12, %14 : vector<2x128xf32>
    %16 = vector.extract_strided_slice %15 {offsets = [0, 0], sizes = [2, 32], strides = [1, 1]} : vector<2x128xf32> to vector<2x32xf32>
    %cst_9 = arith.constant 5.000000e-01 : f32
    %17 = vector.broadcast %cst_9 : f32 to vector<2x32xf32>
    %18 = arith.mulf %17, %16 : vector<2x32xf32>
    %19 = math.tanh %18 : vector<2x32xf32>
    %cst_10 = arith.constant 5.000000e-01 : f32
    %20 = vector.broadcast %cst_10 : f32 to vector<2x32xf32>
    %21 = arith.mulf %20, %19 : vector<2x32xf32>
    %cst_11 = arith.constant 5.000000e-01 : f32
    %22 = vector.broadcast %cst_11 : f32 to vector<2x32xf32>
    %23 = arith.addf %21, %22 : vector<2x32xf32>
    %24 = vector.extract_strided_slice %15 {offsets = [0, 32], sizes = [2, 32], strides = [1, 1]} : vector<2x128xf32> to vector<2x32xf32>
    %cst_12 = arith.constant 5.000000e-01 : f32
    %25 = vector.broadcast %cst_12 : f32 to vector<2x32xf32>
    %26 = arith.mulf %25, %24 : vector<2x32xf32>
    %27 = math.tanh %26 : vector<2x32xf32>
    %cst_13 = arith.constant 5.000000e-01 : f32
    %28 = vector.broadcast %cst_13 : f32 to vector<2x32xf32>
    %29 = arith.mulf %28, %27 : vector<2x32xf32>
    %cst_14 = arith.constant 5.000000e-01 : f32
    %30 = vector.broadcast %cst_14 : f32 to vector<2x32xf32>
    %31 = arith.addf %29, %30 : vector<2x32xf32>
    %32 = vector.extract_strided_slice %15 {offsets = [0, 64], sizes = [2, 32], strides = [1, 1]} : vector<2x128xf32> to vector<2x32xf32>
    %33 = math.tanh %32 : vector<2x32xf32>
    %34 = vector.extract_strided_slice %15 {offsets = [0, 96], sizes = [2, 32], strides = [1, 1]} : vector<2x128xf32> to vector<2x32xf32>
    %cst_15 = arith.constant 5.000000e-01 : f32
    %35 = vector.broadcast %cst_15 : f32 to vector<2x32xf32>
    %36 = arith.mulf %35, %34 : vector<2x32xf32>
    %37 = math.tanh %36 : vector<2x32xf32>
    %cst_16 = arith.constant 5.000000e-01 : f32
    %38 = vector.broadcast %cst_16 : f32 to vector<2x32xf32>
    %39 = arith.mulf %38, %37 : vector<2x32xf32>
    %cst_17 = arith.constant 5.000000e-01 : f32
    %40 = vector.broadcast %cst_17 : f32 to vector<2x32xf32>
    %41 = arith.addf %39, %40 : vector<2x32xf32>
    %42 = arith.mulf %31, %3 : vector<2x32xf32>
    %43 = arith.mulf %23, %33 : vector<2x32xf32>
    %44 = arith.addf %42, %43 : vector<2x32xf32>
    %45 = math.tanh %44 : vector<2x32xf32>
    %46 = arith.mulf %41, %45 : vector<2x32xf32>
    %47 = arith.index_cast %c0_i32 : i32 to index
    %c0_18 = arith.constant 0 : index
    %c0_19 = arith.constant 0 : index
    %48 = vector.load %arg10[%47, %c0_18, %c0_19] : memref<16x2x32xf32, #tpu.memory_space<vmem>>, vector<1x2x32xf32>
    %49 = vector.shape_cast %48 : vector<1x2x32xf32> to vector<2x32xf32>
    %50 = vector.shape_cast %46 : vector<2x32xf32> to vector<1x2x32xf32>
    tpu.vector_store %arg10[%47, %c0_18, %c0_19], %50 {strides = array<i32>} : memref<16x2x32xf32, #tpu.memory_space<vmem>>, vector<1x2x32xf32>,
    %c1_i32 = arith.constant 1 : i32
    %c0_20 = arith.constant 0 : index
    %c0_21 = arith.constant 0 : index
    %51 = vector.load %arg3[%c0_20, %c0_21] : memref<32x128xbf16, #tpu.memory_space<vmem>>, vector<32x128xbf16>
    %52 = arith.index_cast %c1_i32 : i32 to index
    %c0_22 = arith.constant 0 : index
    %c0_23 = arith.constant 0 : index
    %53 = vector.load %arg1[%52, %c0_22, %c0_23] : memref<16x2x1xf32, #tpu.memory_space<vmem>>, vector<1x2x1xf32>
    %54 = vector.shape_cast %53 : vector<1x2x1xf32> to vector<2x1xf32>
    %55 = vector.broadcast %54 : vector<2x1xf32> to vector<2x128xf32>
    %56 = vector.broadcast %0 : vector<1x128xf32> to vector<2x128xf32>
    %57 = arith.mulf %55, %56 : vector<2x128xf32>
    %58 = vector.broadcast %1 : vector<1x128xf32> to vector<2x128xf32>
    %59 = arith.addf %57, %58 : vector<2x128xf32>
    %60 = arith.truncf %46 : vector<2x32xf32> to vector<2x32xbf16>
    %cst_24 = arith.constant dense<0.000000e+00> : vector<2x128xf32>
    %61 = tpu.matmul %60, %51, %cst_24 {dimension_numbers = #tpu.dot_dimension_numbers<[1], [0], [0], [1], [0, 0, 1, 1], [], []>} : vector<2x32xbf16>, vector<32x128xbf16>, vector<2x128xf32> -> vector<2x128xf32>
    %62 = arith.addf %59, %61 : vector<2x128xf32>
    %63 = vector.extract_strided_slice %62 {offsets = [0, 0], sizes = [2, 32], strides = [1, 1]} : vector<2x128xf32> to vector<2x32xf32>
    %cst_25 = arith.constant 5.000000e-01 : f32
    %64 = vector.broadcast %cst_25 : f32 to vector<2x32xf32>
    %65 = arith.mulf %64, %63 : vector<2x32xf32>
    %66 = math.tanh %65 : vector<2x32xf32>
    %cst_26 = arith.constant 5.000000e-01 : f32
    %67 = vector.broadcast %cst_26 : f32 to vector<2x32xf32>
    %68 = arith.mulf %67, %66 : vector<2x32xf32>
    %cst_27 = arith.constant 5.000000e-01 : f32
    %69 = vector.broadcast %cst_27 : f32 to vector<2x32xf32>
    %70 = arith.addf %68, %69 : vector<2x32xf32>
    %71 = vector.extract_strided_slice %62 {offsets = [0, 32], sizes = [2, 32], strides = [1, 1]} : vector<2x128xf32> to vector<2x32xf32>
    %cst_28 = arith.constant 5.000000e-01 : f32
    %72 = vector.broadcast %cst_28 : f32 to vector<2x32xf32>
    %73 = arith.mulf %72, %71 : vector<2x32xf32>
    %74 = math.tanh %73 : vector<2x32xf32>
    %cst_29 = arith.constant 5.000000e-01 : f32
    %75 = vector.broadcast %cst_29 : f32 to vector<2x32xf32>
    %76 = arith.mulf %75, %74 : vector<2x32xf32>
    %cst_30 = arith.constant 5.000000e-01 : f32
    %77 = vector.broadcast %cst_30 : f32 to vector<2x32xf32>
    %78 = arith.addf %76, %77 : vector<2x32xf32>
    %79 = vector.extract_strided_slice %62 {offsets = [0, 64], sizes = [2, 32], strides = [1, 1]} : vector<2x128xf32> to vector<2x32xf32>
    %80 = math.tanh %79 : vector<2x32xf32>
    %81 = vector.extract_strided_slice %62 {offsets = [0, 96], sizes = [2, 32], strides = [1, 1]} : vector<2x128xf32> to vector<2x32xf32>
    %cst_31 = arith.constant 5.000000e-01 : f32
    %82 = vector.broadcast %cst_31 : f32 to vector<2x32xf32>
    %83 = arith.mulf %82, %81 : vector<2x32xf32>
    %84 = math.tanh %83 : vector<2x32xf32>
    %cst_32 = arith.constant 5.000000e-01 : f32
    %85 = vector.broadcast %cst_32 : f32 to vector<2x32xf32>
    %86 = arith.mulf %85, %84 : vector<2x32xf32>
    %cst_33 = arith.constant 5.000000e-01 : f32
    %87 = vector.broadcast %cst_33 : f32 to vector<2x32xf32>
    %88 = arith.addf %86, %87 : vector<2x32xf32>
    %89 = arith.mulf %78, %44 : vector<2x32xf32>
    %90 = arith.mulf %70, %80 : vector<2x32xf32>
    %91 = arith.addf %89, %90 : vector<2x32xf32>
    %92 = math.tanh %91 : vector<2x32xf32>
    %93 = arith.mulf %88, %92 : vector<2x32xf32>
    %94 = arith.index_cast %c1_i32 : i32 to index
    %c0_34 = arith.constant 0 : index
    %c0_35 = arith.constant 0 : index
    %95 = vector.load %arg10[%94, %c0_34, %c0_35] : memref<16x2x32xf32, #tpu.memory_space<vmem>>, vector<1x2x32xf32>
    %96 = vector.shape_cast %95 : vector<1x2x32xf32> to vector<2x32xf32>
    %97 = vector.shape_cast %93 : vector<2x32xf32> to vector<1x2x32xf32>
    tpu.vector_store %arg10[%94, %c0_34, %c0_35], %97 {strides = array<i32>} : memref<16x2x32xf32, #tpu.memory_space<vmem>>, vector<1x2x32xf32>,
    %c2_i32 = arith.constant 2 : i32
    %c0_36 = arith.constant 0 : index
    %c0_37 = arith.constant 0 : index
    %98 = vector.load %arg3[%c0_36, %c0_37] : memref<32x128xbf16, #tpu.memory_space<vmem>>, vector<32x128xbf16>
    %99 = arith.index_cast %c2_i32 : i32 to index
    %c0_38 = arith.constant 0 : index
    %c0_39 = arith.constant 0 : index
    %100 = vector.load %arg1[%99, %c0_38, %c0_39] : memref<16x2x1xf32, #tpu.memory_space<vmem>>, vector<1x2x1xf32>
    %101 = vector.shape_cast %100 : vector<1x2x1xf32> to vector<2x1xf32>
    %102 = vector.broadcast %101 : vector<2x1xf32> to vector<2x128xf32>
    %103 = vector.broadcast %0 : vector<1x128xf32> to vector<2x128xf32>
    %104 = arith.mulf %102, %103 : vector<2x128xf32>
    %105 = vector.broadcast %1 : vector<1x128xf32> to vector<2x128xf32>
    %106 = arith.addf %104, %105 : vector<2x128xf32>
    %107 = arith.truncf %93 : vector<2x32xf32> to vector<2x32xbf16>
    %cst_40 = arith.constant dense<0.000000e+00> : vector<2x128xf32>
    %108 = tpu.matmul %107, %98, %cst_40 {dimension_numbers = #tpu.dot_dimension_numbers<[1], [0], [0], [1], [0, 0, 1, 1], [], []>} : vector<2x32xbf16>, vector<32x128xbf16>, vector<2x128xf32> -> vector<2x128xf32>
    %109 = arith.addf %106, %108 : vector<2x128xf32>
    %110 = vector.extract_strided_slice %109 {offsets = [0, 0], sizes = [2, 32], strides = [1, 1]} : vector<2x128xf32> to vector<2x32xf32>
    %cst_41 = arith.constant 5.000000e-01 : f32
    %111 = vector.broadcast %cst_41 : f32 to vector<2x32xf32>
    %112 = arith.mulf %111, %110 : vector<2x32xf32>
    %113 = math.tanh %112 : vector<2x32xf32>
    %cst_42 = arith.constant 5.000000e-01 : f32
    %114 = vector.broadcast %cst_42 : f32 to vector<2x32xf32>
    %115 = arith.mulf %114, %113 : vector<2x32xf32>
    %cst_43 = arith.constant 5.000000e-01 : f32
    %116 = vector.broadcast %cst_43 : f32 to vector<2x32xf32>
    %117 = arith.addf %115, %116 : vector<2x32xf32>
    %118 = vector.extract_strided_slice %109 {offsets = [0, 32], sizes = [2, 32], strides = [1, 1]} : vector<2x128xf32> to vector<2x32xf32>
    %cst_44 = arith.constant 5.000000e-01 : f32
    %119 = vector.broadcast %cst_44 : f32 to vector<2x32xf32>
    %120 = arith.mulf %119, %118 : vector<2x32xf32>
    %121 = math.tanh %120 : vector<2x32xf32>
    %cst_45 = arith.constant 5.000000e-01 : f32
    %122 = vector.broadcast %cst_45 : f32 to vector<2x32xf32>
    %123 = arith.mulf %122, %121 : vector<2x32xf32>
    %cst_46 = arith.constant 5.000000e-01 : f32
    %124 = vector.broadcast %cst_46 : f32 to vector<2x32xf32>
    %125 = arith.addf %123, %124 : vector<2x32xf32>
    %126 = vector.extract_strided_slice %109 {offsets = [0, 64], sizes = [2, 32], strides = [1, 1]} : vector<2x128xf32> to vector<2x32xf32>
    %127 = math.tanh %126 : vector<2x32xf32>
    %128 = vector.extract_strided_slice %109 {offsets = [0, 96], sizes = [2, 32], strides = [1, 1]} : vector<2x128xf32> to vector<2x32xf32>
    %cst_47 = arith.constant 5.000000e-01 : f32
    %129 = vector.broadcast %cst_47 : f32 to vector<2x32xf32>
    %130 = arith.mulf %129, %128 : vector<2x32xf32>
    %131 = math.tanh %130 : vector<2x32xf32>
    %cst_48 = arith.constant 5.000000e-01 : f32
    %132 = vector.broadcast %cst_48 : f32 to vector<2x32xf32>
    %133 = arith.mulf %132, %131 : vector<2x32xf32>
    %cst_49 = arith.constant 5.000000e-01 : f32
    %134 = vector.broadcast %cst_49 : f32 to vector<2x32xf32>
    %135 = arith.addf %133, %134 : vector<2x32xf32>
    %136 = arith.mulf %125, %91 : vector<2x32xf32>
    %137 = arith.mulf %117, %127 : vector<2x32xf32>
    %138 = arith.addf %136, %137 : vector<2x32xf32>
    %139 = math.tanh %138 : vector<2x32xf32>
    %140 = arith.mulf %135, %139 : vector<2x32xf32>
    %141 = arith.index_cast %c2_i32 : i32 to index
    %c0_50 = arith.constant 0 : index
    %c0_51 = arith.constant 0 : index
    %142 = vector.load %arg10[%141, %c0_50, %c0_51] : memref<16x2x32xf32, #tpu.memory_space<vmem>>, vector<1x2x32xf32>
    %143 = vector.shape_cast %142 : vector<1x2x32xf32> to vector<2x32xf32>
    %144 = vector.shape_cast %140 : vector<2x32xf32> to vector<1x2x32xf32>
    tpu.vector_store %arg10[%141, %c0_50, %c0_51], %144 {strides = array<i32>} : memref<16x2x32xf32, #tpu.memory_space<vmem>>, vector<1x2x32xf32>,
    %c3_i32 = arith.constant 3 : i32
    %c0_52 = arith.constant 0 : index
    %c0_53 = arith.constant 0 : index
    %145 = vector.load %arg3[%c0_52, %c0_53] : memref<32x128xbf16, #tpu.memory_space<vmem>>, vector<32x128xbf16>
    %146 = arith.index_cast %c3_i32 : i32 to index
    %c0_54 = arith.constant 0 : index
    %c0_55 = arith.constant 0 : index
    %147 = vector.load %arg1[%146, %c0_54, %c0_55] : memref<16x2x1xf32, #tpu.memory_space<vmem>>, vector<1x2x1xf32>
    %148 = vector.shape_cast %147 : vector<1x2x1xf32> to vector<2x1xf32>
    %149 = vector.broadcast %148 : vector<2x1xf32> to vector<2x128xf32>
    %150 = vector.broadcast %0 : vector<1x128xf32> to vector<2x128xf32>
    %151 = arith.mulf %149, %150 : vector<2x128xf32>
    %152 = vector.broadcast %1 : vector<1x128xf32> to vector<2x128xf32>
    %153 = arith.addf %151, %152 : vector<2x128xf32>
    %154 = arith.truncf %140 : vector<2x32xf32> to vector<2x32xbf16>
    %cst_56 = arith.constant dense<0.000000e+00> : vector<2x128xf32>
    %155 = tpu.matmul %154, %145, %cst_56 {dimension_numbers = #tpu.dot_dimension_numbers<[1], [0], [0], [1], [0, 0, 1, 1], [], []>} : vector<2x32xbf16>, vector<32x128xbf16>, vector<2x128xf32> -> vector<2x128xf32>
    %156 = arith.addf %153, %155 : vector<2x128xf32>
    %157 = vector.extract_strided_slice %156 {offsets = [0, 0], sizes = [2, 32], strides = [1, 1]} : vector<2x128xf32> to vector<2x32xf32>
    %cst_57 = arith.constant 5.000000e-01 : f32
    %158 = vector.broadcast %cst_57 : f32 to vector<2x32xf32>
    %159 = arith.mulf %158, %157 : vector<2x32xf32>
    %160 = math.tanh %159 : vector<2x32xf32>
    %cst_58 = arith.constant 5.000000e-01 : f32
    %161 = vector.broadcast %cst_58 : f32 to vector<2x32xf32>
    %162 = arith.mulf %161, %160 : vector<2x32xf32>
    %cst_59 = arith.constant 5.000000e-01 : f32
    %163 = vector.broadcast %cst_59 : f32 to vector<2x32xf32>
    %164 = arith.addf %162, %163 : vector<2x32xf32>
    %165 = vector.extract_strided_slice %156 {offsets = [0, 32], sizes = [2, 32], strides = [1, 1]} : vector<2x128xf32> to vector<2x32xf32>
    %cst_60 = arith.constant 5.000000e-01 : f32
    %166 = vector.broadcast %cst_60 : f32 to vector<2x32xf32>
    %167 = arith.mulf %166, %165 : vector<2x32xf32>
    %168 = math.tanh %167 : vector<2x32xf32>
    %cst_61 = arith.constant 5.000000e-01 : f32
    %169 = vector.broadcast %cst_61 : f32 to vector<2x32xf32>
    %170 = arith.mulf %169, %168 : vector<2x32xf32>
    %cst_62 = arith.constant 5.000000e-01 : f32
    %171 = vector.broadcast %cst_62 : f32 to vector<2x32xf32>
    %172 = arith.addf %170, %171 : vector<2x32xf32>
    %173 = vector.extract_strided_slice %156 {offsets = [0, 64], sizes = [2, 32], strides = [1, 1]} : vector<2x128xf32> to vector<2x32xf32>
    %174 = math.tanh %173 : vector<2x32xf32>
    %175 = vector.extract_strided_slice %156 {offsets = [0, 96], sizes = [2, 32], strides = [1, 1]} : vector<2x128xf32> to vector<2x32xf32>
    %cst_63 = arith.constant 5.000000e-01 : f32
    %176 = vector.broadcast %cst_63 : f32 to vector<2x32xf32>
    %177 = arith.mulf %176, %175 : vector<2x32xf32>
    %178 = math.tanh %177 : vector<2x32xf32>
    %cst_64 = arith.constant 5.000000e-01 : f32
    %179 = vector.broadcast %cst_64 : f32 to vector<2x32xf32>
    %180 = arith.mulf %179, %178 : vector<2x32xf32>
    %cst_65 = arith.constant 5.000000e-01 : f32
    %181 = vector.broadcast %cst_65 : f32 to vector<2x32xf32>
    %182 = arith.addf %180, %181 : vector<2x32xf32>
    %183 = arith.mulf %172, %138 : vector<2x32xf32>
    %184 = arith.mulf %164, %174 : vector<2x32xf32>
    %185 = arith.addf %183, %184 : vector<2x32xf32>
    %186 = math.tanh %185 : vector<2x32xf32>
    %187 = arith.mulf %182, %186 : vector<2x32xf32>
    %188 = arith.index_cast %c3_i32 : i32 to index
    %c0_66 = arith.constant 0 : index
    %c0_67 = arith.constant 0 : index
    %189 = vector.load %arg10[%188, %c0_66, %c0_67] : memref<16x2x32xf32, #tpu.memory_space<vmem>>, vector<1x2x32xf32>
    %190 = vector.shape_cast %189 : vector<1x2x32xf32> to vector<2x32xf32>
    %191 = vector.shape_cast %187 : vector<2x32xf32> to vector<1x2x32xf32>
    tpu.vector_store %arg10[%188, %c0_66, %c0_67], %191 {strides = array<i32>} : memref<16x2x32xf32, #tpu.memory_space<vmem>>, vector<1x2x32xf32>,
    %c4_i32 = arith.constant 4 : i32
    %c0_68 = arith.constant 0 : index
    %c0_69 = arith.constant 0 : index
    %192 = vector.load %arg3[%c0_68, %c0_69] : memref<32x128xbf16, #tpu.memory_space<vmem>>, vector<32x128xbf16>
    %193 = arith.index_cast %c4_i32 : i32 to index
    %c0_70 = arith.constant 0 : index
    %c0_71 = arith.constant 0 : index
    %194 = vector.load %arg1[%193, %c0_70, %c0_71] : memref<16x2x1xf32, #tpu.memory_space<vmem>>, vector<1x2x1xf32>
    %195 = vector.shape_cast %194 : vector<1x2x1xf32> to vector<2x1xf32>
    %196 = vector.broadcast %195 : vector<2x1xf32> to vector<2x128xf32>
    %197 = vector.broadcast %0 : vector<1x128xf32> to vector<2x128xf32>
    %198 = arith.mulf %196, %197 : vector<2x128xf32>
    %199 = vector.broadcast %1 : vector<1x128xf32> to vector<2x128xf32>
    %200 = arith.addf %198, %199 : vector<2x128xf32>
    %201 = arith.truncf %187 : vector<2x32xf32> to vector<2x32xbf16>
    %cst_72 = arith.constant dense<0.000000e+00> : vector<2x128xf32>
    %202 = tpu.matmul %201, %192, %cst_72 {dimension_numbers = #tpu.dot_dimension_numbers<[1], [0], [0], [1], [0, 0, 1, 1], [], []>} : vector<2x32xbf16>, vector<32x128xbf16>, vector<2x128xf32> -> vector<2x128xf32>
    %203 = arith.addf %200, %202 : vector<2x128xf32>
    %204 = vector.extract_strided_slice %203 {offsets = [0, 0], sizes = [2, 32], strides = [1, 1]} : vector<2x128xf32> to vector<2x32xf32>
    %cst_73 = arith.constant 5.000000e-01 : f32
    %205 = vector.broadcast %cst_73 : f32 to vector<2x32xf32>
    %206 = arith.mulf %205, %204 : vector<2x32xf32>
    %207 = math.tanh %206 : vector<2x32xf32>
    %cst_74 = arith.constant 5.000000e-01 : f32
    %208 = vector.broadcast %cst_74 : f32 to vector<2x32xf32>
    %209 = arith.mulf %208, %207 : vector<2x32xf32>
    %cst_75 = arith.constant 5.000000e-01 : f32
    %210 = vector.broadcast %cst_75 : f32 to vector<2x32xf32>
    %211 = arith.addf %209, %210 : vector<2x32xf32>
    %212 = vector.extract_strided_slice %203 {offsets = [0, 32], sizes = [2, 32], strides = [1, 1]} : vector<2x128xf32> to vector<2x32xf32>
    %cst_76 = arith.constant 5.000000e-01 : f32
    %213 = vector.broadcast %cst_76 : f32 to vector<2x32xf32>
    %214 = arith.mulf %213, %212 : vector<2x32xf32>
    %215 = math.tanh %214 : vector<2x32xf32>
    %cst_77 = arith.constant 5.000000e-01 : f32
    %216 = vector.broadcast %cst_77 : f32 to vector<2x32xf32>
    %217 = arith.mulf %216, %215 : vector<2x32xf32>
    %cst_78 = arith.constant 5.000000e-01 : f32
    %218 = vector.broadcast %cst_78 : f32 to vector<2x32xf32>
    %219 = arith.addf %217, %218 : vector<2x32xf32>
    %220 = vector.extract_strided_slice %203 {offsets = [0, 64], sizes = [2, 32], strides = [1, 1]} : vector<2x128xf32> to vector<2x32xf32>
    %221 = math.tanh %220 : vector<2x32xf32>
    %222 = vector.extract_strided_slice %203 {offsets = [0, 96], sizes = [2, 32], strides = [1, 1]} : vector<2x128xf32> to vector<2x32xf32>
    %cst_79 = arith.constant 5.000000e-01 : f32
    %223 = vector.broadcast %cst_79 : f32 to vector<2x32xf32>
    %224 = arith.mulf %223, %222 : vector<2x32xf32>
    %225 = math.tanh %224 : vector<2x32xf32>
    %cst_80 = arith.constant 5.000000e-01 : f32
    %226 = vector.broadcast %cst_80 : f32 to vector<2x32xf32>
    %227 = arith.mulf %226, %225 : vector<2x32xf32>
    %cst_81 = arith.constant 5.000000e-01 : f32
    %228 = vector.broadcast %cst_81 : f32 to vector<2x32xf32>
    %229 = arith.addf %227, %228 : vector<2x32xf32>
    %230 = arith.mulf %219, %185 : vector<2x32xf32>
    %231 = arith.mulf %211, %221 : vector<2x32xf32>
    %232 = arith.addf %230, %231 : vector<2x32xf32>
    %233 = math.tanh %232 : vector<2x32xf32>
    %234 = arith.mulf %229, %233 : vector<2x32xf32>
    %235 = arith.index_cast %c4_i32 : i32 to index
    %c0_82 = arith.constant 0 : index
    %c0_83 = arith.constant 0 : index
    %236 = vector.load %arg10[%235, %c0_82, %c0_83] : memref<16x2x32xf32, #tpu.memory_space<vmem>>, vector<1x2x32xf32>
    %237 = vector.shape_cast %236 : vector<1x2x32xf32> to vector<2x32xf32>
    %238 = vector.shape_cast %234 : vector<2x32xf32> to vector<1x2x32xf32>
    tpu.vector_store %arg10[%235, %c0_82, %c0_83], %238 {strides = array<i32>} : memref<16x2x32xf32, #tpu.memory_space<vmem>>, vector<1x2x32xf32>,
    %c5_i32 = arith.constant 5 : i32
    %c0_84 = arith.constant 0 : index
    %c0_85 = arith.constant 0 : index
    %239 = vector.load %arg3[%c0_84, %c0_85] : memref<32x128xbf16, #tpu.memory_space<vmem>>, vector<32x128xbf16>
    %240 = arith.index_cast %c5_i32 : i32 to index
    %c0_86 = arith.constant 0 : index
    %c0_87 = arith.constant 0 : index
    %241 = vector.load %arg1[%240, %c0_86, %c0_87] : memref<16x2x1xf32, #tpu.memory_space<vmem>>, vector<1x2x1xf32>
    %242 = vector.shape_cast %241 : vector<1x2x1xf32> to vector<2x1xf32>
    %243 = vector.broadcast %242 : vector<2x1xf32> to vector<2x128xf32>
    %244 = vector.broadcast %0 : vector<1x128xf32> to vector<2x128xf32>
    %245 = arith.mulf %243, %244 : vector<2x128xf32>
    %246 = vector.broadcast %1 : vector<1x128xf32> to vector<2x128xf32>
    %247 = arith.addf %245, %246 : vector<2x128xf32>
    %248 = arith.truncf %234 : vector<2x32xf32> to vector<2x32xbf16>
    %cst_88 = arith.constant dense<0.000000e+00> : vector<2x128xf32>
    %249 = tpu.matmul %248, %239, %cst_88 {dimension_numbers = #tpu.dot_dimension_numbers<[1], [0], [0], [1], [0, 0, 1, 1], [], []>} : vector<2x32xbf16>, vector<32x128xbf16>, vector<2x128xf32> -> vector<2x128xf32>
    %250 = arith.addf %247, %249 : vector<2x128xf32>
    %251 = vector.extract_strided_slice %250 {offsets = [0, 0], sizes = [2, 32], strides = [1, 1]} : vector<2x128xf32> to vector<2x32xf32>
    %cst_89 = arith.constant 5.000000e-01 : f32
    %252 = vector.broadcast %cst_89 : f32 to vector<2x32xf32>
    %253 = arith.mulf %252, %251 : vector<2x32xf32>
    %254 = math.tanh %253 : vector<2x32xf32>
    %cst_90 = arith.constant 5.000000e-01 : f32
    %255 = vector.broadcast %cst_90 : f32 to vector<2x32xf32>
    %256 = arith.mulf %255, %254 : vector<2x32xf32>
    %cst_91 = arith.constant 5.000000e-01 : f32
    %257 = vector.broadcast %cst_91 : f32 to vector<2x32xf32>
    %258 = arith.addf %256, %257 : vector<2x32xf32>
    %259 = vector.extract_strided_slice %250 {offsets = [0, 32], sizes = [2, 32], strides = [1, 1]} : vector<2x128xf32> to vector<2x32xf32>
    %cst_92 = arith.constant 5.000000e-01 : f32
    %260 = vector.broadcast %cst_92 : f32 to vector<2x32xf32>
    %261 = arith.mulf %260, %259 : vector<2x32xf32>
    %262 = math.tanh %261 : vector<2x32xf32>
    %cst_93 = arith.constant 5.000000e-01 : f32
    %263 = vector.broadcast %cst_93 : f32 to vector<2x32xf32>
    %264 = arith.mulf %263, %262 : vector<2x32xf32>
    %cst_94 = arith.constant 5.000000e-01 : f32
    %265 = vector.broadcast %cst_94 : f32 to vector<2x32xf32>
    %266 = arith.addf %264, %265 : vector<2x32xf32>
    %267 = vector.extract_strided_slice %250 {offsets = [0, 64], sizes = [2, 32], strides = [1, 1]} : vector<2x128xf32> to vector<2x32xf32>
    %268 = math.tanh %267 : vector<2x32xf32>
    %269 = vector.extract_strided_slice %250 {offsets = [0, 96], sizes = [2, 32], strides = [1, 1]} : vector<2x128xf32> to vector<2x32xf32>
    %cst_95 = arith.constant 5.000000e-01 : f32
    %270 = vector.broadcast %cst_95 : f32 to vector<2x32xf32>
    %271 = arith.mulf %270, %269 : vector<2x32xf32>
    %272 = math.tanh %271 : vector<2x32xf32>
    %cst_96 = arith.constant 5.000000e-01 : f32
    %273 = vector.broadcast %cst_96 : f32 to vector<2x32xf32>
    %274 = arith.mulf %273, %272 : vector<2x32xf32>
    %cst_97 = arith.constant 5.000000e-01 : f32
    %275 = vector.broadcast %cst_97 : f32 to vector<2x32xf32>
    %276 = arith.addf %274, %275 : vector<2x32xf32>
    %277 = arith.mulf %266, %232 : vector<2x32xf32>
    %278 = arith.mulf %258, %268 : vector<2x32xf32>
    %279 = arith.addf %277, %278 : vector<2x32xf32>
    %280 = math.tanh %279 : vector<2x32xf32>
    %281 = arith.mulf %276, %280 : vector<2x32xf32>
    %282 = arith.index_cast %c5_i32 : i32 to index
    %c0_98 = arith.constant 0 : index
    %c0_99 = arith.constant 0 : index
    %283 = vector.load %arg10[%282, %c0_98, %c0_99] : memref<16x2x32xf32, #tpu.memory_space<vmem>>, vector<1x2x32xf32>
    %284 = vector.shape_cast %283 : vector<1x2x32xf32> to vector<2x32xf32>
    %285 = vector.shape_cast %281 : vector<2x32xf32> to vector<1x2x32xf32>
    tpu.vector_store %arg10[%282, %c0_98, %c0_99], %285 {strides = array<i32>} : memref<16x2x32xf32, #tpu.memory_space<vmem>>, vector<1x2x32xf32>,
    %c6_i32 = arith.constant 6 : i32
    %c0_100 = arith.constant 0 : index
    %c0_101 = arith.constant 0 : index
    %286 = vector.load %arg3[%c0_100, %c0_101] : memref<32x128xbf16, #tpu.memory_space<vmem>>, vector<32x128xbf16>
    %287 = arith.index_cast %c6_i32 : i32 to index
    %c0_102 = arith.constant 0 : index
    %c0_103 = arith.constant 0 : index
    %288 = vector.load %arg1[%287, %c0_102, %c0_103] : memref<16x2x1xf32, #tpu.memory_space<vmem>>, vector<1x2x1xf32>
    %289 = vector.shape_cast %288 : vector<1x2x1xf32> to vector<2x1xf32>
    %290 = vector.broadcast %289 : vector<2x1xf32> to vector<2x128xf32>
    %291 = vector.broadcast %0 : vector<1x128xf32> to vector<2x128xf32>
    %292 = arith.mulf %290, %291 : vector<2x128xf32>
    %293 = vector.broadcast %1 : vector<1x128xf32> to vector<2x128xf32>
    %294 = arith.addf %292, %293 : vector<2x128xf32>
    %295 = arith.truncf %281 : vector<2x32xf32> to vector<2x32xbf16>
    %cst_104 = arith.constant dense<0.000000e+00> : vector<2x128xf32>
    %296 = tpu.matmul %295, %286, %cst_104 {dimension_numbers = #tpu.dot_dimension_numbers<[1], [0], [0], [1], [0, 0, 1, 1], [], []>} : vector<2x32xbf16>, vector<32x128xbf16>, vector<2x128xf32> -> vector<2x128xf32>
    %297 = arith.addf %294, %296 : vector<2x128xf32>
    %298 = vector.extract_strided_slice %297 {offsets = [0, 0], sizes = [2, 32], strides = [1, 1]} : vector<2x128xf32> to vector<2x32xf32>
    %cst_105 = arith.constant 5.000000e-01 : f32
    %299 = vector.broadcast %cst_105 : f32 to vector<2x32xf32>
    %300 = arith.mulf %299, %298 : vector<2x32xf32>
    %301 = math.tanh %300 : vector<2x32xf32>
    %cst_106 = arith.constant 5.000000e-01 : f32
    %302 = vector.broadcast %cst_106 : f32 to vector<2x32xf32>
    %303 = arith.mulf %302, %301 : vector<2x32xf32>
    %cst_107 = arith.constant 5.000000e-01 : f32
    %304 = vector.broadcast %cst_107 : f32 to vector<2x32xf32>
    %305 = arith.addf %303, %304 : vector<2x32xf32>
    %306 = vector.extract_strided_slice %297 {offsets = [0, 32], sizes = [2, 32], strides = [1, 1]} : vector<2x128xf32> to vector<2x32xf32>
    %cst_108 = arith.constant 5.000000e-01 : f32
    %307 = vector.broadcast %cst_108 : f32 to vector<2x32xf32>
    %308 = arith.mulf %307, %306 : vector<2x32xf32>
    %309 = math.tanh %308 : vector<2x32xf32>
    %cst_109 = arith.constant 5.000000e-01 : f32
    %310 = vector.broadcast %cst_109 : f32 to vector<2x32xf32>
    %311 = arith.mulf %310, %309 : vector<2x32xf32>
    %cst_110 = arith.constant 5.000000e-01 : f32
    %312 = vector.broadcast %cst_110 : f32 to vector<2x32xf32>
    %313 = arith.addf %311, %312 : vector<2x32xf32>
    %314 = vector.extract_strided_slice %297 {offsets = [0, 64], sizes = [2, 32], strides = [1, 1]} : vector<2x128xf32> to vector<2x32xf32>
    %315 = math.tanh %314 : vector<2x32xf32>
    %316 = vector.extract_strided_slice %297 {offsets = [0, 96], sizes = [2, 32], strides = [1, 1]} : vector<2x128xf32> to vector<2x32xf32>
    %cst_111 = arith.constant 5.000000e-01 : f32
    %317 = vector.broadcast %cst_111 : f32 to vector<2x32xf32>
    %318 = arith.mulf %317, %316 : vector<2x32xf32>
    %319 = math.tanh %318 : vector<2x32xf32>
    %cst_112 = arith.constant 5.000000e-01 : f32
    %320 = vector.broadcast %cst_112 : f32 to vector<2x32xf32>
    %321 = arith.mulf %320, %319 : vector<2x32xf32>
    %cst_113 = arith.constant 5.000000e-01 : f32
    %322 = vector.broadcast %cst_113 : f32 to vector<2x32xf32>
    %323 = arith.addf %321, %322 : vector<2x32xf32>
    %324 = arith.mulf %313, %279 : vector<2x32xf32>
    %325 = arith.mulf %305, %315 : vector<2x32xf32>
    %326 = arith.addf %324, %325 : vector<2x32xf32>
    %327 = math.tanh %326 : vector<2x32xf32>
    %328 = arith.mulf %323, %327 : vector<2x32xf32>
    %329 = arith.index_cast %c6_i32 : i32 to index
    %c0_114 = arith.constant 0 : index
    %c0_115 = arith.constant 0 : index
    %330 = vector.load %arg10[%329, %c0_114, %c0_115] : memref<16x2x32xf32, #tpu.memory_space<vmem>>, vector<1x2x32xf32>
    %331 = vector.shape_cast %330 : vector<1x2x32xf32> to vector<2x32xf32>
    %332 = vector.shape_cast %328 : vector<2x32xf32> to vector<1x2x32xf32>
    tpu.vector_store %arg10[%329, %c0_114, %c0_115], %332 {strides = array<i32>} : memref<16x2x32xf32, #tpu.memory_space<vmem>>, vector<1x2x32xf32>,
    %c7_i32 = arith.constant 7 : i32
    %c0_116 = arith.constant 0 : index
    %c0_117 = arith.constant 0 : index
    %333 = vector.load %arg3[%c0_116, %c0_117] : memref<32x128xbf16, #tpu.memory_space<vmem>>, vector<32x128xbf16>
    %334 = arith.index_cast %c7_i32 : i32 to index
    %c0_118 = arith.constant 0 : index
    %c0_119 = arith.constant 0 : index
    %335 = vector.load %arg1[%334, %c0_118, %c0_119] : memref<16x2x1xf32, #tpu.memory_space<vmem>>, vector<1x2x1xf32>
    %336 = vector.shape_cast %335 : vector<1x2x1xf32> to vector<2x1xf32>
    %337 = vector.broadcast %336 : vector<2x1xf32> to vector<2x128xf32>
    %338 = vector.broadcast %0 : vector<1x128xf32> to vector<2x128xf32>
    %339 = arith.mulf %337, %338 : vector<2x128xf32>
    %340 = vector.broadcast %1 : vector<1x128xf32> to vector<2x128xf32>
    %341 = arith.addf %339, %340 : vector<2x128xf32>
    %342 = arith.truncf %328 : vector<2x32xf32> to vector<2x32xbf16>
    %cst_120 = arith.constant dense<0.000000e+00> : vector<2x128xf32>
    %343 = tpu.matmul %342, %333, %cst_120 {dimension_numbers = #tpu.dot_dimension_numbers<[1], [0], [0], [1], [0, 0, 1, 1], [], []>} : vector<2x32xbf16>, vector<32x128xbf16>, vector<2x128xf32> -> vector<2x128xf32>
    %344 = arith.addf %341, %343 : vector<2x128xf32>
    %345 = vector.extract_strided_slice %344 {offsets = [0, 0], sizes = [2, 32], strides = [1, 1]} : vector<2x128xf32> to vector<2x32xf32>
    %cst_121 = arith.constant 5.000000e-01 : f32
    %346 = vector.broadcast %cst_121 : f32 to vector<2x32xf32>
    %347 = arith.mulf %346, %345 : vector<2x32xf32>
    %348 = math.tanh %347 : vector<2x32xf32>
    %cst_122 = arith.constant 5.000000e-01 : f32
    %349 = vector.broadcast %cst_122 : f32 to vector<2x32xf32>
    %350 = arith.mulf %349, %348 : vector<2x32xf32>
    %cst_123 = arith.constant 5.000000e-01 : f32
    %351 = vector.broadcast %cst_123 : f32 to vector<2x32xf32>
    %352 = arith.addf %350, %351 : vector<2x32xf32>
    %353 = vector.extract_strided_slice %344 {offsets = [0, 32], sizes = [2, 32], strides = [1, 1]} : vector<2x128xf32> to vector<2x32xf32>
    %cst_124 = arith.constant 5.000000e-01 : f32
    %354 = vector.broadcast %cst_124 : f32 to vector<2x32xf32>
    %355 = arith.mulf %354, %353 : vector<2x32xf32>
    %356 = math.tanh %355 : vector<2x32xf32>
    %cst_125 = arith.constant 5.000000e-01 : f32
    %357 = vector.broadcast %cst_125 : f32 to vector<2x32xf32>
    %358 = arith.mulf %357, %356 : vector<2x32xf32>
    %cst_126 = arith.constant 5.000000e-01 : f32
    %359 = vector.broadcast %cst_126 : f32 to vector<2x32xf32>
    %360 = arith.addf %358, %359 : vector<2x32xf32>
    %361 = vector.extract_strided_slice %344 {offsets = [0, 64], sizes = [2, 32], strides = [1, 1]} : vector<2x128xf32> to vector<2x32xf32>
    %362 = math.tanh %361 : vector<2x32xf32>
    %363 = vector.extract_strided_slice %344 {offsets = [0, 96], sizes = [2, 32], strides = [1, 1]} : vector<2x128xf32> to vector<2x32xf32>
    %cst_127 = arith.constant 5.000000e-01 : f32
    %364 = vector.broadcast %cst_127 : f32 to vector<2x32xf32>
    %365 = arith.mulf %364, %363 : vector<2x32xf32>
    %366 = math.tanh %365 : vector<2x32xf32>
    %cst_128 = arith.constant 5.000000e-01 : f32
    %367 = vector.broadcast %cst_128 : f32 to vector<2x32xf32>
    %368 = arith.mulf %367, %366 : vector<2x32xf32>
    %cst_129 = arith.constant 5.000000e-01 : f32
    %369 = vector.broadcast %cst_129 : f32 to vector<2x32xf32>
    %370 = arith.addf %368, %369 : vector<2x32xf32>
    %371 = arith.mulf %360, %326 : vector<2x32xf32>
    %372 = arith.mulf %352, %362 : vector<2x32xf32>
    %373 = arith.addf %371, %372 : vector<2x32xf32>
    %374 = math.tanh %373 : vector<2x32xf32>
    %375 = arith.mulf %370, %374 : vector<2x32xf32>
    %376 = arith.index_cast %c7_i32 : i32 to index
    %c0_130 = arith.constant 0 : index
    %c0_131 = arith.constant 0 : index
    %377 = vector.load %arg10[%376, %c0_130, %c0_131] : memref<16x2x32xf32, #tpu.memory_space<vmem>>, vector<1x2x32xf32>
    %378 = vector.shape_cast %377 : vector<1x2x32xf32> to vector<2x32xf32>
    %379 = vector.shape_cast %375 : vector<2x32xf32> to vector<1x2x32xf32>
    tpu.vector_store %arg10[%376, %c0_130, %c0_131], %379 {strides = array<i32>} : memref<16x2x32xf32, #tpu.memory_space<vmem>>, vector<1x2x32xf32>,
    %c8_i32 = arith.constant 8 : i32
    %c0_132 = arith.constant 0 : index
    %c0_133 = arith.constant 0 : index
    %380 = vector.load %arg3[%c0_132, %c0_133] : memref<32x128xbf16, #tpu.memory_space<vmem>>, vector<32x128xbf16>
    %381 = arith.index_cast %c8_i32 : i32 to index
    %c0_134 = arith.constant 0 : index
    %c0_135 = arith.constant 0 : index
    %382 = vector.load %arg1[%381, %c0_134, %c0_135] : memref<16x2x1xf32, #tpu.memory_space<vmem>>, vector<1x2x1xf32>
    %383 = vector.shape_cast %382 : vector<1x2x1xf32> to vector<2x1xf32>
    %384 = vector.broadcast %383 : vector<2x1xf32> to vector<2x128xf32>
    %385 = vector.broadcast %0 : vector<1x128xf32> to vector<2x128xf32>
    %386 = arith.mulf %384, %385 : vector<2x128xf32>
    %387 = vector.broadcast %1 : vector<1x128xf32> to vector<2x128xf32>
    %388 = arith.addf %386, %387 : vector<2x128xf32>
    %389 = arith.truncf %375 : vector<2x32xf32> to vector<2x32xbf16>
    %cst_136 = arith.constant dense<0.000000e+00> : vector<2x128xf32>
    %390 = tpu.matmul %389, %380, %cst_136 {dimension_numbers = #tpu.dot_dimension_numbers<[1], [0], [0], [1], [0, 0, 1, 1], [], []>} : vector<2x32xbf16>, vector<32x128xbf16>, vector<2x128xf32> -> vector<2x128xf32>
    %391 = arith.addf %388, %390 : vector<2x128xf32>
    %392 = vector.extract_strided_slice %391 {offsets = [0, 0], sizes = [2, 32], strides = [1, 1]} : vector<2x128xf32> to vector<2x32xf32>
    %cst_137 = arith.constant 5.000000e-01 : f32
    %393 = vector.broadcast %cst_137 : f32 to vector<2x32xf32>
    %394 = arith.mulf %393, %392 : vector<2x32xf32>
    %395 = math.tanh %394 : vector<2x32xf32>
    %cst_138 = arith.constant 5.000000e-01 : f32
    %396 = vector.broadcast %cst_138 : f32 to vector<2x32xf32>
    %397 = arith.mulf %396, %395 : vector<2x32xf32>
    %cst_139 = arith.constant 5.000000e-01 : f32
    %398 = vector.broadcast %cst_139 : f32 to vector<2x32xf32>
    %399 = arith.addf %397, %398 : vector<2x32xf32>
    %400 = vector.extract_strided_slice %391 {offsets = [0, 32], sizes = [2, 32], strides = [1, 1]} : vector<2x128xf32> to vector<2x32xf32>
    %cst_140 = arith.constant 5.000000e-01 : f32
    %401 = vector.broadcast %cst_140 : f32 to vector<2x32xf32>
    %402 = arith.mulf %401, %400 : vector<2x32xf32>
    %403 = math.tanh %402 : vector<2x32xf32>
    %cst_141 = arith.constant 5.000000e-01 : f32
    %404 = vector.broadcast %cst_141 : f32 to vector<2x32xf32>
    %405 = arith.mulf %404, %403 : vector<2x32xf32>
    %cst_142 = arith.constant 5.000000e-01 : f32
    %406 = vector.broadcast %cst_142 : f32 to vector<2x32xf32>
    %407 = arith.addf %405, %406 : vector<2x32xf32>
    %408 = vector.extract_strided_slice %391 {offsets = [0, 64], sizes = [2, 32], strides = [1, 1]} : vector<2x128xf32> to vector<2x32xf32>
    %409 = math.tanh %408 : vector<2x32xf32>
    %410 = vector.extract_strided_slice %391 {offsets = [0, 96], sizes = [2, 32], strides = [1, 1]} : vector<2x128xf32> to vector<2x32xf32>
    %cst_143 = arith.constant 5.000000e-01 : f32
    %411 = vector.broadcast %cst_143 : f32 to vector<2x32xf32>
    %412 = arith.mulf %411, %410 : vector<2x32xf32>
    %413 = math.tanh %412 : vector<2x32xf32>
    %cst_144 = arith.constant 5.000000e-01 : f32
    %414 = vector.broadcast %cst_144 : f32 to vector<2x32xf32>
    %415 = arith.mulf %414, %413 : vector<2x32xf32>
    %cst_145 = arith.constant 5.000000e-01 : f32
    %416 = vector.broadcast %cst_145 : f32 to vector<2x32xf32>
    %417 = arith.addf %415, %416 : vector<2x32xf32>
    %418 = arith.mulf %407, %373 : vector<2x32xf32>
    %419 = arith.mulf %399, %409 : vector<2x32xf32>
    %420 = arith.addf %418, %419 : vector<2x32xf32>
    %421 = math.tanh %420 : vector<2x32xf32>
    %422 = arith.mulf %417, %421 : vector<2x32xf32>
    %423 = arith.index_cast %c8_i32 : i32 to index
    %c0_146 = arith.constant 0 : index
    %c0_147 = arith.constant 0 : index
    %424 = vector.load %arg10[%423, %c0_146, %c0_147] : memref<16x2x32xf32, #tpu.memory_space<vmem>>, vector<1x2x32xf32>
    %425 = vector.shape_cast %424 : vector<1x2x32xf32> to vector<2x32xf32>
    %426 = vector.shape_cast %422 : vector<2x32xf32> to vector<1x2x32xf32>
    tpu.vector_store %arg10[%423, %c0_146, %c0_147], %426 {strides = array<i32>} : memref<16x2x32xf32, #tpu.memory_space<vmem>>, vector<1x2x32xf32>,
    %c9_i32 = arith.constant 9 : i32
    %c0_148 = arith.constant 0 : index
    %c0_149 = arith.constant 0 : index
    %427 = vector.load %arg3[%c0_148, %c0_149] : memref<32x128xbf16, #tpu.memory_space<vmem>>, vector<32x128xbf16>
    %428 = arith.index_cast %c9_i32 : i32 to index
    %c0_150 = arith.constant 0 : index
    %c0_151 = arith.constant 0 : index
    %429 = vector.load %arg1[%428, %c0_150, %c0_151] : memref<16x2x1xf32, #tpu.memory_space<vmem>>, vector<1x2x1xf32>
    %430 = vector.shape_cast %429 : vector<1x2x1xf32> to vector<2x1xf32>
    %431 = vector.broadcast %430 : vector<2x1xf32> to vector<2x128xf32>
    %432 = vector.broadcast %0 : vector<1x128xf32> to vector<2x128xf32>
    %433 = arith.mulf %431, %432 : vector<2x128xf32>
    %434 = vector.broadcast %1 : vector<1x128xf32> to vector<2x128xf32>
    %435 = arith.addf %433, %434 : vector<2x128xf32>
    %436 = arith.truncf %422 : vector<2x32xf32> to vector<2x32xbf16>
    %cst_152 = arith.constant dense<0.000000e+00> : vector<2x128xf32>
    %437 = tpu.matmul %436, %427, %cst_152 {dimension_numbers = #tpu.dot_dimension_numbers<[1], [0], [0], [1], [0, 0, 1, 1], [], []>} : vector<2x32xbf16>, vector<32x128xbf16>, vector<2x128xf32> -> vector<2x128xf32>
    %438 = arith.addf %435, %437 : vector<2x128xf32>
    %439 = vector.extract_strided_slice %438 {offsets = [0, 0], sizes = [2, 32], strides = [1, 1]} : vector<2x128xf32> to vector<2x32xf32>
    %cst_153 = arith.constant 5.000000e-01 : f32
    %440 = vector.broadcast %cst_153 : f32 to vector<2x32xf32>
    %441 = arith.mulf %440, %439 : vector<2x32xf32>
    %442 = math.tanh %441 : vector<2x32xf32>
    %cst_154 = arith.constant 5.000000e-01 : f32
    %443 = vector.broadcast %cst_154 : f32 to vector<2x32xf32>
    %444 = arith.mulf %443, %442 : vector<2x32xf32>
    %cst_155 = arith.constant 5.000000e-01 : f32
    %445 = vector.broadcast %cst_155 : f32 to vector<2x32xf32>
    %446 = arith.addf %444, %445 : vector<2x32xf32>
    %447 = vector.extract_strided_slice %438 {offsets = [0, 32], sizes = [2, 32], strides = [1, 1]} : vector<2x128xf32> to vector<2x32xf32>
    %cst_156 = arith.constant 5.000000e-01 : f32
    %448 = vector.broadcast %cst_156 : f32 to vector<2x32xf32>
    %449 = arith.mulf %448, %447 : vector<2x32xf32>
    %450 = math.tanh %449 : vector<2x32xf32>
    %cst_157 = arith.constant 5.000000e-01 : f32
    %451 = vector.broadcast %cst_157 : f32 to vector<2x32xf32>
    %452 = arith.mulf %451, %450 : vector<2x32xf32>
    %cst_158 = arith.constant 5.000000e-01 : f32
    %453 = vector.broadcast %cst_158 : f32 to vector<2x32xf32>
    %454 = arith.addf %452, %453 : vector<2x32xf32>
    %455 = vector.extract_strided_slice %438 {offsets = [0, 64], sizes = [2, 32], strides = [1, 1]} : vector<2x128xf32> to vector<2x32xf32>
    %456 = math.tanh %455 : vector<2x32xf32>
    %457 = vector.extract_strided_slice %438 {offsets = [0, 96], sizes = [2, 32], strides = [1, 1]} : vector<2x128xf32> to vector<2x32xf32>
    %cst_159 = arith.constant 5.000000e-01 : f32
    %458 = vector.broadcast %cst_159 : f32 to vector<2x32xf32>
    %459 = arith.mulf %458, %457 : vector<2x32xf32>
    %460 = math.tanh %459 : vector<2x32xf32>
    %cst_160 = arith.constant 5.000000e-01 : f32
    %461 = vector.broadcast %cst_160 : f32 to vector<2x32xf32>
    %462 = arith.mulf %461, %460 : vector<2x32xf32>
    %cst_161 = arith.constant 5.000000e-01 : f32
    %463 = vector.broadcast %cst_161 : f32 to vector<2x32xf32>
    %464 = arith.addf %462, %463 : vector<2x32xf32>
    %465 = arith.mulf %454, %420 : vector<2x32xf32>
    %466 = arith.mulf %446, %456 : vector<2x32xf32>
    %467 = arith.addf %465, %466 : vector<2x32xf32>
    %468 = math.tanh %467 : vector<2x32xf32>
    %469 = arith.mulf %464, %468 : vector<2x32xf32>
    %470 = arith.index_cast %c9_i32 : i32 to index
    %c0_162 = arith.constant 0 : index
    %c0_163 = arith.constant 0 : index
    %471 = vector.load %arg10[%470, %c0_162, %c0_163] : memref<16x2x32xf32, #tpu.memory_space<vmem>>, vector<1x2x32xf32>
    %472 = vector.shape_cast %471 : vector<1x2x32xf32> to vector<2x32xf32>
    %473 = vector.shape_cast %469 : vector<2x32xf32> to vector<1x2x32xf32>
    tpu.vector_store %arg10[%470, %c0_162, %c0_163], %473 {strides = array<i32>} : memref<16x2x32xf32, #tpu.memory_space<vmem>>, vector<1x2x32xf32>,
    %c10_i32 = arith.constant 10 : i32
    %c0_164 = arith.constant 0 : index
    %c0_165 = arith.constant 0 : index
    %474 = vector.load %arg3[%c0_164, %c0_165] : memref<32x128xbf16, #tpu.memory_space<vmem>>, vector<32x128xbf16>
    %475 = arith.index_cast %c10_i32 : i32 to index
    %c0_166 = arith.constant 0 : index
    %c0_167 = arith.constant 0 : index
    %476 = vector.load %arg1[%475, %c0_166, %c0_167] : memref<16x2x1xf32, #tpu.memory_space<vmem>>, vector<1x2x1xf32>
    %477 = vector.shape_cast %476 : vector<1x2x1xf32> to vector<2x1xf32>
    %478 = vector.broadcast %477 : vector<2x1xf32> to vector<2x128xf32>
    %479 = vector.broadcast %0 : vector<1x128xf32> to vector<2x128xf32>
    %480 = arith.mulf %478, %479 : vector<2x128xf32>
    %481 = vector.broadcast %1 : vector<1x128xf32> to vector<2x128xf32>
    %482 = arith.addf %480, %481 : vector<2x128xf32>
    %483 = arith.truncf %469 : vector<2x32xf32> to vector<2x32xbf16>
    %cst_168 = arith.constant dense<0.000000e+00> : vector<2x128xf32>
    %484 = tpu.matmul %483, %474, %cst_168 {dimension_numbers = #tpu.dot_dimension_numbers<[1], [0], [0], [1], [0, 0, 1, 1], [], []>} : vector<2x32xbf16>, vector<32x128xbf16>, vector<2x128xf32> -> vector<2x128xf32>
    %485 = arith.addf %482, %484 : vector<2x128xf32>
    %486 = vector.extract_strided_slice %485 {offsets = [0, 0], sizes = [2, 32], strides = [1, 1]} : vector<2x128xf32> to vector<2x32xf32>
    %cst_169 = arith.constant 5.000000e-01 : f32
    %487 = vector.broadcast %cst_169 : f32 to vector<2x32xf32>
    %488 = arith.mulf %487, %486 : vector<2x32xf32>
    %489 = math.tanh %488 : vector<2x32xf32>
    %cst_170 = arith.constant 5.000000e-01 : f32
    %490 = vector.broadcast %cst_170 : f32 to vector<2x32xf32>
    %491 = arith.mulf %490, %489 : vector<2x32xf32>
    %cst_171 = arith.constant 5.000000e-01 : f32
    %492 = vector.broadcast %cst_171 : f32 to vector<2x32xf32>
    %493 = arith.addf %491, %492 : vector<2x32xf32>
    %494 = vector.extract_strided_slice %485 {offsets = [0, 32], sizes = [2, 32], strides = [1, 1]} : vector<2x128xf32> to vector<2x32xf32>
    %cst_172 = arith.constant 5.000000e-01 : f32
    %495 = vector.broadcast %cst_172 : f32 to vector<2x32xf32>
    %496 = arith.mulf %495, %494 : vector<2x32xf32>
    %497 = math.tanh %496 : vector<2x32xf32>
    %cst_173 = arith.constant 5.000000e-01 : f32
    %498 = vector.broadcast %cst_173 : f32 to vector<2x32xf32>
    %499 = arith.mulf %498, %497 : vector<2x32xf32>
    %cst_174 = arith.constant 5.000000e-01 : f32
    %500 = vector.broadcast %cst_174 : f32 to vector<2x32xf32>
    %501 = arith.addf %499, %500 : vector<2x32xf32>
    %502 = vector.extract_strided_slice %485 {offsets = [0, 64], sizes = [2, 32], strides = [1, 1]} : vector<2x128xf32> to vector<2x32xf32>
    %503 = math.tanh %502 : vector<2x32xf32>
    %504 = vector.extract_strided_slice %485 {offsets = [0, 96], sizes = [2, 32], strides = [1, 1]} : vector<2x128xf32> to vector<2x32xf32>
    %cst_175 = arith.constant 5.000000e-01 : f32
    %505 = vector.broadcast %cst_175 : f32 to vector<2x32xf32>
    %506 = arith.mulf %505, %504 : vector<2x32xf32>
    %507 = math.tanh %506 : vector<2x32xf32>
    %cst_176 = arith.constant 5.000000e-01 : f32
    %508 = vector.broadcast %cst_176 : f32 to vector<2x32xf32>
    %509 = arith.mulf %508, %507 : vector<2x32xf32>
    %cst_177 = arith.constant 5.000000e-01 : f32
    %510 = vector.broadcast %cst_177 : f32 to vector<2x32xf32>
    %511 = arith.addf %509, %510 : vector<2x32xf32>
    %512 = arith.mulf %501, %467 : vector<2x32xf32>
    %513 = arith.mulf %493, %503 : vector<2x32xf32>
    %514 = arith.addf %512, %513 : vector<2x32xf32>
    %515 = math.tanh %514 : vector<2x32xf32>
    %516 = arith.mulf %511, %515 : vector<2x32xf32>
    %517 = arith.index_cast %c10_i32 : i32 to index
    %c0_178 = arith.constant 0 : index
    %c0_179 = arith.constant 0 : index
    %518 = vector.load %arg10[%517, %c0_178, %c0_179] : memref<16x2x32xf32, #tpu.memory_space<vmem>>, vector<1x2x32xf32>
    %519 = vector.shape_cast %518 : vector<1x2x32xf32> to vector<2x32xf32>
    %520 = vector.shape_cast %516 : vector<2x32xf32> to vector<1x2x32xf32>
    tpu.vector_store %arg10[%517, %c0_178, %c0_179], %520 {strides = array<i32>} : memref<16x2x32xf32, #tpu.memory_space<vmem>>, vector<1x2x32xf32>,
    %c11_i32 = arith.constant 11 : i32
    %c0_180 = arith.constant 0 : index
    %c0_181 = arith.constant 0 : index
    %521 = vector.load %arg3[%c0_180, %c0_181] : memref<32x128xbf16, #tpu.memory_space<vmem>>, vector<32x128xbf16>
    %522 = arith.index_cast %c11_i32 : i32 to index
    %c0_182 = arith.constant 0 : index
    %c0_183 = arith.constant 0 : index
    %523 = vector.load %arg1[%522, %c0_182, %c0_183] : memref<16x2x1xf32, #tpu.memory_space<vmem>>, vector<1x2x1xf32>
    %524 = vector.shape_cast %523 : vector<1x2x1xf32> to vector<2x1xf32>
    %525 = vector.broadcast %524 : vector<2x1xf32> to vector<2x128xf32>
    %526 = vector.broadcast %0 : vector<1x128xf32> to vector<2x128xf32>
    %527 = arith.mulf %525, %526 : vector<2x128xf32>
    %528 = vector.broadcast %1 : vector<1x128xf32> to vector<2x128xf32>
    %529 = arith.addf %527, %528 : vector<2x128xf32>
    %530 = arith.truncf %516 : vector<2x32xf32> to vector<2x32xbf16>
    %cst_184 = arith.constant dense<0.000000e+00> : vector<2x128xf32>
    %531 = tpu.matmul %530, %521, %cst_184 {dimension_numbers = #tpu.dot_dimension_numbers<[1], [0], [0], [1], [0, 0, 1, 1], [], []>} : vector<2x32xbf16>, vector<32x128xbf16>, vector<2x128xf32> -> vector<2x128xf32>
    %532 = arith.addf %529, %531 : vector<2x128xf32>
    %533 = vector.extract_strided_slice %532 {offsets = [0, 0], sizes = [2, 32], strides = [1, 1]} : vector<2x128xf32> to vector<2x32xf32>
    %cst_185 = arith.constant 5.000000e-01 : f32
    %534 = vector.broadcast %cst_185 : f32 to vector<2x32xf32>
    %535 = arith.mulf %534, %533 : vector<2x32xf32>
    %536 = math.tanh %535 : vector<2x32xf32>
    %cst_186 = arith.constant 5.000000e-01 : f32
    %537 = vector.broadcast %cst_186 : f32 to vector<2x32xf32>
    %538 = arith.mulf %537, %536 : vector<2x32xf32>
    %cst_187 = arith.constant 5.000000e-01 : f32
    %539 = vector.broadcast %cst_187 : f32 to vector<2x32xf32>
    %540 = arith.addf %538, %539 : vector<2x32xf32>
    %541 = vector.extract_strided_slice %532 {offsets = [0, 32], sizes = [2, 32], strides = [1, 1]} : vector<2x128xf32> to vector<2x32xf32>
    %cst_188 = arith.constant 5.000000e-01 : f32
    %542 = vector.broadcast %cst_188 : f32 to vector<2x32xf32>
    %543 = arith.mulf %542, %541 : vector<2x32xf32>
    %544 = math.tanh %543 : vector<2x32xf32>
    %cst_189 = arith.constant 5.000000e-01 : f32
    %545 = vector.broadcast %cst_189 : f32 to vector<2x32xf32>
    %546 = arith.mulf %545, %544 : vector<2x32xf32>
    %cst_190 = arith.constant 5.000000e-01 : f32
    %547 = vector.broadcast %cst_190 : f32 to vector<2x32xf32>
    %548 = arith.addf %546, %547 : vector<2x32xf32>
    %549 = vector.extract_strided_slice %532 {offsets = [0, 64], sizes = [2, 32], strides = [1, 1]} : vector<2x128xf32> to vector<2x32xf32>
    %550 = math.tanh %549 : vector<2x32xf32>
    %551 = vector.extract_strided_slice %532 {offsets = [0, 96], sizes = [2, 32], strides = [1, 1]} : vector<2x128xf32> to vector<2x32xf32>
    %cst_191 = arith.constant 5.000000e-01 : f32
    %552 = vector.broadcast %cst_191 : f32 to vector<2x32xf32>
    %553 = arith.mulf %552, %551 : vector<2x32xf32>
    %554 = math.tanh %553 : vector<2x32xf32>
    %cst_192 = arith.constant 5.000000e-01 : f32
    %555 = vector.broadcast %cst_192 : f32 to vector<2x32xf32>
    %556 = arith.mulf %555, %554 : vector<2x32xf32>
    %cst_193 = arith.constant 5.000000e-01 : f32
    %557 = vector.broadcast %cst_193 : f32 to vector<2x32xf32>
    %558 = arith.addf %556, %557 : vector<2x32xf32>
    %559 = arith.mulf %548, %514 : vector<2x32xf32>
    %560 = arith.mulf %540, %550 : vector<2x32xf32>
    %561 = arith.addf %559, %560 : vector<2x32xf32>
    %562 = math.tanh %561 : vector<2x32xf32>
    %563 = arith.mulf %558, %562 : vector<2x32xf32>
    %564 = arith.index_cast %c11_i32 : i32 to index
    %c0_194 = arith.constant 0 : index
    %c0_195 = arith.constant 0 : index
    %565 = vector.load %arg10[%564, %c0_194, %c0_195] : memref<16x2x32xf32, #tpu.memory_space<vmem>>, vector<1x2x32xf32>
    %566 = vector.shape_cast %565 : vector<1x2x32xf32> to vector<2x32xf32>
    %567 = vector.shape_cast %563 : vector<2x32xf32> to vector<1x2x32xf32>
    tpu.vector_store %arg10[%564, %c0_194, %c0_195], %567 {strides = array<i32>} : memref<16x2x32xf32, #tpu.memory_space<vmem>>, vector<1x2x32xf32>,
    %c12_i32 = arith.constant 12 : i32
    %c0_196 = arith.constant 0 : index
    %c0_197 = arith.constant 0 : index
    %568 = vector.load %arg3[%c0_196, %c0_197] : memref<32x128xbf16, #tpu.memory_space<vmem>>, vector<32x128xbf16>
    %569 = arith.index_cast %c12_i32 : i32 to index
    %c0_198 = arith.constant 0 : index
    %c0_199 = arith.constant 0 : index
    %570 = vector.load %arg1[%569, %c0_198, %c0_199] : memref<16x2x1xf32, #tpu.memory_space<vmem>>, vector<1x2x1xf32>
    %571 = vector.shape_cast %570 : vector<1x2x1xf32> to vector<2x1xf32>
    %572 = vector.broadcast %571 : vector<2x1xf32> to vector<2x128xf32>
    %573 = vector.broadcast %0 : vector<1x128xf32> to vector<2x128xf32>
    %574 = arith.mulf %572, %573 : vector<2x128xf32>
    %575 = vector.broadcast %1 : vector<1x128xf32> to vector<2x128xf32>
    %576 = arith.addf %574, %575 : vector<2x128xf32>
    %577 = arith.truncf %563 : vector<2x32xf32> to vector<2x32xbf16>
    %cst_200 = arith.constant dense<0.000000e+00> : vector<2x128xf32>
    %578 = tpu.matmul %577, %568, %cst_200 {dimension_numbers = #tpu.dot_dimension_numbers<[1], [0], [0], [1], [0, 0, 1, 1], [], []>} : vector<2x32xbf16>, vector<32x128xbf16>, vector<2x128xf32> -> vector<2x128xf32>
    %579 = arith.addf %576, %578 : vector<2x128xf32>
    %580 = vector.extract_strided_slice %579 {offsets = [0, 0], sizes = [2, 32], strides = [1, 1]} : vector<2x128xf32> to vector<2x32xf32>
    %cst_201 = arith.constant 5.000000e-01 : f32
    %581 = vector.broadcast %cst_201 : f32 to vector<2x32xf32>
    %582 = arith.mulf %581, %580 : vector<2x32xf32>
    %583 = math.tanh %582 : vector<2x32xf32>
    %cst_202 = arith.constant 5.000000e-01 : f32
    %584 = vector.broadcast %cst_202 : f32 to vector<2x32xf32>
    %585 = arith.mulf %584, %583 : vector<2x32xf32>
    %cst_203 = arith.constant 5.000000e-01 : f32
    %586 = vector.broadcast %cst_203 : f32 to vector<2x32xf32>
    %587 = arith.addf %585, %586 : vector<2x32xf32>
    %588 = vector.extract_strided_slice %579 {offsets = [0, 32], sizes = [2, 32], strides = [1, 1]} : vector<2x128xf32> to vector<2x32xf32>
    %cst_204 = arith.constant 5.000000e-01 : f32
    %589 = vector.broadcast %cst_204 : f32 to vector<2x32xf32>
    %590 = arith.mulf %589, %588 : vector<2x32xf32>
    %591 = math.tanh %590 : vector<2x32xf32>
    %cst_205 = arith.constant 5.000000e-01 : f32
    %592 = vector.broadcast %cst_205 : f32 to vector<2x32xf32>
    %593 = arith.mulf %592, %591 : vector<2x32xf32>
    %cst_206 = arith.constant 5.000000e-01 : f32
    %594 = vector.broadcast %cst_206 : f32 to vector<2x32xf32>
    %595 = arith.addf %593, %594 : vector<2x32xf32>
    %596 = vector.extract_strided_slice %579 {offsets = [0, 64], sizes = [2, 32], strides = [1, 1]} : vector<2x128xf32> to vector<2x32xf32>
    %597 = math.tanh %596 : vector<2x32xf32>
    %598 = vector.extract_strided_slice %579 {offsets = [0, 96], sizes = [2, 32], strides = [1, 1]} : vector<2x128xf32> to vector<2x32xf32>
    %cst_207 = arith.constant 5.000000e-01 : f32
    %599 = vector.broadcast %cst_207 : f32 to vector<2x32xf32>
    %600 = arith.mulf %599, %598 : vector<2x32xf32>
    %601 = math.tanh %600 : vector<2x32xf32>
    %cst_208 = arith.constant 5.000000e-01 : f32
    %602 = vector.broadcast %cst_208 : f32 to vector<2x32xf32>
    %603 = arith.mulf %602, %601 : vector<2x32xf32>
    %cst_209 = arith.constant 5.000000e-01 : f32
    %604 = vector.broadcast %cst_209 : f32 to vector<2x32xf32>
    %605 = arith.addf %603, %604 : vector<2x32xf32>
    %606 = arith.mulf %595, %561 : vector<2x32xf32>
    %607 = arith.mulf %587, %597 : vector<2x32xf32>
    %608 = arith.addf %606, %607 : vector<2x32xf32>
    %609 = math.tanh %608 : vector<2x32xf32>
    %610 = arith.mulf %605, %609 : vector<2x32xf32>
    %611 = arith.index_cast %c12_i32 : i32 to index
    %c0_210 = arith.constant 0 : index
    %c0_211 = arith.constant 0 : index
    %612 = vector.load %arg10[%611, %c0_210, %c0_211] : memref<16x2x32xf32, #tpu.memory_space<vmem>>, vector<1x2x32xf32>
    %613 = vector.shape_cast %612 : vector<1x2x32xf32> to vector<2x32xf32>
    %614 = vector.shape_cast %610 : vector<2x32xf32> to vector<1x2x32xf32>
    tpu.vector_store %arg10[%611, %c0_210, %c0_211], %614 {strides = array<i32>} : memref<16x2x32xf32, #tpu.memory_space<vmem>>, vector<1x2x32xf32>,
    %c13_i32 = arith.constant 13 : i32
    %c0_212 = arith.constant 0 : index
    %c0_213 = arith.constant 0 : index
    %615 = vector.load %arg3[%c0_212, %c0_213] : memref<32x128xbf16, #tpu.memory_space<vmem>>, vector<32x128xbf16>
    %616 = arith.index_cast %c13_i32 : i32 to index
    %c0_214 = arith.constant 0 : index
    %c0_215 = arith.constant 0 : index
    %617 = vector.load %arg1[%616, %c0_214, %c0_215] : memref<16x2x1xf32, #tpu.memory_space<vmem>>, vector<1x2x1xf32>
    %618 = vector.shape_cast %617 : vector<1x2x1xf32> to vector<2x1xf32>
    %619 = vector.broadcast %618 : vector<2x1xf32> to vector<2x128xf32>
    %620 = vector.broadcast %0 : vector<1x128xf32> to vector<2x128xf32>
    %621 = arith.mulf %619, %620 : vector<2x128xf32>
    %622 = vector.broadcast %1 : vector<1x128xf32> to vector<2x128xf32>
    %623 = arith.addf %621, %622 : vector<2x128xf32>
    %624 = arith.truncf %610 : vector<2x32xf32> to vector<2x32xbf16>
    %cst_216 = arith.constant dense<0.000000e+00> : vector<2x128xf32>
    %625 = tpu.matmul %624, %615, %cst_216 {dimension_numbers = #tpu.dot_dimension_numbers<[1], [0], [0], [1], [0, 0, 1, 1], [], []>} : vector<2x32xbf16>, vector<32x128xbf16>, vector<2x128xf32> -> vector<2x128xf32>
    %626 = arith.addf %623, %625 : vector<2x128xf32>
    %627 = vector.extract_strided_slice %626 {offsets = [0, 0], sizes = [2, 32], strides = [1, 1]} : vector<2x128xf32> to vector<2x32xf32>
    %cst_217 = arith.constant 5.000000e-01 : f32
    %628 = vector.broadcast %cst_217 : f32 to vector<2x32xf32>
    %629 = arith.mulf %628, %627 : vector<2x32xf32>
    %630 = math.tanh %629 : vector<2x32xf32>
    %cst_218 = arith.constant 5.000000e-01 : f32
    %631 = vector.broadcast %cst_218 : f32 to vector<2x32xf32>
    %632 = arith.mulf %631, %630 : vector<2x32xf32>
    %cst_219 = arith.constant 5.000000e-01 : f32
    %633 = vector.broadcast %cst_219 : f32 to vector<2x32xf32>
    %634 = arith.addf %632, %633 : vector<2x32xf32>
    %635 = vector.extract_strided_slice %626 {offsets = [0, 32], sizes = [2, 32], strides = [1, 1]} : vector<2x128xf32> to vector<2x32xf32>
    %cst_220 = arith.constant 5.000000e-01 : f32
    %636 = vector.broadcast %cst_220 : f32 to vector<2x32xf32>
    %637 = arith.mulf %636, %635 : vector<2x32xf32>
    %638 = math.tanh %637 : vector<2x32xf32>
    %cst_221 = arith.constant 5.000000e-01 : f32
    %639 = vector.broadcast %cst_221 : f32 to vector<2x32xf32>
    %640 = arith.mulf %639, %638 : vector<2x32xf32>
    %cst_222 = arith.constant 5.000000e-01 : f32
    %641 = vector.broadcast %cst_222 : f32 to vector<2x32xf32>
    %642 = arith.addf %640, %641 : vector<2x32xf32>
    %643 = vector.extract_strided_slice %626 {offsets = [0, 64], sizes = [2, 32], strides = [1, 1]} : vector<2x128xf32> to vector<2x32xf32>
    %644 = math.tanh %643 : vector<2x32xf32>
    %645 = vector.extract_strided_slice %626 {offsets = [0, 96], sizes = [2, 32], strides = [1, 1]} : vector<2x128xf32> to vector<2x32xf32>
    %cst_223 = arith.constant 5.000000e-01 : f32
    %646 = vector.broadcast %cst_223 : f32 to vector<2x32xf32>
    %647 = arith.mulf %646, %645 : vector<2x32xf32>
    %648 = math.tanh %647 : vector<2x32xf32>
    %cst_224 = arith.constant 5.000000e-01 : f32
    %649 = vector.broadcast %cst_224 : f32 to vector<2x32xf32>
    %650 = arith.mulf %649, %648 : vector<2x32xf32>
    %cst_225 = arith.constant 5.000000e-01 : f32
    %651 = vector.broadcast %cst_225 : f32 to vector<2x32xf32>
    %652 = arith.addf %650, %651 : vector<2x32xf32>
    %653 = arith.mulf %642, %608 : vector<2x32xf32>
    %654 = arith.mulf %634, %644 : vector<2x32xf32>
    %655 = arith.addf %653, %654 : vector<2x32xf32>
    %656 = math.tanh %655 : vector<2x32xf32>
    %657 = arith.mulf %652, %656 : vector<2x32xf32>
    %658 = arith.index_cast %c13_i32 : i32 to index
    %c0_226 = arith.constant 0 : index
    %c0_227 = arith.constant 0 : index
    %659 = vector.load %arg10[%658, %c0_226, %c0_227] : memref<16x2x32xf32, #tpu.memory_space<vmem>>, vector<1x2x32xf32>
    %660 = vector.shape_cast %659 : vector<1x2x32xf32> to vector<2x32xf32>
    %661 = vector.shape_cast %657 : vector<2x32xf32> to vector<1x2x32xf32>
    tpu.vector_store %arg10[%658, %c0_226, %c0_227], %661 {strides = array<i32>} : memref<16x2x32xf32, #tpu.memory_space<vmem>>, vector<1x2x32xf32>,
    %c14_i32 = arith.constant 14 : i32
    %c0_228 = arith.constant 0 : index
    %c0_229 = arith.constant 0 : index
    %662 = vector.load %arg3[%c0_228, %c0_229] : memref<32x128xbf16, #tpu.memory_space<vmem>>, vector<32x128xbf16>
    %663 = arith.index_cast %c14_i32 : i32 to index
    %c0_230 = arith.constant 0 : index
    %c0_231 = arith.constant 0 : index
    %664 = vector.load %arg1[%663, %c0_230, %c0_231] : memref<16x2x1xf32, #tpu.memory_space<vmem>>, vector<1x2x1xf32>
    %665 = vector.shape_cast %664 : vector<1x2x1xf32> to vector<2x1xf32>
    %666 = vector.broadcast %665 : vector<2x1xf32> to vector<2x128xf32>
    %667 = vector.broadcast %0 : vector<1x128xf32> to vector<2x128xf32>
    %668 = arith.mulf %666, %667 : vector<2x128xf32>
    %669 = vector.broadcast %1 : vector<1x128xf32> to vector<2x128xf32>
    %670 = arith.addf %668, %669 : vector<2x128xf32>
    %671 = arith.truncf %657 : vector<2x32xf32> to vector<2x32xbf16>
    %cst_232 = arith.constant dense<0.000000e+00> : vector<2x128xf32>
    %672 = tpu.matmul %671, %662, %cst_232 {dimension_numbers = #tpu.dot_dimension_numbers<[1], [0], [0], [1], [0, 0, 1, 1], [], []>} : vector<2x32xbf16>, vector<32x128xbf16>, vector<2x128xf32> -> vector<2x128xf32>
    %673 = arith.addf %670, %672 : vector<2x128xf32>
    %674 = vector.extract_strided_slice %673 {offsets = [0, 0], sizes = [2, 32], strides = [1, 1]} : vector<2x128xf32> to vector<2x32xf32>
    %cst_233 = arith.constant 5.000000e-01 : f32
    %675 = vector.broadcast %cst_233 : f32 to vector<2x32xf32>
    %676 = arith.mulf %675, %674 : vector<2x32xf32>
    %677 = math.tanh %676 : vector<2x32xf32>
    %cst_234 = arith.constant 5.000000e-01 : f32
    %678 = vector.broadcast %cst_234 : f32 to vector<2x32xf32>
    %679 = arith.mulf %678, %677 : vector<2x32xf32>
    %cst_235 = arith.constant 5.000000e-01 : f32
    %680 = vector.broadcast %cst_235 : f32 to vector<2x32xf32>
    %681 = arith.addf %679, %680 : vector<2x32xf32>
    %682 = vector.extract_strided_slice %673 {offsets = [0, 32], sizes = [2, 32], strides = [1, 1]} : vector<2x128xf32> to vector<2x32xf32>
    %cst_236 = arith.constant 5.000000e-01 : f32
    %683 = vector.broadcast %cst_236 : f32 to vector<2x32xf32>
    %684 = arith.mulf %683, %682 : vector<2x32xf32>
    %685 = math.tanh %684 : vector<2x32xf32>
    %cst_237 = arith.constant 5.000000e-01 : f32
    %686 = vector.broadcast %cst_237 : f32 to vector<2x32xf32>
    %687 = arith.mulf %686, %685 : vector<2x32xf32>
    %cst_238 = arith.constant 5.000000e-01 : f32
    %688 = vector.broadcast %cst_238 : f32 to vector<2x32xf32>
    %689 = arith.addf %687, %688 : vector<2x32xf32>
    %690 = vector.extract_strided_slice %673 {offsets = [0, 64], sizes = [2, 32], strides = [1, 1]} : vector<2x128xf32> to vector<2x32xf32>
    %691 = math.tanh %690 : vector<2x32xf32>
    %692 = vector.extract_strided_slice %673 {offsets = [0, 96], sizes = [2, 32], strides = [1, 1]} : vector<2x128xf32> to vector<2x32xf32>
    %cst_239 = arith.constant 5.000000e-01 : f32
    %693 = vector.broadcast %cst_239 : f32 to vector<2x32xf32>
    %694 = arith.mulf %693, %692 : vector<2x32xf32>
    %695 = math.tanh %694 : vector<2x32xf32>
    %cst_240 = arith.constant 5.000000e-01 : f32
    %696 = vector.broadcast %cst_240 : f32 to vector<2x32xf32>
    %697 = arith.mulf %696, %695 : vector<2x32xf32>
    %cst_241 = arith.constant 5.000000e-01 : f32
    %698 = vector.broadcast %cst_241 : f32 to vector<2x32xf32>
    %699 = arith.addf %697, %698 : vector<2x32xf32>
    %700 = arith.mulf %689, %655 : vector<2x32xf32>
    %701 = arith.mulf %681, %691 : vector<2x32xf32>
    %702 = arith.addf %700, %701 : vector<2x32xf32>
    %703 = math.tanh %702 : vector<2x32xf32>
    %704 = arith.mulf %699, %703 : vector<2x32xf32>
    %705 = arith.index_cast %c14_i32 : i32 to index
    %c0_242 = arith.constant 0 : index
    %c0_243 = arith.constant 0 : index
    %706 = vector.load %arg10[%705, %c0_242, %c0_243] : memref<16x2x32xf32, #tpu.memory_space<vmem>>, vector<1x2x32xf32>
    %707 = vector.shape_cast %706 : vector<1x2x32xf32> to vector<2x32xf32>
    %708 = vector.shape_cast %704 : vector<2x32xf32> to vector<1x2x32xf32>
    tpu.vector_store %arg10[%705, %c0_242, %c0_243], %708 {strides = array<i32>} : memref<16x2x32xf32, #tpu.memory_space<vmem>>, vector<1x2x32xf32>,
    %c15_i32 = arith.constant 15 : i32
    %c0_244 = arith.constant 0 : index
    %c0_245 = arith.constant 0 : index
    %709 = vector.load %arg3[%c0_244, %c0_245] : memref<32x128xbf16, #tpu.memory_space<vmem>>, vector<32x128xbf16>
    %710 = arith.index_cast %c15_i32 : i32 to index
    %c0_246 = arith.constant 0 : index
    %c0_247 = arith.constant 0 : index
    %711 = vector.load %arg1[%710, %c0_246, %c0_247] : memref<16x2x1xf32, #tpu.memory_space<vmem>>, vector<1x2x1xf32>
    %712 = vector.shape_cast %711 : vector<1x2x1xf32> to vector<2x1xf32>
    %713 = vector.broadcast %712 : vector<2x1xf32> to vector<2x128xf32>
    %714 = vector.broadcast %0 : vector<1x128xf32> to vector<2x128xf32>
    %715 = arith.mulf %713, %714 : vector<2x128xf32>
    %716 = vector.broadcast %1 : vector<1x128xf32> to vector<2x128xf32>
    %717 = arith.addf %715, %716 : vector<2x128xf32>
    %718 = arith.truncf %704 : vector<2x32xf32> to vector<2x32xbf16>
    %cst_248 = arith.constant dense<0.000000e+00> : vector<2x128xf32>
    %719 = tpu.matmul %718, %709, %cst_248 {dimension_numbers = #tpu.dot_dimension_numbers<[1], [0], [0], [1], [0, 0, 1, 1], [], []>} : vector<2x32xbf16>, vector<32x128xbf16>, vector<2x128xf32> -> vector<2x128xf32>
    %720 = arith.addf %717, %719 : vector<2x128xf32>
    %721 = vector.extract_strided_slice %720 {offsets = [0, 0], sizes = [2, 32], strides = [1, 1]} : vector<2x128xf32> to vector<2x32xf32>
    %cst_249 = arith.constant 5.000000e-01 : f32
    %722 = vector.broadcast %cst_249 : f32 to vector<2x32xf32>
    %723 = arith.mulf %722, %721 : vector<2x32xf32>
    %724 = math.tanh %723 : vector<2x32xf32>
    %cst_250 = arith.constant 5.000000e-01 : f32
    %725 = vector.broadcast %cst_250 : f32 to vector<2x32xf32>
    %726 = arith.mulf %725, %724 : vector<2x32xf32>
    %cst_251 = arith.constant 5.000000e-01 : f32
    %727 = vector.broadcast %cst_251 : f32 to vector<2x32xf32>
    %728 = arith.addf %726, %727 : vector<2x32xf32>
    %729 = vector.extract_strided_slice %720 {offsets = [0, 32], sizes = [2, 32], strides = [1, 1]} : vector<2x128xf32> to vector<2x32xf32>
    %cst_252 = arith.constant 5.000000e-01 : f32
    %730 = vector.broadcast %cst_252 : f32 to vector<2x32xf32>
    %731 = arith.mulf %730, %729 : vector<2x32xf32>
    %732 = math.tanh %731 : vector<2x32xf32>
    %cst_253 = arith.constant 5.000000e-01 : f32
    %733 = vector.broadcast %cst_253 : f32 to vector<2x32xf32>
    %734 = arith.mulf %733, %732 : vector<2x32xf32>
    %cst_254 = arith.constant 5.000000e-01 : f32
    %735 = vector.broadcast %cst_254 : f32 to vector<2x32xf32>
    %736 = arith.addf %734, %735 : vector<2x32xf32>
    %737 = vector.extract_strided_slice %720 {offsets = [0, 64], sizes = [2, 32], strides = [1, 1]} : vector<2x128xf32> to vector<2x32xf32>
    %738 = math.tanh %737 : vector<2x32xf32>
    %739 = vector.extract_strided_slice %720 {offsets = [0, 96], sizes = [2, 32], strides = [1, 1]} : vector<2x128xf32> to vector<2x32xf32>
    %cst_255 = arith.constant 5.000000e-01 : f32
    %740 = vector.broadcast %cst_255 : f32 to vector<2x32xf32>
    %741 = arith.mulf %740, %739 : vector<2x32xf32>
    %742 = math.tanh %741 : vector<2x32xf32>
    %cst_256 = arith.constant 5.000000e-01 : f32
    %743 = vector.broadcast %cst_256 : f32 to vector<2x32xf32>
    %744 = arith.mulf %743, %742 : vector<2x32xf32>
    %cst_257 = arith.constant 5.000000e-01 : f32
    %745 = vector.broadcast %cst_257 : f32 to vector<2x32xf32>
    %746 = arith.addf %744, %745 : vector<2x32xf32>
    %747 = arith.mulf %736, %702 : vector<2x32xf32>
    %748 = arith.mulf %728, %738 : vector<2x32xf32>
    %749 = arith.addf %747, %748 : vector<2x32xf32>
    %750 = math.tanh %749 : vector<2x32xf32>
    %751 = arith.mulf %746, %750 : vector<2x32xf32>
    %752 = arith.index_cast %c15_i32 : i32 to index
    %c0_258 = arith.constant 0 : index
    %c0_259 = arith.constant 0 : index
    %753 = vector.load %arg10[%752, %c0_258, %c0_259] : memref<16x2x32xf32, #tpu.memory_space<vmem>>, vector<1x2x32xf32>
    %754 = vector.shape_cast %753 : vector<1x2x32xf32> to vector<2x32xf32>
    %755 = vector.shape_cast %751 : vector<2x32xf32> to vector<1x2x32xf32>
    tpu.vector_store %arg10[%752, %c0_258, %c0_259], %755 {strides = array<i32>} : memref<16x2x32xf32, #tpu.memory_space<vmem>>, vector<1x2x32xf32>,
    %c16_i32 = arith.constant 16 : i32
    %c0_260 = arith.constant 0 : index
    %c0_261 = arith.constant 0 : index
    %c0_262 = arith.constant 0 : index
    %756 = vector.load %arg10[%c0_260, %c0_261, %c0_262] : memref<16x2x32xf32, #tpu.memory_space<vmem>>, vector<16x2x32xf32>
    %757 = vector.shape_cast %756 : vector<16x2x32xf32> to vector<32x32xf32>
    %758 = arith.truncf %757 : vector<32x32xf32> to vector<32x32xbf16>
    %c0_263 = arith.constant 0 : index
    %c0_264 = arith.constant 0 : index
    %759 = vector.load %arg5[%c0_263, %c0_264] : memref<32x128xbf16, #tpu.memory_space<vmem>>, vector<32x128xbf16>
    %cst_265 = arith.constant dense<0.000000e+00> : vector<32x128xf32>
    %760 = tpu.matmul %758, %759, %cst_265 {dimension_numbers = #tpu.dot_dimension_numbers<[1], [0], [0], [1], [0, 0, 1, 1], [], []>} : vector<32x32xbf16>, vector<32x128xbf16>, vector<32x128xf32> -> vector<32x128xf32>
    %c0_266 = arith.constant 0 : index
    %c0_267 = arith.constant 0 : index
    %761 = vector.load %arg7[%c0_266, %c0_267] : memref<1x128xf32, #tpu.memory_space<vmem>>, vector<1x128xf32>
    %762 = vector.broadcast %761 : vector<1x128xf32> to vector<32x128xf32>
    %763 = arith.addf %760, %762 : vector<32x128xf32>
    %764 = vector.shape_cast %763 : vector<32x128xf32> to vector<16x2x128xf32>
    %c0_268 = arith.constant 0 : index
    %c0_269 = arith.constant 0 : index
    %c0_270 = arith.constant 0 : index
    %765 = vector.load %arg9[%c0_268, %c0_269, %c0_270] : memref<16x2x128xf32, #tpu.memory_space<vmem>>, vector<16x2x128xf32>
    tpu.vector_store %arg9[%c0_268, %c0_269, %c0_270], %764 {strides = array<i32>} : memref<16x2x128xf32, #tpu.memory_space<vmem>>, vector<16x2x128xf32>,
    %cst_271 = arith.constant 0.000000e+00 : f32
    %766 = vector.broadcast %cst_271 : f32 to vector<2x32xf32>
    %cst_272 = arith.constant 0.000000e+00 : f32
    %767 = vector.broadcast %cst_272 : f32 to vector<2x32xf32>
    %c0_i32_273 = arith.constant 0 : i32
    %c0_274 = arith.constant 0 : index
    %c0_275 = arith.constant 0 : index
    %768 = vector.load %arg6[%c0_274, %c0_275] : memref<32x128xbf16, #tpu.memory_space<vmem>>, vector<32x128xbf16>
    %769 = arith.index_cast %c0_i32_273 : i32 to index
    %c0_276 = arith.constant 0 : index
    %c0_277 = arith.constant 0 : index
    %770 = vector.load %arg9[%769, %c0_276, %c0_277] : memref<16x2x128xf32, #tpu.memory_space<vmem>>, vector<1x2x128xf32>
    %771 = vector.shape_cast %770 : vector<1x2x128xf32> to vector<2x128xf32>
    %772 = arith.truncf %766 : vector<2x32xf32> to vector<2x32xbf16>
    %cst_278 = arith.constant dense<0.000000e+00> : vector<2x128xf32>
    %773 = tpu.matmul %772, %768, %cst_278 {dimension_numbers = #tpu.dot_dimension_numbers<[1], [0], [0], [1], [0, 0, 1, 1], [], []>} : vector<2x32xbf16>, vector<32x128xbf16>, vector<2x128xf32> -> vector<2x128xf32>
    %774 = arith.addf %771, %773 : vector<2x128xf32>
    %775 = vector.extract_strided_slice %774 {offsets = [0, 0], sizes = [2, 32], strides = [1, 1]} : vector<2x128xf32> to vector<2x32xf32>
    %cst_279 = arith.constant 5.000000e-01 : f32
    %776 = vector.broadcast %cst_279 : f32 to vector<2x32xf32>
    %777 = arith.mulf %776, %775 : vector<2x32xf32>
    %778 = math.tanh %777 : vector<2x32xf32>
    %cst_280 = arith.constant 5.000000e-01 : f32
    %779 = vector.broadcast %cst_280 : f32 to vector<2x32xf32>
    %780 = arith.mulf %779, %778 : vector<2x32xf32>
    %cst_281 = arith.constant 5.000000e-01 : f32
    %781 = vector.broadcast %cst_281 : f32 to vector<2x32xf32>
    %782 = arith.addf %780, %781 : vector<2x32xf32>
    %783 = vector.extract_strided_slice %774 {offsets = [0, 32], sizes = [2, 32], strides = [1, 1]} : vector<2x128xf32> to vector<2x32xf32>
    %cst_282 = arith.constant 5.000000e-01 : f32
    %784 = vector.broadcast %cst_282 : f32 to vector<2x32xf32>
    %785 = arith.mulf %784, %783 : vector<2x32xf32>
    %786 = math.tanh %785 : vector<2x32xf32>
    %cst_283 = arith.constant 5.000000e-01 : f32
    %787 = vector.broadcast %cst_283 : f32 to vector<2x32xf32>
    %788 = arith.mulf %787, %786 : vector<2x32xf32>
    %cst_284 = arith.constant 5.000000e-01 : f32
    %789 = vector.broadcast %cst_284 : f32 to vector<2x32xf32>
    %790 = arith.addf %788, %789 : vector<2x32xf32>
    %791 = vector.extract_strided_slice %774 {offsets = [0, 64], sizes = [2, 32], strides = [1, 1]} : vector<2x128xf32> to vector<2x32xf32>
    %792 = math.tanh %791 : vector<2x32xf32>
    %793 = vector.extract_strided_slice %774 {offsets = [0, 96], sizes = [2, 32], strides = [1, 1]} : vector<2x128xf32> to vector<2x32xf32>
    %cst_285 = arith.constant 5.000000e-01 : f32
    %794 = vector.broadcast %cst_285 : f32 to vector<2x32xf32>
    %795 = arith.mulf %794, %793 : vector<2x32xf32>
    %796 = math.tanh %795 : vector<2x32xf32>
    %cst_286 = arith.constant 5.000000e-01 : f32
    %797 = vector.broadcast %cst_286 : f32 to vector<2x32xf32>
    %798 = arith.mulf %797, %796 : vector<2x32xf32>
    %cst_287 = arith.constant 5.000000e-01 : f32
    %799 = vector.broadcast %cst_287 : f32 to vector<2x32xf32>
    %800 = arith.addf %798, %799 : vector<2x32xf32>
    %801 = arith.mulf %790, %767 : vector<2x32xf32>
    %802 = arith.mulf %782, %792 : vector<2x32xf32>
    %803 = arith.addf %801, %802 : vector<2x32xf32>
    %804 = math.tanh %803 : vector<2x32xf32>
    %805 = arith.mulf %800, %804 : vector<2x32xf32>
    %c1_i32_288 = arith.constant 1 : i32
    %c0_289 = arith.constant 0 : index
    %c0_290 = arith.constant 0 : index
    %806 = vector.load %arg6[%c0_289, %c0_290] : memref<32x128xbf16, #tpu.memory_space<vmem>>, vector<32x128xbf16>
    %807 = arith.index_cast %c1_i32_288 : i32 to index
    %c0_291 = arith.constant 0 : index
    %c0_292 = arith.constant 0 : index
    %808 = vector.load %arg9[%807, %c0_291, %c0_292] : memref<16x2x128xf32, #tpu.memory_space<vmem>>, vector<1x2x128xf32>
    %809 = vector.shape_cast %808 : vector<1x2x128xf32> to vector<2x128xf32>
    %810 = arith.truncf %805 : vector<2x32xf32> to vector<2x32xbf16>
    %cst_293 = arith.constant dense<0.000000e+00> : vector<2x128xf32>
    %811 = tpu.matmul %810, %806, %cst_293 {dimension_numbers = #tpu.dot_dimension_numbers<[1], [0], [0], [1], [0, 0, 1, 1], [], []>} : vector<2x32xbf16>, vector<32x128xbf16>, vector<2x128xf32> -> vector<2x128xf32>
    %812 = arith.addf %809, %811 : vector<2x128xf32>
    %813 = vector.extract_strided_slice %812 {offsets = [0, 0], sizes = [2, 32], strides = [1, 1]} : vector<2x128xf32> to vector<2x32xf32>
    %cst_294 = arith.constant 5.000000e-01 : f32
    %814 = vector.broadcast %cst_294 : f32 to vector<2x32xf32>
    %815 = arith.mulf %814, %813 : vector<2x32xf32>
    %816 = math.tanh %815 : vector<2x32xf32>
    %cst_295 = arith.constant 5.000000e-01 : f32
    %817 = vector.broadcast %cst_295 : f32 to vector<2x32xf32>
    %818 = arith.mulf %817, %816 : vector<2x32xf32>
    %cst_296 = arith.constant 5.000000e-01 : f32
    %819 = vector.broadcast %cst_296 : f32 to vector<2x32xf32>
    %820 = arith.addf %818, %819 : vector<2x32xf32>
    %821 = vector.extract_strided_slice %812 {offsets = [0, 32], sizes = [2, 32], strides = [1, 1]} : vector<2x128xf32> to vector<2x32xf32>
    %cst_297 = arith.constant 5.000000e-01 : f32
    %822 = vector.broadcast %cst_297 : f32 to vector<2x32xf32>
    %823 = arith.mulf %822, %821 : vector<2x32xf32>
    %824 = math.tanh %823 : vector<2x32xf32>
    %cst_298 = arith.constant 5.000000e-01 : f32
    %825 = vector.broadcast %cst_298 : f32 to vector<2x32xf32>
    %826 = arith.mulf %825, %824 : vector<2x32xf32>
    %cst_299 = arith.constant 5.000000e-01 : f32
    %827 = vector.broadcast %cst_299 : f32 to vector<2x32xf32>
    %828 = arith.addf %826, %827 : vector<2x32xf32>
    %829 = vector.extract_strided_slice %812 {offsets = [0, 64], sizes = [2, 32], strides = [1, 1]} : vector<2x128xf32> to vector<2x32xf32>
    %830 = math.tanh %829 : vector<2x32xf32>
    %831 = vector.extract_strided_slice %812 {offsets = [0, 96], sizes = [2, 32], strides = [1, 1]} : vector<2x128xf32> to vector<2x32xf32>
    %cst_300 = arith.constant 5.000000e-01 : f32
    %832 = vector.broadcast %cst_300 : f32 to vector<2x32xf32>
    %833 = arith.mulf %832, %831 : vector<2x32xf32>
    %834 = math.tanh %833 : vector<2x32xf32>
    %cst_301 = arith.constant 5.000000e-01 : f32
    %835 = vector.broadcast %cst_301 : f32 to vector<2x32xf32>
    %836 = arith.mulf %835, %834 : vector<2x32xf32>
    %cst_302 = arith.constant 5.000000e-01 : f32
    %837 = vector.broadcast %cst_302 : f32 to vector<2x32xf32>
    %838 = arith.addf %836, %837 : vector<2x32xf32>
    %839 = arith.mulf %828, %803 : vector<2x32xf32>
    %840 = arith.mulf %820, %830 : vector<2x32xf32>
    %841 = arith.addf %839, %840 : vector<2x32xf32>
    %842 = math.tanh %841 : vector<2x32xf32>
    %843 = arith.mulf %838, %842 : vector<2x32xf32>
    %c2_i32_303 = arith.constant 2 : i32
    %c0_304 = arith.constant 0 : index
    %c0_305 = arith.constant 0 : index
    %844 = vector.load %arg6[%c0_304, %c0_305] : memref<32x128xbf16, #tpu.memory_space<vmem>>, vector<32x128xbf16>
    %845 = arith.index_cast %c2_i32_303 : i32 to index
    %c0_306 = arith.constant 0 : index
    %c0_307 = arith.constant 0 : index
    %846 = vector.load %arg9[%845, %c0_306, %c0_307] : memref<16x2x128xf32, #tpu.memory_space<vmem>>, vector<1x2x128xf32>
    %847 = vector.shape_cast %846 : vector<1x2x128xf32> to vector<2x128xf32>
    %848 = arith.truncf %843 : vector<2x32xf32> to vector<2x32xbf16>
    %cst_308 = arith.constant dense<0.000000e+00> : vector<2x128xf32>
    %849 = tpu.matmul %848, %844, %cst_308 {dimension_numbers = #tpu.dot_dimension_numbers<[1], [0], [0], [1], [0, 0, 1, 1], [], []>} : vector<2x32xbf16>, vector<32x128xbf16>, vector<2x128xf32> -> vector<2x128xf32>
    %850 = arith.addf %847, %849 : vector<2x128xf32>
    %851 = vector.extract_strided_slice %850 {offsets = [0, 0], sizes = [2, 32], strides = [1, 1]} : vector<2x128xf32> to vector<2x32xf32>
    %cst_309 = arith.constant 5.000000e-01 : f32
    %852 = vector.broadcast %cst_309 : f32 to vector<2x32xf32>
    %853 = arith.mulf %852, %851 : vector<2x32xf32>
    %854 = math.tanh %853 : vector<2x32xf32>
    %cst_310 = arith.constant 5.000000e-01 : f32
    %855 = vector.broadcast %cst_310 : f32 to vector<2x32xf32>
    %856 = arith.mulf %855, %854 : vector<2x32xf32>
    %cst_311 = arith.constant 5.000000e-01 : f32
    %857 = vector.broadcast %cst_311 : f32 to vector<2x32xf32>
    %858 = arith.addf %856, %857 : vector<2x32xf32>
    %859 = vector.extract_strided_slice %850 {offsets = [0, 32], sizes = [2, 32], strides = [1, 1]} : vector<2x128xf32> to vector<2x32xf32>
    %cst_312 = arith.constant 5.000000e-01 : f32
    %860 = vector.broadcast %cst_312 : f32 to vector<2x32xf32>
    %861 = arith.mulf %860, %859 : vector<2x32xf32>
    %862 = math.tanh %861 : vector<2x32xf32>
    %cst_313 = arith.constant 5.000000e-01 : f32
    %863 = vector.broadcast %cst_313 : f32 to vector<2x32xf32>
    %864 = arith.mulf %863, %862 : vector<2x32xf32>
    %cst_314 = arith.constant 5.000000e-01 : f32
    %865 = vector.broadcast %cst_314 : f32 to vector<2x32xf32>
    %866 = arith.addf %864, %865 : vector<2x32xf32>
    %867 = vector.extract_strided_slice %850 {offsets = [0, 64], sizes = [2, 32], strides = [1, 1]} : vector<2x128xf32> to vector<2x32xf32>
    %868 = math.tanh %867 : vector<2x32xf32>
    %869 = vector.extract_strided_slice %850 {offsets = [0, 96], sizes = [2, 32], strides = [1, 1]} : vector<2x128xf32> to vector<2x32xf32>
    %cst_315 = arith.constant 5.000000e-01 : f32
    %870 = vector.broadcast %cst_315 : f32 to vector<2x32xf32>
    %871 = arith.mulf %870, %869 : vector<2x32xf32>
    %872 = math.tanh %871 : vector<2x32xf32>
    %cst_316 = arith.constant 5.000000e-01 : f32
    %873 = vector.broadcast %cst_316 : f32 to vector<2x32xf32>
    %874 = arith.mulf %873, %872 : vector<2x32xf32>
    %cst_317 = arith.constant 5.000000e-01 : f32
    %875 = vector.broadcast %cst_317 : f32 to vector<2x32xf32>
    %876 = arith.addf %874, %875 : vector<2x32xf32>
    %877 = arith.mulf %866, %841 : vector<2x32xf32>
    %878 = arith.mulf %858, %868 : vector<2x32xf32>
    %879 = arith.addf %877, %878 : vector<2x32xf32>
    %880 = math.tanh %879 : vector<2x32xf32>
    %881 = arith.mulf %876, %880 : vector<2x32xf32>
    %c3_i32_318 = arith.constant 3 : i32
    %c0_319 = arith.constant 0 : index
    %c0_320 = arith.constant 0 : index
    %882 = vector.load %arg6[%c0_319, %c0_320] : memref<32x128xbf16, #tpu.memory_space<vmem>>, vector<32x128xbf16>
    %883 = arith.index_cast %c3_i32_318 : i32 to index
    %c0_321 = arith.constant 0 : index
    %c0_322 = arith.constant 0 : index
    %884 = vector.load %arg9[%883, %c0_321, %c0_322] : memref<16x2x128xf32, #tpu.memory_space<vmem>>, vector<1x2x128xf32>
    %885 = vector.shape_cast %884 : vector<1x2x128xf32> to vector<2x128xf32>
    %886 = arith.truncf %881 : vector<2x32xf32> to vector<2x32xbf16>
    %cst_323 = arith.constant dense<0.000000e+00> : vector<2x128xf32>
    %887 = tpu.matmul %886, %882, %cst_323 {dimension_numbers = #tpu.dot_dimension_numbers<[1], [0], [0], [1], [0, 0, 1, 1], [], []>} : vector<2x32xbf16>, vector<32x128xbf16>, vector<2x128xf32> -> vector<2x128xf32>
    %888 = arith.addf %885, %887 : vector<2x128xf32>
    %889 = vector.extract_strided_slice %888 {offsets = [0, 0], sizes = [2, 32], strides = [1, 1]} : vector<2x128xf32> to vector<2x32xf32>
    %cst_324 = arith.constant 5.000000e-01 : f32
    %890 = vector.broadcast %cst_324 : f32 to vector<2x32xf32>
    %891 = arith.mulf %890, %889 : vector<2x32xf32>
    %892 = math.tanh %891 : vector<2x32xf32>
    %cst_325 = arith.constant 5.000000e-01 : f32
    %893 = vector.broadcast %cst_325 : f32 to vector<2x32xf32>
    %894 = arith.mulf %893, %892 : vector<2x32xf32>
    %cst_326 = arith.constant 5.000000e-01 : f32
    %895 = vector.broadcast %cst_326 : f32 to vector<2x32xf32>
    %896 = arith.addf %894, %895 : vector<2x32xf32>
    %897 = vector.extract_strided_slice %888 {offsets = [0, 32], sizes = [2, 32], strides = [1, 1]} : vector<2x128xf32> to vector<2x32xf32>
    %cst_327 = arith.constant 5.000000e-01 : f32
    %898 = vector.broadcast %cst_327 : f32 to vector<2x32xf32>
    %899 = arith.mulf %898, %897 : vector<2x32xf32>
    %900 = math.tanh %899 : vector<2x32xf32>
    %cst_328 = arith.constant 5.000000e-01 : f32
    %901 = vector.broadcast %cst_328 : f32 to vector<2x32xf32>
    %902 = arith.mulf %901, %900 : vector<2x32xf32>
    %cst_329 = arith.constant 5.000000e-01 : f32
    %903 = vector.broadcast %cst_329 : f32 to vector<2x32xf32>
    %904 = arith.addf %902, %903 : vector<2x32xf32>
    %905 = vector.extract_strided_slice %888 {offsets = [0, 64], sizes = [2, 32], strides = [1, 1]} : vector<2x128xf32> to vector<2x32xf32>
    %906 = math.tanh %905 : vector<2x32xf32>
    %907 = vector.extract_strided_slice %888 {offsets = [0, 96], sizes = [2, 32], strides = [1, 1]} : vector<2x128xf32> to vector<2x32xf32>
    %cst_330 = arith.constant 5.000000e-01 : f32
    %908 = vector.broadcast %cst_330 : f32 to vector<2x32xf32>
    %909 = arith.mulf %908, %907 : vector<2x32xf32>
    %910 = math.tanh %909 : vector<2x32xf32>
    %cst_331 = arith.constant 5.000000e-01 : f32
    %911 = vector.broadcast %cst_331 : f32 to vector<2x32xf32>
    %912 = arith.mulf %911, %910 : vector<2x32xf32>
    %cst_332 = arith.constant 5.000000e-01 : f32
    %913 = vector.broadcast %cst_332 : f32 to vector<2x32xf32>
    %914 = arith.addf %912, %913 : vector<2x32xf32>
    %915 = arith.mulf %904, %879 : vector<2x32xf32>
    %916 = arith.mulf %896, %906 : vector<2x32xf32>
    %917 = arith.addf %915, %916 : vector<2x32xf32>
    %918 = math.tanh %917 : vector<2x32xf32>
    %919 = arith.mulf %914, %918 : vector<2x32xf32>
    %c4_i32_333 = arith.constant 4 : i32
    %c0_334 = arith.constant 0 : index
    %c0_335 = arith.constant 0 : index
    %920 = vector.load %arg6[%c0_334, %c0_335] : memref<32x128xbf16, #tpu.memory_space<vmem>>, vector<32x128xbf16>
    %921 = arith.index_cast %c4_i32_333 : i32 to index
    %c0_336 = arith.constant 0 : index
    %c0_337 = arith.constant 0 : index
    %922 = vector.load %arg9[%921, %c0_336, %c0_337] : memref<16x2x128xf32, #tpu.memory_space<vmem>>, vector<1x2x128xf32>
    %923 = vector.shape_cast %922 : vector<1x2x128xf32> to vector<2x128xf32>
    %924 = arith.truncf %919 : vector<2x32xf32> to vector<2x32xbf16>
    %cst_338 = arith.constant dense<0.000000e+00> : vector<2x128xf32>
    %925 = tpu.matmul %924, %920, %cst_338 {dimension_numbers = #tpu.dot_dimension_numbers<[1], [0], [0], [1], [0, 0, 1, 1], [], []>} : vector<2x32xbf16>, vector<32x128xbf16>, vector<2x128xf32> -> vector<2x128xf32>
    %926 = arith.addf %923, %925 : vector<2x128xf32>
    %927 = vector.extract_strided_slice %926 {offsets = [0, 0], sizes = [2, 32], strides = [1, 1]} : vector<2x128xf32> to vector<2x32xf32>
    %cst_339 = arith.constant 5.000000e-01 : f32
    %928 = vector.broadcast %cst_339 : f32 to vector<2x32xf32>
    %929 = arith.mulf %928, %927 : vector<2x32xf32>
    %930 = math.tanh %929 : vector<2x32xf32>
    %cst_340 = arith.constant 5.000000e-01 : f32
    %931 = vector.broadcast %cst_340 : f32 to vector<2x32xf32>
    %932 = arith.mulf %931, %930 : vector<2x32xf32>
    %cst_341 = arith.constant 5.000000e-01 : f32
    %933 = vector.broadcast %cst_341 : f32 to vector<2x32xf32>
    %934 = arith.addf %932, %933 : vector<2x32xf32>
    %935 = vector.extract_strided_slice %926 {offsets = [0, 32], sizes = [2, 32], strides = [1, 1]} : vector<2x128xf32> to vector<2x32xf32>
    %cst_342 = arith.constant 5.000000e-01 : f32
    %936 = vector.broadcast %cst_342 : f32 to vector<2x32xf32>
    %937 = arith.mulf %936, %935 : vector<2x32xf32>
    %938 = math.tanh %937 : vector<2x32xf32>
    %cst_343 = arith.constant 5.000000e-01 : f32
    %939 = vector.broadcast %cst_343 : f32 to vector<2x32xf32>
    %940 = arith.mulf %939, %938 : vector<2x32xf32>
    %cst_344 = arith.constant 5.000000e-01 : f32
    %941 = vector.broadcast %cst_344 : f32 to vector<2x32xf32>
    %942 = arith.addf %940, %941 : vector<2x32xf32>
    %943 = vector.extract_strided_slice %926 {offsets = [0, 64], sizes = [2, 32], strides = [1, 1]} : vector<2x128xf32> to vector<2x32xf32>
    %944 = math.tanh %943 : vector<2x32xf32>
    %945 = vector.extract_strided_slice %926 {offsets = [0, 96], sizes = [2, 32], strides = [1, 1]} : vector<2x128xf32> to vector<2x32xf32>
    %cst_345 = arith.constant 5.000000e-01 : f32
    %946 = vector.broadcast %cst_345 : f32 to vector<2x32xf32>
    %947 = arith.mulf %946, %945 : vector<2x32xf32>
    %948 = math.tanh %947 : vector<2x32xf32>
    %cst_346 = arith.constant 5.000000e-01 : f32
    %949 = vector.broadcast %cst_346 : f32 to vector<2x32xf32>
    %950 = arith.mulf %949, %948 : vector<2x32xf32>
    %cst_347 = arith.constant 5.000000e-01 : f32
    %951 = vector.broadcast %cst_347 : f32 to vector<2x32xf32>
    %952 = arith.addf %950, %951 : vector<2x32xf32>
    %953 = arith.mulf %942, %917 : vector<2x32xf32>
    %954 = arith.mulf %934, %944 : vector<2x32xf32>
    %955 = arith.addf %953, %954 : vector<2x32xf32>
    %956 = math.tanh %955 : vector<2x32xf32>
    %957 = arith.mulf %952, %956 : vector<2x32xf32>
    %c5_i32_348 = arith.constant 5 : i32
    %c0_349 = arith.constant 0 : index
    %c0_350 = arith.constant 0 : index
    %958 = vector.load %arg6[%c0_349, %c0_350] : memref<32x128xbf16, #tpu.memory_space<vmem>>, vector<32x128xbf16>
    %959 = arith.index_cast %c5_i32_348 : i32 to index
    %c0_351 = arith.constant 0 : index
    %c0_352 = arith.constant 0 : index
    %960 = vector.load %arg9[%959, %c0_351, %c0_352] : memref<16x2x128xf32, #tpu.memory_space<vmem>>, vector<1x2x128xf32>
    %961 = vector.shape_cast %960 : vector<1x2x128xf32> to vector<2x128xf32>
    %962 = arith.truncf %957 : vector<2x32xf32> to vector<2x32xbf16>
    %cst_353 = arith.constant dense<0.000000e+00> : vector<2x128xf32>
    %963 = tpu.matmul %962, %958, %cst_353 {dimension_numbers = #tpu.dot_dimension_numbers<[1], [0], [0], [1], [0, 0, 1, 1], [], []>} : vector<2x32xbf16>, vector<32x128xbf16>, vector<2x128xf32> -> vector<2x128xf32>
    %964 = arith.addf %961, %963 : vector<2x128xf32>
    %965 = vector.extract_strided_slice %964 {offsets = [0, 0], sizes = [2, 32], strides = [1, 1]} : vector<2x128xf32> to vector<2x32xf32>
    %cst_354 = arith.constant 5.000000e-01 : f32
    %966 = vector.broadcast %cst_354 : f32 to vector<2x32xf32>
    %967 = arith.mulf %966, %965 : vector<2x32xf32>
    %968 = math.tanh %967 : vector<2x32xf32>
    %cst_355 = arith.constant 5.000000e-01 : f32
    %969 = vector.broadcast %cst_355 : f32 to vector<2x32xf32>
    %970 = arith.mulf %969, %968 : vector<2x32xf32>
    %cst_356 = arith.constant 5.000000e-01 : f32
    %971 = vector.broadcast %cst_356 : f32 to vector<2x32xf32>
    %972 = arith.addf %970, %971 : vector<2x32xf32>
    %973 = vector.extract_strided_slice %964 {offsets = [0, 32], sizes = [2, 32], strides = [1, 1]} : vector<2x128xf32> to vector<2x32xf32>
    %cst_357 = arith.constant 5.000000e-01 : f32
    %974 = vector.broadcast %cst_357 : f32 to vector<2x32xf32>
    %975 = arith.mulf %974, %973 : vector<2x32xf32>
    %976 = math.tanh %975 : vector<2x32xf32>
    %cst_358 = arith.constant 5.000000e-01 : f32
    %977 = vector.broadcast %cst_358 : f32 to vector<2x32xf32>
    %978 = arith.mulf %977, %976 : vector<2x32xf32>
    %cst_359 = arith.constant 5.000000e-01 : f32
    %979 = vector.broadcast %cst_359 : f32 to vector<2x32xf32>
    %980 = arith.addf %978, %979 : vector<2x32xf32>
    %981 = vector.extract_strided_slice %964 {offsets = [0, 64], sizes = [2, 32], strides = [1, 1]} : vector<2x128xf32> to vector<2x32xf32>
    %982 = math.tanh %981 : vector<2x32xf32>
    %983 = vector.extract_strided_slice %964 {offsets = [0, 96], sizes = [2, 32], strides = [1, 1]} : vector<2x128xf32> to vector<2x32xf32>
    %cst_360 = arith.constant 5.000000e-01 : f32
    %984 = vector.broadcast %cst_360 : f32 to vector<2x32xf32>
    %985 = arith.mulf %984, %983 : vector<2x32xf32>
    %986 = math.tanh %985 : vector<2x32xf32>
    %cst_361 = arith.constant 5.000000e-01 : f32
    %987 = vector.broadcast %cst_361 : f32 to vector<2x32xf32>
    %988 = arith.mulf %987, %986 : vector<2x32xf32>
    %cst_362 = arith.constant 5.000000e-01 : f32
    %989 = vector.broadcast %cst_362 : f32 to vector<2x32xf32>
    %990 = arith.addf %988, %989 : vector<2x32xf32>
    %991 = arith.mulf %980, %955 : vector<2x32xf32>
    %992 = arith.mulf %972, %982 : vector<2x32xf32>
    %993 = arith.addf %991, %992 : vector<2x32xf32>
    %994 = math.tanh %993 : vector<2x32xf32>
    %995 = arith.mulf %990, %994 : vector<2x32xf32>
    %c6_i32_363 = arith.constant 6 : i32
    %c0_364 = arith.constant 0 : index
    %c0_365 = arith.constant 0 : index
    %996 = vector.load %arg6[%c0_364, %c0_365] : memref<32x128xbf16, #tpu.memory_space<vmem>>, vector<32x128xbf16>
    %997 = arith.index_cast %c6_i32_363 : i32 to index
    %c0_366 = arith.constant 0 : index
    %c0_367 = arith.constant 0 : index
    %998 = vector.load %arg9[%997, %c0_366, %c0_367] : memref<16x2x128xf32, #tpu.memory_space<vmem>>, vector<1x2x128xf32>
    %999 = vector.shape_cast %998 : vector<1x2x128xf32> to vector<2x128xf32>
    %1000 = arith.truncf %995 : vector<2x32xf32> to vector<2x32xbf16>
    %cst_368 = arith.constant dense<0.000000e+00> : vector<2x128xf32>
    %1001 = tpu.matmul %1000, %996, %cst_368 {dimension_numbers = #tpu.dot_dimension_numbers<[1], [0], [0], [1], [0, 0, 1, 1], [], []>} : vector<2x32xbf16>, vector<32x128xbf16>, vector<2x128xf32> -> vector<2x128xf32>
    %1002 = arith.addf %999, %1001 : vector<2x128xf32>
    %1003 = vector.extract_strided_slice %1002 {offsets = [0, 0], sizes = [2, 32], strides = [1, 1]} : vector<2x128xf32> to vector<2x32xf32>
    %cst_369 = arith.constant 5.000000e-01 : f32
    %1004 = vector.broadcast %cst_369 : f32 to vector<2x32xf32>
    %1005 = arith.mulf %1004, %1003 : vector<2x32xf32>
    %1006 = math.tanh %1005 : vector<2x32xf32>
    %cst_370 = arith.constant 5.000000e-01 : f32
    %1007 = vector.broadcast %cst_370 : f32 to vector<2x32xf32>
    %1008 = arith.mulf %1007, %1006 : vector<2x32xf32>
    %cst_371 = arith.constant 5.000000e-01 : f32
    %1009 = vector.broadcast %cst_371 : f32 to vector<2x32xf32>
    %1010 = arith.addf %1008, %1009 : vector<2x32xf32>
    %1011 = vector.extract_strided_slice %1002 {offsets = [0, 32], sizes = [2, 32], strides = [1, 1]} : vector<2x128xf32> to vector<2x32xf32>
    %cst_372 = arith.constant 5.000000e-01 : f32
    %1012 = vector.broadcast %cst_372 : f32 to vector<2x32xf32>
    %1013 = arith.mulf %1012, %1011 : vector<2x32xf32>
    %1014 = math.tanh %1013 : vector<2x32xf32>
    %cst_373 = arith.constant 5.000000e-01 : f32
    %1015 = vector.broadcast %cst_373 : f32 to vector<2x32xf32>
    %1016 = arith.mulf %1015, %1014 : vector<2x32xf32>
    %cst_374 = arith.constant 5.000000e-01 : f32
    %1017 = vector.broadcast %cst_374 : f32 to vector<2x32xf32>
    %1018 = arith.addf %1016, %1017 : vector<2x32xf32>
    %1019 = vector.extract_strided_slice %1002 {offsets = [0, 64], sizes = [2, 32], strides = [1, 1]} : vector<2x128xf32> to vector<2x32xf32>
    %1020 = math.tanh %1019 : vector<2x32xf32>
    %1021 = vector.extract_strided_slice %1002 {offsets = [0, 96], sizes = [2, 32], strides = [1, 1]} : vector<2x128xf32> to vector<2x32xf32>
    %cst_375 = arith.constant 5.000000e-01 : f32
    %1022 = vector.broadcast %cst_375 : f32 to vector<2x32xf32>
    %1023 = arith.mulf %1022, %1021 : vector<2x32xf32>
    %1024 = math.tanh %1023 : vector<2x32xf32>
    %cst_376 = arith.constant 5.000000e-01 : f32
    %1025 = vector.broadcast %cst_376 : f32 to vector<2x32xf32>
    %1026 = arith.mulf %1025, %1024 : vector<2x32xf32>
    %cst_377 = arith.constant 5.000000e-01 : f32
    %1027 = vector.broadcast %cst_377 : f32 to vector<2x32xf32>
    %1028 = arith.addf %1026, %1027 : vector<2x32xf32>
    %1029 = arith.mulf %1018, %993 : vector<2x32xf32>
    %1030 = arith.mulf %1010, %1020 : vector<2x32xf32>
    %1031 = arith.addf %1029, %1030 : vector<2x32xf32>
    %1032 = math.tanh %1031 : vector<2x32xf32>
    %1033 = arith.mulf %1028, %1032 : vector<2x32xf32>
    %c7_i32_378 = arith.constant 7 : i32
    %c0_379 = arith.constant 0 : index
    %c0_380 = arith.constant 0 : index
    %1034 = vector.load %arg6[%c0_379, %c0_380] : memref<32x128xbf16, #tpu.memory_space<vmem>>, vector<32x128xbf16>
    %1035 = arith.index_cast %c7_i32_378 : i32 to index
    %c0_381 = arith.constant 0 : index
    %c0_382 = arith.constant 0 : index
    %1036 = vector.load %arg9[%1035, %c0_381, %c0_382] : memref<16x2x128xf32, #tpu.memory_space<vmem>>, vector<1x2x128xf32>
    %1037 = vector.shape_cast %1036 : vector<1x2x128xf32> to vector<2x128xf32>
    %1038 = arith.truncf %1033 : vector<2x32xf32> to vector<2x32xbf16>
    %cst_383 = arith.constant dense<0.000000e+00> : vector<2x128xf32>
    %1039 = tpu.matmul %1038, %1034, %cst_383 {dimension_numbers = #tpu.dot_dimension_numbers<[1], [0], [0], [1], [0, 0, 1, 1], [], []>} : vector<2x32xbf16>, vector<32x128xbf16>, vector<2x128xf32> -> vector<2x128xf32>
    %1040 = arith.addf %1037, %1039 : vector<2x128xf32>
    %1041 = vector.extract_strided_slice %1040 {offsets = [0, 0], sizes = [2, 32], strides = [1, 1]} : vector<2x128xf32> to vector<2x32xf32>
    %cst_384 = arith.constant 5.000000e-01 : f32
    %1042 = vector.broadcast %cst_384 : f32 to vector<2x32xf32>
    %1043 = arith.mulf %1042, %1041 : vector<2x32xf32>
    %1044 = math.tanh %1043 : vector<2x32xf32>
    %cst_385 = arith.constant 5.000000e-01 : f32
    %1045 = vector.broadcast %cst_385 : f32 to vector<2x32xf32>
    %1046 = arith.mulf %1045, %1044 : vector<2x32xf32>
    %cst_386 = arith.constant 5.000000e-01 : f32
    %1047 = vector.broadcast %cst_386 : f32 to vector<2x32xf32>
    %1048 = arith.addf %1046, %1047 : vector<2x32xf32>
    %1049 = vector.extract_strided_slice %1040 {offsets = [0, 32], sizes = [2, 32], strides = [1, 1]} : vector<2x128xf32> to vector<2x32xf32>
    %cst_387 = arith.constant 5.000000e-01 : f32
    %1050 = vector.broadcast %cst_387 : f32 to vector<2x32xf32>
    %1051 = arith.mulf %1050, %1049 : vector<2x32xf32>
    %1052 = math.tanh %1051 : vector<2x32xf32>
    %cst_388 = arith.constant 5.000000e-01 : f32
    %1053 = vector.broadcast %cst_388 : f32 to vector<2x32xf32>
    %1054 = arith.mulf %1053, %1052 : vector<2x32xf32>
    %cst_389 = arith.constant 5.000000e-01 : f32
    %1055 = vector.broadcast %cst_389 : f32 to vector<2x32xf32>
    %1056 = arith.addf %1054, %1055 : vector<2x32xf32>
    %1057 = vector.extract_strided_slice %1040 {offsets = [0, 64], sizes = [2, 32], strides = [1, 1]} : vector<2x128xf32> to vector<2x32xf32>
    %1058 = math.tanh %1057 : vector<2x32xf32>
    %1059 = vector.extract_strided_slice %1040 {offsets = [0, 96], sizes = [2, 32], strides = [1, 1]} : vector<2x128xf32> to vector<2x32xf32>
    %cst_390 = arith.constant 5.000000e-01 : f32
    %1060 = vector.broadcast %cst_390 : f32 to vector<2x32xf32>
    %1061 = arith.mulf %1060, %1059 : vector<2x32xf32>
    %1062 = math.tanh %1061 : vector<2x32xf32>
    %cst_391 = arith.constant 5.000000e-01 : f32
    %1063 = vector.broadcast %cst_391 : f32 to vector<2x32xf32>
    %1064 = arith.mulf %1063, %1062 : vector<2x32xf32>
    %cst_392 = arith.constant 5.000000e-01 : f32
    %1065 = vector.broadcast %cst_392 : f32 to vector<2x32xf32>
    %1066 = arith.addf %1064, %1065 : vector<2x32xf32>
    %1067 = arith.mulf %1056, %1031 : vector<2x32xf32>
    %1068 = arith.mulf %1048, %1058 : vector<2x32xf32>
    %1069 = arith.addf %1067, %1068 : vector<2x32xf32>
    %1070 = math.tanh %1069 : vector<2x32xf32>
    %1071 = arith.mulf %1066, %1070 : vector<2x32xf32>
    %c8_i32_393 = arith.constant 8 : i32
    %c0_394 = arith.constant 0 : index
    %c0_395 = arith.constant 0 : index
    %1072 = vector.load %arg6[%c0_394, %c0_395] : memref<32x128xbf16, #tpu.memory_space<vmem>>, vector<32x128xbf16>
    %1073 = arith.index_cast %c8_i32_393 : i32 to index
    %c0_396 = arith.constant 0 : index
    %c0_397 = arith.constant 0 : index
    %1074 = vector.load %arg9[%1073, %c0_396, %c0_397] : memref<16x2x128xf32, #tpu.memory_space<vmem>>, vector<1x2x128xf32>
    %1075 = vector.shape_cast %1074 : vector<1x2x128xf32> to vector<2x128xf32>
    %1076 = arith.truncf %1071 : vector<2x32xf32> to vector<2x32xbf16>
    %cst_398 = arith.constant dense<0.000000e+00> : vector<2x128xf32>
    %1077 = tpu.matmul %1076, %1072, %cst_398 {dimension_numbers = #tpu.dot_dimension_numbers<[1], [0], [0], [1], [0, 0, 1, 1], [], []>} : vector<2x32xbf16>, vector<32x128xbf16>, vector<2x128xf32> -> vector<2x128xf32>
    %1078 = arith.addf %1075, %1077 : vector<2x128xf32>
    %1079 = vector.extract_strided_slice %1078 {offsets = [0, 0], sizes = [2, 32], strides = [1, 1]} : vector<2x128xf32> to vector<2x32xf32>
    %cst_399 = arith.constant 5.000000e-01 : f32
    %1080 = vector.broadcast %cst_399 : f32 to vector<2x32xf32>
    %1081 = arith.mulf %1080, %1079 : vector<2x32xf32>
    %1082 = math.tanh %1081 : vector<2x32xf32>
    %cst_400 = arith.constant 5.000000e-01 : f32
    %1083 = vector.broadcast %cst_400 : f32 to vector<2x32xf32>
    %1084 = arith.mulf %1083, %1082 : vector<2x32xf32>
    %cst_401 = arith.constant 5.000000e-01 : f32
    %1085 = vector.broadcast %cst_401 : f32 to vector<2x32xf32>
    %1086 = arith.addf %1084, %1085 : vector<2x32xf32>
    %1087 = vector.extract_strided_slice %1078 {offsets = [0, 32], sizes = [2, 32], strides = [1, 1]} : vector<2x128xf32> to vector<2x32xf32>
    %cst_402 = arith.constant 5.000000e-01 : f32
    %1088 = vector.broadcast %cst_402 : f32 to vector<2x32xf32>
    %1089 = arith.mulf %1088, %1087 : vector<2x32xf32>
    %1090 = math.tanh %1089 : vector<2x32xf32>
    %cst_403 = arith.constant 5.000000e-01 : f32
    %1091 = vector.broadcast %cst_403 : f32 to vector<2x32xf32>
    %1092 = arith.mulf %1091, %1090 : vector<2x32xf32>
    %cst_404 = arith.constant 5.000000e-01 : f32
    %1093 = vector.broadcast %cst_404 : f32 to vector<2x32xf32>
    %1094 = arith.addf %1092, %1093 : vector<2x32xf32>
    %1095 = vector.extract_strided_slice %1078 {offsets = [0, 64], sizes = [2, 32], strides = [1, 1]} : vector<2x128xf32> to vector<2x32xf32>
    %1096 = math.tanh %1095 : vector<2x32xf32>
    %1097 = vector.extract_strided_slice %1078 {offsets = [0, 96], sizes = [2, 32], strides = [1, 1]} : vector<2x128xf32> to vector<2x32xf32>
    %cst_405 = arith.constant 5.000000e-01 : f32
    %1098 = vector.broadcast %cst_405 : f32 to vector<2x32xf32>
    %1099 = arith.mulf %1098, %1097 : vector<2x32xf32>
    %1100 = math.tanh %1099 : vector<2x32xf32>
    %cst_406 = arith.constant 5.000000e-01 : f32
    %1101 = vector.broadcast %cst_406 : f32 to vector<2x32xf32>
    %1102 = arith.mulf %1101, %1100 : vector<2x32xf32>
    %cst_407 = arith.constant 5.000000e-01 : f32
    %1103 = vector.broadcast %cst_407 : f32 to vector<2x32xf32>
    %1104 = arith.addf %1102, %1103 : vector<2x32xf32>
    %1105 = arith.mulf %1094, %1069 : vector<2x32xf32>
    %1106 = arith.mulf %1086, %1096 : vector<2x32xf32>
    %1107 = arith.addf %1105, %1106 : vector<2x32xf32>
    %1108 = math.tanh %1107 : vector<2x32xf32>
    %1109 = arith.mulf %1104, %1108 : vector<2x32xf32>
    %c9_i32_408 = arith.constant 9 : i32
    %c0_409 = arith.constant 0 : index
    %c0_410 = arith.constant 0 : index
    %1110 = vector.load %arg6[%c0_409, %c0_410] : memref<32x128xbf16, #tpu.memory_space<vmem>>, vector<32x128xbf16>
    %1111 = arith.index_cast %c9_i32_408 : i32 to index
    %c0_411 = arith.constant 0 : index
    %c0_412 = arith.constant 0 : index
    %1112 = vector.load %arg9[%1111, %c0_411, %c0_412] : memref<16x2x128xf32, #tpu.memory_space<vmem>>, vector<1x2x128xf32>
    %1113 = vector.shape_cast %1112 : vector<1x2x128xf32> to vector<2x128xf32>
    %1114 = arith.truncf %1109 : vector<2x32xf32> to vector<2x32xbf16>
    %cst_413 = arith.constant dense<0.000000e+00> : vector<2x128xf32>
    %1115 = tpu.matmul %1114, %1110, %cst_413 {dimension_numbers = #tpu.dot_dimension_numbers<[1], [0], [0], [1], [0, 0, 1, 1], [], []>} : vector<2x32xbf16>, vector<32x128xbf16>, vector<2x128xf32> -> vector<2x128xf32>
    %1116 = arith.addf %1113, %1115 : vector<2x128xf32>
    %1117 = vector.extract_strided_slice %1116 {offsets = [0, 0], sizes = [2, 32], strides = [1, 1]} : vector<2x128xf32> to vector<2x32xf32>
    %cst_414 = arith.constant 5.000000e-01 : f32
    %1118 = vector.broadcast %cst_414 : f32 to vector<2x32xf32>
    %1119 = arith.mulf %1118, %1117 : vector<2x32xf32>
    %1120 = math.tanh %1119 : vector<2x32xf32>
    %cst_415 = arith.constant 5.000000e-01 : f32
    %1121 = vector.broadcast %cst_415 : f32 to vector<2x32xf32>
    %1122 = arith.mulf %1121, %1120 : vector<2x32xf32>
    %cst_416 = arith.constant 5.000000e-01 : f32
    %1123 = vector.broadcast %cst_416 : f32 to vector<2x32xf32>
    %1124 = arith.addf %1122, %1123 : vector<2x32xf32>
    %1125 = vector.extract_strided_slice %1116 {offsets = [0, 32], sizes = [2, 32], strides = [1, 1]} : vector<2x128xf32> to vector<2x32xf32>
    %cst_417 = arith.constant 5.000000e-01 : f32
    %1126 = vector.broadcast %cst_417 : f32 to vector<2x32xf32>
    %1127 = arith.mulf %1126, %1125 : vector<2x32xf32>
    %1128 = math.tanh %1127 : vector<2x32xf32>
    %cst_418 = arith.constant 5.000000e-01 : f32
    %1129 = vector.broadcast %cst_418 : f32 to vector<2x32xf32>
    %1130 = arith.mulf %1129, %1128 : vector<2x32xf32>
    %cst_419 = arith.constant 5.000000e-01 : f32
    %1131 = vector.broadcast %cst_419 : f32 to vector<2x32xf32>
    %1132 = arith.addf %1130, %1131 : vector<2x32xf32>
    %1133 = vector.extract_strided_slice %1116 {offsets = [0, 64], sizes = [2, 32], strides = [1, 1]} : vector<2x128xf32> to vector<2x32xf32>
    %1134 = math.tanh %1133 : vector<2x32xf32>
    %1135 = vector.extract_strided_slice %1116 {offsets = [0, 96], sizes = [2, 32], strides = [1, 1]} : vector<2x128xf32> to vector<2x32xf32>
    %cst_420 = arith.constant 5.000000e-01 : f32
    %1136 = vector.broadcast %cst_420 : f32 to vector<2x32xf32>
    %1137 = arith.mulf %1136, %1135 : vector<2x32xf32>
    %1138 = math.tanh %1137 : vector<2x32xf32>
    %cst_421 = arith.constant 5.000000e-01 : f32
    %1139 = vector.broadcast %cst_421 : f32 to vector<2x32xf32>
    %1140 = arith.mulf %1139, %1138 : vector<2x32xf32>
    %cst_422 = arith.constant 5.000000e-01 : f32
    %1141 = vector.broadcast %cst_422 : f32 to vector<2x32xf32>
    %1142 = arith.addf %1140, %1141 : vector<2x32xf32>
    %1143 = arith.mulf %1132, %1107 : vector<2x32xf32>
    %1144 = arith.mulf %1124, %1134 : vector<2x32xf32>
    %1145 = arith.addf %1143, %1144 : vector<2x32xf32>
    %1146 = math.tanh %1145 : vector<2x32xf32>
    %1147 = arith.mulf %1142, %1146 : vector<2x32xf32>
    %c10_i32_423 = arith.constant 10 : i32
    %c0_424 = arith.constant 0 : index
    %c0_425 = arith.constant 0 : index
    %1148 = vector.load %arg6[%c0_424, %c0_425] : memref<32x128xbf16, #tpu.memory_space<vmem>>, vector<32x128xbf16>
    %1149 = arith.index_cast %c10_i32_423 : i32 to index
    %c0_426 = arith.constant 0 : index
    %c0_427 = arith.constant 0 : index
    %1150 = vector.load %arg9[%1149, %c0_426, %c0_427] : memref<16x2x128xf32, #tpu.memory_space<vmem>>, vector<1x2x128xf32>
    %1151 = vector.shape_cast %1150 : vector<1x2x128xf32> to vector<2x128xf32>
    %1152 = arith.truncf %1147 : vector<2x32xf32> to vector<2x32xbf16>
    %cst_428 = arith.constant dense<0.000000e+00> : vector<2x128xf32>
    %1153 = tpu.matmul %1152, %1148, %cst_428 {dimension_numbers = #tpu.dot_dimension_numbers<[1], [0], [0], [1], [0, 0, 1, 1], [], []>} : vector<2x32xbf16>, vector<32x128xbf16>, vector<2x128xf32> -> vector<2x128xf32>
    %1154 = arith.addf %1151, %1153 : vector<2x128xf32>
    %1155 = vector.extract_strided_slice %1154 {offsets = [0, 0], sizes = [2, 32], strides = [1, 1]} : vector<2x128xf32> to vector<2x32xf32>
    %cst_429 = arith.constant 5.000000e-01 : f32
    %1156 = vector.broadcast %cst_429 : f32 to vector<2x32xf32>
    %1157 = arith.mulf %1156, %1155 : vector<2x32xf32>
    %1158 = math.tanh %1157 : vector<2x32xf32>
    %cst_430 = arith.constant 5.000000e-01 : f32
    %1159 = vector.broadcast %cst_430 : f32 to vector<2x32xf32>
    %1160 = arith.mulf %1159, %1158 : vector<2x32xf32>
    %cst_431 = arith.constant 5.000000e-01 : f32
    %1161 = vector.broadcast %cst_431 : f32 to vector<2x32xf32>
    %1162 = arith.addf %1160, %1161 : vector<2x32xf32>
    %1163 = vector.extract_strided_slice %1154 {offsets = [0, 32], sizes = [2, 32], strides = [1, 1]} : vector<2x128xf32> to vector<2x32xf32>
    %cst_432 = arith.constant 5.000000e-01 : f32
    %1164 = vector.broadcast %cst_432 : f32 to vector<2x32xf32>
    %1165 = arith.mulf %1164, %1163 : vector<2x32xf32>
    %1166 = math.tanh %1165 : vector<2x32xf32>
    %cst_433 = arith.constant 5.000000e-01 : f32
    %1167 = vector.broadcast %cst_433 : f32 to vector<2x32xf32>
    %1168 = arith.mulf %1167, %1166 : vector<2x32xf32>
    %cst_434 = arith.constant 5.000000e-01 : f32
    %1169 = vector.broadcast %cst_434 : f32 to vector<2x32xf32>
    %1170 = arith.addf %1168, %1169 : vector<2x32xf32>
    %1171 = vector.extract_strided_slice %1154 {offsets = [0, 64], sizes = [2, 32], strides = [1, 1]} : vector<2x128xf32> to vector<2x32xf32>
    %1172 = math.tanh %1171 : vector<2x32xf32>
    %1173 = vector.extract_strided_slice %1154 {offsets = [0, 96], sizes = [2, 32], strides = [1, 1]} : vector<2x128xf32> to vector<2x32xf32>
    %cst_435 = arith.constant 5.000000e-01 : f32
    %1174 = vector.broadcast %cst_435 : f32 to vector<2x32xf32>
    %1175 = arith.mulf %1174, %1173 : vector<2x32xf32>
    %1176 = math.tanh %1175 : vector<2x32xf32>
    %cst_436 = arith.constant 5.000000e-01 : f32
    %1177 = vector.broadcast %cst_436 : f32 to vector<2x32xf32>
    %1178 = arith.mulf %1177, %1176 : vector<2x32xf32>
    %cst_437 = arith.constant 5.000000e-01 : f32
    %1179 = vector.broadcast %cst_437 : f32 to vector<2x32xf32>
    %1180 = arith.addf %1178, %1179 : vector<2x32xf32>
    %1181 = arith.mulf %1170, %1145 : vector<2x32xf32>
    %1182 = arith.mulf %1162, %1172 : vector<2x32xf32>
    %1183 = arith.addf %1181, %1182 : vector<2x32xf32>
    %1184 = math.tanh %1183 : vector<2x32xf32>
    %1185 = arith.mulf %1180, %1184 : vector<2x32xf32>
    %c11_i32_438 = arith.constant 11 : i32
    %c0_439 = arith.constant 0 : index
    %c0_440 = arith.constant 0 : index
    %1186 = vector.load %arg6[%c0_439, %c0_440] : memref<32x128xbf16, #tpu.memory_space<vmem>>, vector<32x128xbf16>
    %1187 = arith.index_cast %c11_i32_438 : i32 to index
    %c0_441 = arith.constant 0 : index
    %c0_442 = arith.constant 0 : index
    %1188 = vector.load %arg9[%1187, %c0_441, %c0_442] : memref<16x2x128xf32, #tpu.memory_space<vmem>>, vector<1x2x128xf32>
    %1189 = vector.shape_cast %1188 : vector<1x2x128xf32> to vector<2x128xf32>
    %1190 = arith.truncf %1185 : vector<2x32xf32> to vector<2x32xbf16>
    %cst_443 = arith.constant dense<0.000000e+00> : vector<2x128xf32>
    %1191 = tpu.matmul %1190, %1186, %cst_443 {dimension_numbers = #tpu.dot_dimension_numbers<[1], [0], [0], [1], [0, 0, 1, 1], [], []>} : vector<2x32xbf16>, vector<32x128xbf16>, vector<2x128xf32> -> vector<2x128xf32>
    %1192 = arith.addf %1189, %1191 : vector<2x128xf32>
    %1193 = vector.extract_strided_slice %1192 {offsets = [0, 0], sizes = [2, 32], strides = [1, 1]} : vector<2x128xf32> to vector<2x32xf32>
    %cst_444 = arith.constant 5.000000e-01 : f32
    %1194 = vector.broadcast %cst_444 : f32 to vector<2x32xf32>
    %1195 = arith.mulf %1194, %1193 : vector<2x32xf32>
    %1196 = math.tanh %1195 : vector<2x32xf32>
    %cst_445 = arith.constant 5.000000e-01 : f32
    %1197 = vector.broadcast %cst_445 : f32 to vector<2x32xf32>
    %1198 = arith.mulf %1197, %1196 : vector<2x32xf32>
    %cst_446 = arith.constant 5.000000e-01 : f32
    %1199 = vector.broadcast %cst_446 : f32 to vector<2x32xf32>
    %1200 = arith.addf %1198, %1199 : vector<2x32xf32>
    %1201 = vector.extract_strided_slice %1192 {offsets = [0, 32], sizes = [2, 32], strides = [1, 1]} : vector<2x128xf32> to vector<2x32xf32>
    %cst_447 = arith.constant 5.000000e-01 : f32
    %1202 = vector.broadcast %cst_447 : f32 to vector<2x32xf32>
    %1203 = arith.mulf %1202, %1201 : vector<2x32xf32>
    %1204 = math.tanh %1203 : vector<2x32xf32>
    %cst_448 = arith.constant 5.000000e-01 : f32
    %1205 = vector.broadcast %cst_448 : f32 to vector<2x32xf32>
    %1206 = arith.mulf %1205, %1204 : vector<2x32xf32>
    %cst_449 = arith.constant 5.000000e-01 : f32
    %1207 = vector.broadcast %cst_449 : f32 to vector<2x32xf32>
    %1208 = arith.addf %1206, %1207 : vector<2x32xf32>
    %1209 = vector.extract_strided_slice %1192 {offsets = [0, 64], sizes = [2, 32], strides = [1, 1]} : vector<2x128xf32> to vector<2x32xf32>
    %1210 = math.tanh %1209 : vector<2x32xf32>
    %1211 = vector.extract_strided_slice %1192 {offsets = [0, 96], sizes = [2, 32], strides = [1, 1]} : vector<2x128xf32> to vector<2x32xf32>
    %cst_450 = arith.constant 5.000000e-01 : f32
    %1212 = vector.broadcast %cst_450 : f32 to vector<2x32xf32>
    %1213 = arith.mulf %1212, %1211 : vector<2x32xf32>
    %1214 = math.tanh %1213 : vector<2x32xf32>
    %cst_451 = arith.constant 5.000000e-01 : f32
    %1215 = vector.broadcast %cst_451 : f32 to vector<2x32xf32>
    %1216 = arith.mulf %1215, %1214 : vector<2x32xf32>
    %cst_452 = arith.constant 5.000000e-01 : f32
    %1217 = vector.broadcast %cst_452 : f32 to vector<2x32xf32>
    %1218 = arith.addf %1216, %1217 : vector<2x32xf32>
    %1219 = arith.mulf %1208, %1183 : vector<2x32xf32>
    %1220 = arith.mulf %1200, %1210 : vector<2x32xf32>
    %1221 = arith.addf %1219, %1220 : vector<2x32xf32>
    %1222 = math.tanh %1221 : vector<2x32xf32>
    %1223 = arith.mulf %1218, %1222 : vector<2x32xf32>
    %c12_i32_453 = arith.constant 12 : i32
    %c0_454 = arith.constant 0 : index
    %c0_455 = arith.constant 0 : index
    %1224 = vector.load %arg6[%c0_454, %c0_455] : memref<32x128xbf16, #tpu.memory_space<vmem>>, vector<32x128xbf16>
    %1225 = arith.index_cast %c12_i32_453 : i32 to index
    %c0_456 = arith.constant 0 : index
    %c0_457 = arith.constant 0 : index
    %1226 = vector.load %arg9[%1225, %c0_456, %c0_457] : memref<16x2x128xf32, #tpu.memory_space<vmem>>, vector<1x2x128xf32>
    %1227 = vector.shape_cast %1226 : vector<1x2x128xf32> to vector<2x128xf32>
    %1228 = arith.truncf %1223 : vector<2x32xf32> to vector<2x32xbf16>
    %cst_458 = arith.constant dense<0.000000e+00> : vector<2x128xf32>
    %1229 = tpu.matmul %1228, %1224, %cst_458 {dimension_numbers = #tpu.dot_dimension_numbers<[1], [0], [0], [1], [0, 0, 1, 1], [], []>} : vector<2x32xbf16>, vector<32x128xbf16>, vector<2x128xf32> -> vector<2x128xf32>
    %1230 = arith.addf %1227, %1229 : vector<2x128xf32>
    %1231 = vector.extract_strided_slice %1230 {offsets = [0, 0], sizes = [2, 32], strides = [1, 1]} : vector<2x128xf32> to vector<2x32xf32>
    %cst_459 = arith.constant 5.000000e-01 : f32
    %1232 = vector.broadcast %cst_459 : f32 to vector<2x32xf32>
    %1233 = arith.mulf %1232, %1231 : vector<2x32xf32>
    %1234 = math.tanh %1233 : vector<2x32xf32>
    %cst_460 = arith.constant 5.000000e-01 : f32
    %1235 = vector.broadcast %cst_460 : f32 to vector<2x32xf32>
    %1236 = arith.mulf %1235, %1234 : vector<2x32xf32>
    %cst_461 = arith.constant 5.000000e-01 : f32
    %1237 = vector.broadcast %cst_461 : f32 to vector<2x32xf32>
    %1238 = arith.addf %1236, %1237 : vector<2x32xf32>
    %1239 = vector.extract_strided_slice %1230 {offsets = [0, 32], sizes = [2, 32], strides = [1, 1]} : vector<2x128xf32> to vector<2x32xf32>
    %cst_462 = arith.constant 5.000000e-01 : f32
    %1240 = vector.broadcast %cst_462 : f32 to vector<2x32xf32>
    %1241 = arith.mulf %1240, %1239 : vector<2x32xf32>
    %1242 = math.tanh %1241 : vector<2x32xf32>
    %cst_463 = arith.constant 5.000000e-01 : f32
    %1243 = vector.broadcast %cst_463 : f32 to vector<2x32xf32>
    %1244 = arith.mulf %1243, %1242 : vector<2x32xf32>
    %cst_464 = arith.constant 5.000000e-01 : f32
    %1245 = vector.broadcast %cst_464 : f32 to vector<2x32xf32>
    %1246 = arith.addf %1244, %1245 : vector<2x32xf32>
    %1247 = vector.extract_strided_slice %1230 {offsets = [0, 64], sizes = [2, 32], strides = [1, 1]} : vector<2x128xf32> to vector<2x32xf32>
    %1248 = math.tanh %1247 : vector<2x32xf32>
    %1249 = vector.extract_strided_slice %1230 {offsets = [0, 96], sizes = [2, 32], strides = [1, 1]} : vector<2x128xf32> to vector<2x32xf32>
    %cst_465 = arith.constant 5.000000e-01 : f32
    %1250 = vector.broadcast %cst_465 : f32 to vector<2x32xf32>
    %1251 = arith.mulf %1250, %1249 : vector<2x32xf32>
    %1252 = math.tanh %1251 : vector<2x32xf32>
    %cst_466 = arith.constant 5.000000e-01 : f32
    %1253 = vector.broadcast %cst_466 : f32 to vector<2x32xf32>
    %1254 = arith.mulf %1253, %1252 : vector<2x32xf32>
    %cst_467 = arith.constant 5.000000e-01 : f32
    %1255 = vector.broadcast %cst_467 : f32 to vector<2x32xf32>
    %1256 = arith.addf %1254, %1255 : vector<2x32xf32>
    %1257 = arith.mulf %1246, %1221 : vector<2x32xf32>
    %1258 = arith.mulf %1238, %1248 : vector<2x32xf32>
    %1259 = arith.addf %1257, %1258 : vector<2x32xf32>
    %1260 = math.tanh %1259 : vector<2x32xf32>
    %1261 = arith.mulf %1256, %1260 : vector<2x32xf32>
    %c13_i32_468 = arith.constant 13 : i32
    %c0_469 = arith.constant 0 : index
    %c0_470 = arith.constant 0 : index
    %1262 = vector.load %arg6[%c0_469, %c0_470] : memref<32x128xbf16, #tpu.memory_space<vmem>>, vector<32x128xbf16>
    %1263 = arith.index_cast %c13_i32_468 : i32 to index
    %c0_471 = arith.constant 0 : index
    %c0_472 = arith.constant 0 : index
    %1264 = vector.load %arg9[%1263, %c0_471, %c0_472] : memref<16x2x128xf32, #tpu.memory_space<vmem>>, vector<1x2x128xf32>
    %1265 = vector.shape_cast %1264 : vector<1x2x128xf32> to vector<2x128xf32>
    %1266 = arith.truncf %1261 : vector<2x32xf32> to vector<2x32xbf16>
    %cst_473 = arith.constant dense<0.000000e+00> : vector<2x128xf32>
    %1267 = tpu.matmul %1266, %1262, %cst_473 {dimension_numbers = #tpu.dot_dimension_numbers<[1], [0], [0], [1], [0, 0, 1, 1], [], []>} : vector<2x32xbf16>, vector<32x128xbf16>, vector<2x128xf32> -> vector<2x128xf32>
    %1268 = arith.addf %1265, %1267 : vector<2x128xf32>
    %1269 = vector.extract_strided_slice %1268 {offsets = [0, 0], sizes = [2, 32], strides = [1, 1]} : vector<2x128xf32> to vector<2x32xf32>
    %cst_474 = arith.constant 5.000000e-01 : f32
    %1270 = vector.broadcast %cst_474 : f32 to vector<2x32xf32>
    %1271 = arith.mulf %1270, %1269 : vector<2x32xf32>
    %1272 = math.tanh %1271 : vector<2x32xf32>
    %cst_475 = arith.constant 5.000000e-01 : f32
    %1273 = vector.broadcast %cst_475 : f32 to vector<2x32xf32>
    %1274 = arith.mulf %1273, %1272 : vector<2x32xf32>
    %cst_476 = arith.constant 5.000000e-01 : f32
    %1275 = vector.broadcast %cst_476 : f32 to vector<2x32xf32>
    %1276 = arith.addf %1274, %1275 : vector<2x32xf32>
    %1277 = vector.extract_strided_slice %1268 {offsets = [0, 32], sizes = [2, 32], strides = [1, 1]} : vector<2x128xf32> to vector<2x32xf32>
    %cst_477 = arith.constant 5.000000e-01 : f32
    %1278 = vector.broadcast %cst_477 : f32 to vector<2x32xf32>
    %1279 = arith.mulf %1278, %1277 : vector<2x32xf32>
    %1280 = math.tanh %1279 : vector<2x32xf32>
    %cst_478 = arith.constant 5.000000e-01 : f32
    %1281 = vector.broadcast %cst_478 : f32 to vector<2x32xf32>
    %1282 = arith.mulf %1281, %1280 : vector<2x32xf32>
    %cst_479 = arith.constant 5.000000e-01 : f32
    %1283 = vector.broadcast %cst_479 : f32 to vector<2x32xf32>
    %1284 = arith.addf %1282, %1283 : vector<2x32xf32>
    %1285 = vector.extract_strided_slice %1268 {offsets = [0, 64], sizes = [2, 32], strides = [1, 1]} : vector<2x128xf32> to vector<2x32xf32>
    %1286 = math.tanh %1285 : vector<2x32xf32>
    %1287 = vector.extract_strided_slice %1268 {offsets = [0, 96], sizes = [2, 32], strides = [1, 1]} : vector<2x128xf32> to vector<2x32xf32>
    %cst_480 = arith.constant 5.000000e-01 : f32
    %1288 = vector.broadcast %cst_480 : f32 to vector<2x32xf32>
    %1289 = arith.mulf %1288, %1287 : vector<2x32xf32>
    %1290 = math.tanh %1289 : vector<2x32xf32>
    %cst_481 = arith.constant 5.000000e-01 : f32
    %1291 = vector.broadcast %cst_481 : f32 to vector<2x32xf32>
    %1292 = arith.mulf %1291, %1290 : vector<2x32xf32>
    %cst_482 = arith.constant 5.000000e-01 : f32
    %1293 = vector.broadcast %cst_482 : f32 to vector<2x32xf32>
    %1294 = arith.addf %1292, %1293 : vector<2x32xf32>
    %1295 = arith.mulf %1284, %1259 : vector<2x32xf32>
    %1296 = arith.mulf %1276, %1286 : vector<2x32xf32>
    %1297 = arith.addf %1295, %1296 : vector<2x32xf32>
    %1298 = math.tanh %1297 : vector<2x32xf32>
    %1299 = arith.mulf %1294, %1298 : vector<2x32xf32>
    %c14_i32_483 = arith.constant 14 : i32
    %c0_484 = arith.constant 0 : index
    %c0_485 = arith.constant 0 : index
    %1300 = vector.load %arg6[%c0_484, %c0_485] : memref<32x128xbf16, #tpu.memory_space<vmem>>, vector<32x128xbf16>
    %1301 = arith.index_cast %c14_i32_483 : i32 to index
    %c0_486 = arith.constant 0 : index
    %c0_487 = arith.constant 0 : index
    %1302 = vector.load %arg9[%1301, %c0_486, %c0_487] : memref<16x2x128xf32, #tpu.memory_space<vmem>>, vector<1x2x128xf32>
    %1303 = vector.shape_cast %1302 : vector<1x2x128xf32> to vector<2x128xf32>
    %1304 = arith.truncf %1299 : vector<2x32xf32> to vector<2x32xbf16>
    %cst_488 = arith.constant dense<0.000000e+00> : vector<2x128xf32>
    %1305 = tpu.matmul %1304, %1300, %cst_488 {dimension_numbers = #tpu.dot_dimension_numbers<[1], [0], [0], [1], [0, 0, 1, 1], [], []>} : vector<2x32xbf16>, vector<32x128xbf16>, vector<2x128xf32> -> vector<2x128xf32>
    %1306 = arith.addf %1303, %1305 : vector<2x128xf32>
    %1307 = vector.extract_strided_slice %1306 {offsets = [0, 0], sizes = [2, 32], strides = [1, 1]} : vector<2x128xf32> to vector<2x32xf32>
    %cst_489 = arith.constant 5.000000e-01 : f32
    %1308 = vector.broadcast %cst_489 : f32 to vector<2x32xf32>
    %1309 = arith.mulf %1308, %1307 : vector<2x32xf32>
    %1310 = math.tanh %1309 : vector<2x32xf32>
    %cst_490 = arith.constant 5.000000e-01 : f32
    %1311 = vector.broadcast %cst_490 : f32 to vector<2x32xf32>
    %1312 = arith.mulf %1311, %1310 : vector<2x32xf32>
    %cst_491 = arith.constant 5.000000e-01 : f32
    %1313 = vector.broadcast %cst_491 : f32 to vector<2x32xf32>
    %1314 = arith.addf %1312, %1313 : vector<2x32xf32>
    %1315 = vector.extract_strided_slice %1306 {offsets = [0, 32], sizes = [2, 32], strides = [1, 1]} : vector<2x128xf32> to vector<2x32xf32>
    %cst_492 = arith.constant 5.000000e-01 : f32
    %1316 = vector.broadcast %cst_492 : f32 to vector<2x32xf32>
    %1317 = arith.mulf %1316, %1315 : vector<2x32xf32>
    %1318 = math.tanh %1317 : vector<2x32xf32>
    %cst_493 = arith.constant 5.000000e-01 : f32
    %1319 = vector.broadcast %cst_493 : f32 to vector<2x32xf32>
    %1320 = arith.mulf %1319, %1318 : vector<2x32xf32>
    %cst_494 = arith.constant 5.000000e-01 : f32
    %1321 = vector.broadcast %cst_494 : f32 to vector<2x32xf32>
    %1322 = arith.addf %1320, %1321 : vector<2x32xf32>
    %1323 = vector.extract_strided_slice %1306 {offsets = [0, 64], sizes = [2, 32], strides = [1, 1]} : vector<2x128xf32> to vector<2x32xf32>
    %1324 = math.tanh %1323 : vector<2x32xf32>
    %1325 = vector.extract_strided_slice %1306 {offsets = [0, 96], sizes = [2, 32], strides = [1, 1]} : vector<2x128xf32> to vector<2x32xf32>
    %cst_495 = arith.constant 5.000000e-01 : f32
    %1326 = vector.broadcast %cst_495 : f32 to vector<2x32xf32>
    %1327 = arith.mulf %1326, %1325 : vector<2x32xf32>
    %1328 = math.tanh %1327 : vector<2x32xf32>
    %cst_496 = arith.constant 5.000000e-01 : f32
    %1329 = vector.broadcast %cst_496 : f32 to vector<2x32xf32>
    %1330 = arith.mulf %1329, %1328 : vector<2x32xf32>
    %cst_497 = arith.constant 5.000000e-01 : f32
    %1331 = vector.broadcast %cst_497 : f32 to vector<2x32xf32>
    %1332 = arith.addf %1330, %1331 : vector<2x32xf32>
    %1333 = arith.mulf %1322, %1297 : vector<2x32xf32>
    %1334 = arith.mulf %1314, %1324 : vector<2x32xf32>
    %1335 = arith.addf %1333, %1334 : vector<2x32xf32>
    %1336 = math.tanh %1335 : vector<2x32xf32>
    %1337 = arith.mulf %1332, %1336 : vector<2x32xf32>
    %c15_i32_498 = arith.constant 15 : i32
    %c0_499 = arith.constant 0 : index
    %c0_500 = arith.constant 0 : index
    %1338 = vector.load %arg6[%c0_499, %c0_500] : memref<32x128xbf16, #tpu.memory_space<vmem>>, vector<32x128xbf16>
    %1339 = arith.index_cast %c15_i32_498 : i32 to index
    %c0_501 = arith.constant 0 : index
    %c0_502 = arith.constant 0 : index
    %1340 = vector.load %arg9[%1339, %c0_501, %c0_502] : memref<16x2x128xf32, #tpu.memory_space<vmem>>, vector<1x2x128xf32>
    %1341 = vector.shape_cast %1340 : vector<1x2x128xf32> to vector<2x128xf32>
    %1342 = arith.truncf %1337 : vector<2x32xf32> to vector<2x32xbf16>
    %cst_503 = arith.constant dense<0.000000e+00> : vector<2x128xf32>
    %1343 = tpu.matmul %1342, %1338, %cst_503 {dimension_numbers = #tpu.dot_dimension_numbers<[1], [0], [0], [1], [0, 0, 1, 1], [], []>} : vector<2x32xbf16>, vector<32x128xbf16>, vector<2x128xf32> -> vector<2x128xf32>
    %1344 = arith.addf %1341, %1343 : vector<2x128xf32>
    %1345 = vector.extract_strided_slice %1344 {offsets = [0, 0], sizes = [2, 32], strides = [1, 1]} : vector<2x128xf32> to vector<2x32xf32>
    %cst_504 = arith.constant 5.000000e-01 : f32
    %1346 = vector.broadcast %cst_504 : f32 to vector<2x32xf32>
    %1347 = arith.mulf %1346, %1345 : vector<2x32xf32>
    %1348 = math.tanh %1347 : vector<2x32xf32>
    %cst_505 = arith.constant 5.000000e-01 : f32
    %1349 = vector.broadcast %cst_505 : f32 to vector<2x32xf32>
    %1350 = arith.mulf %1349, %1348 : vector<2x32xf32>
    %cst_506 = arith.constant 5.000000e-01 : f32
    %1351 = vector.broadcast %cst_506 : f32 to vector<2x32xf32>
    %1352 = arith.addf %1350, %1351 : vector<2x32xf32>
    %1353 = vector.extract_strided_slice %1344 {offsets = [0, 32], sizes = [2, 32], strides = [1, 1]} : vector<2x128xf32> to vector<2x32xf32>
    %cst_507 = arith.constant 5.000000e-01 : f32
    %1354 = vector.broadcast %cst_507 : f32 to vector<2x32xf32>
    %1355 = arith.mulf %1354, %1353 : vector<2x32xf32>
    %1356 = math.tanh %1355 : vector<2x32xf32>
    %cst_508 = arith.constant 5.000000e-01 : f32
    %1357 = vector.broadcast %cst_508 : f32 to vector<2x32xf32>
    %1358 = arith.mulf %1357, %1356 : vector<2x32xf32>
    %cst_509 = arith.constant 5.000000e-01 : f32
    %1359 = vector.broadcast %cst_509 : f32 to vector<2x32xf32>
    %1360 = arith.addf %1358, %1359 : vector<2x32xf32>
    %1361 = vector.extract_strided_slice %1344 {offsets = [0, 64], sizes = [2, 32], strides = [1, 1]} : vector<2x128xf32> to vector<2x32xf32>
    %1362 = math.tanh %1361 : vector<2x32xf32>
    %1363 = vector.extract_strided_slice %1344 {offsets = [0, 96], sizes = [2, 32], strides = [1, 1]} : vector<2x128xf32> to vector<2x32xf32>
    %cst_510 = arith.constant 5.000000e-01 : f32
    %1364 = vector.broadcast %cst_510 : f32 to vector<2x32xf32>
    %1365 = arith.mulf %1364, %1363 : vector<2x32xf32>
    %1366 = math.tanh %1365 : vector<2x32xf32>
    %cst_511 = arith.constant 5.000000e-01 : f32
    %1367 = vector.broadcast %cst_511 : f32 to vector<2x32xf32>
    %1368 = arith.mulf %1367, %1366 : vector<2x32xf32>
    %cst_512 = arith.constant 5.000000e-01 : f32
    %1369 = vector.broadcast %cst_512 : f32 to vector<2x32xf32>
    %1370 = arith.addf %1368, %1369 : vector<2x32xf32>
    %1371 = arith.mulf %1360, %1335 : vector<2x32xf32>
    %1372 = arith.mulf %1352, %1362 : vector<2x32xf32>
    %1373 = arith.addf %1371, %1372 : vector<2x32xf32>
    %1374 = math.tanh %1373 : vector<2x32xf32>
    %1375 = arith.mulf %1370, %1374 : vector<2x32xf32>
    %c16_i32_513 = arith.constant 16 : i32
    %c0_514 = arith.constant 0 : index
    %c0_515 = arith.constant 0 : index
    %1376 = vector.load %arg8[%c0_514, %c0_515] : memref<2x32xf32, #tpu.memory_space<vmem>>, vector<2x32xf32>
    tpu.vector_store %arg8[%c0_514, %c0_515], %1375 {strides = array<i32>} : memref<2x32xf32, #tpu.memory_space<vmem>>, vector<2x32xf32>,
    return
  }
  func.func @transform_0(%arg0: i32) -> (i32, i32, i32) {
    %c0_i32 = arith.constant 0 : i32
    %c0_i32_0 = arith.constant 0 : i32
    %c0_i32_1 = arith.constant 0 : i32
    return %c0_i32, %arg0, %c0_i32_0 : i32, i32, i32
  }
  func.func @transform_1(%arg0: i32) -> (i32, i32) {
    %c0_i32 = arith.constant 0 : i32
    %c0_i32_0 = arith.constant 0 : i32
    %c0_i32_1 = arith.constant 0 : i32
    return %c0_i32, %c0_i32_0 : i32, i32
  }
  func.func @transform_2(%arg0: i32) -> (i32, i32) {
    %c0_i32 = arith.constant 0 : i32
    %c0_i32_0 = arith.constant 0 : i32
    %c0_i32_1 = arith.constant 0 : i32
    return %c0_i32, %c0_i32_0 : i32, i32
  }
  func.func @transform_3(%arg0: i32) -> (i32, i32) {
    %c0_i32 = arith.constant 0 : i32
    %c0_i32_0 = arith.constant 0 : i32
    %c0_i32_1 = arith.constant 0 : i32
    return %c0_i32, %c0_i32_0 : i32, i32
  }
  func.func @transform_4(%arg0: i32) -> (i32, i32) {
    %c0_i32 = arith.constant 0 : i32
    %c0_i32_0 = arith.constant 0 : i32
    %c0_i32_1 = arith.constant 0 : i32
    return %c0_i32, %c0_i32_0 : i32, i32
  }
  func.func @transform_5(%arg0: i32) -> (i32, i32) {
    %c0_i32 = arith.constant 0 : i32
    %c0_i32_0 = arith.constant 0 : i32
    %c0_i32_1 = arith.constant 0 : i32
    return %c0_i32, %c0_i32_0 : i32, i32
  }
  func.func @transform_6(%arg0: i32) -> (i32, i32) {
    %c0_i32 = arith.constant 0 : i32
    %c0_i32_0 = arith.constant 0 : i32
    %c0_i32_1 = arith.constant 0 : i32
    return %c0_i32, %c0_i32_0 : i32, i32
  }
  func.func @transform_7(%arg0: i32) -> (i32, i32) {
    %c0_i32 = arith.constant 0 : i32
    %c0_i32_0 = arith.constant 0 : i32
    return %arg0, %c0_i32 : i32, i32
  }
}

</mosaic_0001>

<llo_original>
// kernel: _lambda_.1
$region0: #{_lambda_.1}
  #allocation0 [shape = 'u32[]', space=smem, size = 0x4, offset = 0x4, fixed_abs, tag = 'smem constant byte address 0x4 - core index']
  #allocation1 [shape = 'u32[144,128]{1,0:T(1,128)}', space=vmem, size = 0x12000, scoped, tag = 'internal scratch']
  #allocation2 [shape = 'f32[16,2,128]{2,1,0:T(2,128)}', space=vmem, size = 0x4000, scoped, tag = 'scratch operand']
  #allocation3 [shape = 'f32[16,2,32]{2,1,0:T(2,128)}', space=vmem, size = 0x4000, scoped, tag = 'scratch operand']
  %s0 = inlined_call_operand.vmem [shape: f32[16,2,1], index: 0, kind: input, shape index: {}]
  %s1 = inlined_call_operand.vmem [shape: f32[1,128], index: 1, kind: input, shape index: {}]
  %s2 = inlined_call_operand.vmem [shape: bf16[32,128], index: 2, kind: input, shape index: {}]
  %s3 = inlined_call_operand.vmem [shape: f32[1,128], index: 3, kind: input, shape index: {}]
  %s4 = inlined_call_operand.vmem [shape: bf16[32,128], index: 4, kind: input, shape index: {}]
  %s5 = inlined_call_operand.hbm [shape: bf16[32,128], index: 5, kind: input, shape index: {}]
  %s6 = inlined_call_operand.vmem [shape: f32[1,128], index: 6, kind: input, shape index: {}]
  %s7 = inlined_call_operand.hbm [shape: f32[2,32], index: 7, kind: output, shape index: {}]
  %s8 = sld [smem:[#allocation0]]
  $region42: #{_lambda_.1} parent=0
    _
  %s10 = ssub.s32 1, %s8
  %s11 = scalar_select 0, %s10, %s8
  $region1: #{_lambda_.1} parent=0
    #allocation4 [shape = 'u8[8192]{0}', space=vmem, size = 0x2000, scoped, tag = 'input window, operand 5, single buffered']
    #allocation5 [shape = 's32[1]{0}', space=sflag, size = 0x4, scoped, tag = 'scoped memory for _lambda_.1']
    #allocation6 [shape = 's32[1]{0}', space=sflag, size = 0x4, scoped, tag = 'scoped memory for _lambda_.1']
    #allocation7 [shape = 'u8[1024]{0}', space=vmem, size = 0x400, scoped, tag = 'output window, operand 0, single buffered']
    %12 = vsyncpa [#allocation5], 0
    %13 = vsyncpa [#allocation6], 0
    // Predicated region
    $region2: #{_lambda_.1} parent=1 // pred_check
      _
    $region3: #{_lambda_.1} parent=1 // pred_check_branch
      %15 = sbr.rel (0) target = $region5
    $region4: #{_lambda_.1} parent=1 // pred_region
      _
    $region5: #{_lambda_.1} parent=1 // pred_fallthru
      _
    // Predicated region
    $region6: #{_lambda_.1} parent=1 // pred_check
      _
    $region7: #{_lambda_.1} parent=1 // pred_check_branch
      %17 = sbr.rel (0) target = $region9
    $region8: #{_lambda_.1} parent=1 // pred_region
      _
    $region9: #{_lambda_.1} parent=1 // pred_fallthru
      _
    // Predicated region
    $region10: #{_lambda_.1} parent=1 // pred_check
      _
    $region11: #{_lambda_.1} parent=1 // pred_check_branch
      %19 = sbr.rel (0) target = $region13
    $region12: #{_lambda_.1} parent=1 // pred_region
      _
    $region13: #{_lambda_.1} parent=1 // pred_fallthru
      _
    // Predicated region
    $region14: #{_lambda_.1} parent=1 // pred_check
      _
    $region15: #{_lambda_.1} parent=1 // pred_check_branch
      %21 = sbr.rel (0) target = $region17
    $region16: #{_lambda_.1} parent=1 // pred_region
      _
    $region17: #{_lambda_.1} parent=1 // pred_fallthru
      _
    // Predicated region
    $region18: #{_lambda_.1} parent=1 // pred_check
      _
    $region19: #{_lambda_.1} parent=1 // pred_check_branch
      %23 = sbr.rel (0) target = $region21
    $region20: #{_lambda_.1} parent=1 // pred_region
      _
    $region21: #{_lambda_.1} parent=1 // pred_fallthru
      _
    // Predicated region
    $region22: #{_lambda_.1} parent=1 // pred_check
      _
    $region23: #{_lambda_.1} parent=1 // pred_check_branch
      %25 = sbr.rel (0) target = $region25
    $region24: #{_lambda_.1} parent=1 // pred_region
      %s27 = ssub.s32 256, 256
      %28 = vsyncadd [#allocation5], %s27
      %s29 = sshll.u32 [#allocation4], 4
      %s30 = int_to_ptr.vmem [resolvable:$true] %s29
      %35 = dma.hbm_to_vmem [thread:$0]  %s5, 256, %s30, [#allocation5], 64, 64, 4
    $region25: #{_lambda_.1} parent=1 // pred_fallthru
      _
    // Predicated region
    $region26: #{_lambda_.1} parent=1 // pred_check
      _
    $region27: #{_lambda_.1} parent=1 // pred_check_branch
      %37 = sbr.rel (0) target = $region29
    $region28: #{_lambda_.1} parent=1 // pred_region
      _
    $region29: #{_lambda_.1} parent=1 // pred_fallthru
      _
    // Predicated region
    $region30: #{_lambda_.1} parent=1 // pred_check
      _
    $region31: #{_lambda_.1} parent=1 // pred_check_branch
      %39 = sbr.rel (0) target = $region33
    $region32: #{_lambda_.1} parent=1 // pred_region
      %40 = dma.done [#allocation5], 256
    $region33: #{_lambda_.1} parent=1 // pred_fallthru
      _
    %v42 = vld [vmem:[%s1] sm:$0x1]
    %v43 = vld [vmem:[%s3] sm:$0x1]
    %v44 = vld [vmem:[%s2] sm:$0xf]
    %v45 = vld [vmem:[%s2 + $0x4] sm:$0xf]
    %v46 = vld [vmem:[%s2 + $0x8] sm:$0xf]
    %v47 = vld [vmem:[%s2 + $0xc] sm:$0xf]
    %v48 = vld [vmem:[%s0] sm:$0x3]
    %50 = vset.pattern.permute.xlu0 0
    %51 = vperm.xlu0 %50, %v48
    %v52 = vpop.permute.xlu0 %51
    %v55 = vlaneseq
    %v56 = vshrl.u32 %v55, 7
    %v57 = vsub.s32 0, %v56
    %v58 = vrot.slane %v42, %v57
    %v60 = vmul.f32 %v52, %v58
    %v62 = vlaneseq
    %v63 = vshrl.u32 %v62, 7
    %v64 = vsub.s32 0, %v63
    %v65 = vrot.slane %v43, %v64
    %v67 = vadd.f32 %v60, %v65
    %v72 = vunpack.c.l.b16 %v44
    %v73 = vunpack.c.l.b16 %v45
    %v74 = vunpack.c.l.b16 %v46
    %v75 = vunpack.c.l.b16 %v47
    %v76 = vpack.c.b16 %v73, %v72
    %v77 = vpack.c.b16 %v75, %v74
    %vm80 = vcmask 261120
    %v82 = vsel %vm80, 0, 0
    %84 = vmatprep.subr.bf16.mxu0 0
    %85 = vmatpush1.bf16.msra.mxu0 0
    %86 = vmatprep.subr.bf16.mxu0 0
    %87 = vmatpush1.bf16.msra.mxu0 0
    %88 = vmatprep.subr.bf16.mxu0 0
    %89 = vmatpush1.bf16.msra.mxu0 0
    %90 = vmatprep.subr.bf16.mxu0 0
    %91 = vmatpush1.bf16.msra.mxu0 0
    %92 = vmatprep.subr.bf16.mxu0 0
    %93 = vmatpush1.bf16.msra.mxu0 0
    %94 = vmatprep.subr.bf16.mxu0 0
    %95 = vmatpush1.bf16.msra.mxu0 0
    %96 = vmatprep.subr.bf16.mxu0 0
    %97 = vmatpush1.bf16.msra.mxu0 %v77
    %98 = vmatprep.subr.bf16.mxu0 0
    %99 = vmatpush1.bf16.msra.mxu0 %v76
    %100 = vmatprep.subr.bf16.mxu0 0
    %101 = vmatpush2.bf16.msra.mxu0 0
    %102 = vmatprep.subr.bf16.mxu0 0
    %103 = vmatpush2.bf16.msra.mxu0 0
    %104 = vmatprep.subr.bf16.mxu0 0
    %105 = vmatpush2.bf16.msra.mxu0 0
    %106 = vmatprep.subr.bf16.mxu0 0
    %107 = vmatpush2.bf16.msra.mxu0 0
    %108 = vmatprep.subr.bf16.mxu0 0
    %109 = vmatpush2.bf16.msra.mxu0 0
    %110 = vmatprep.subr.bf16.mxu0 0
    %111 = vmatpush2.bf16.msra.mxu0 0
    %112 = vmatprep.subr.bf16.mxu0 0
    %113 = vmatpush2.bf16.msra.mxu0 0
    %114 = vmatprep.subr.bf16.mxu0 0
    %115 = vmatpush2.bf16.msra.mxu0 0
    %116 = vmatprep.mubr.bf16.mxu0 0
    %117 = vmatmul.mubr.bf16.gmra.mxu0 %v82
    %v118 = vpop.f32.mrf.mxu0
    %v119 = vadd.f32 0.0, %v118
    %v120 = vpop.f32.mrf.mxu0
    %v121 = vpop.f32.mrf.mxu0
    %v122 = vpop.f32.mrf.mxu0
    %123 = vdwg.mxu0
    %v124 = vadd.f32 %v67, %v119
    %v125 = vmul.f32 %v124, 0.5
    %v126 = vtanh.pop %v125
    %v127 = vmul.f32 %v126, 0.5
    %v128 = vadd.f32 %v127, 0.5
    %v129 = vtanh.pop %v124
    %v130 = vmul.f32 %v128, 0.0
    %132 = vrot.lane.b32.xlu0 %v129, 64
    %v133 = vpop.permute.xlu0 %132
    %v135 = vmul.f32 %v128, %v133
    %137 = vrot.lane.b32.xlu0 %v135, 32
    %v138 = vpop.permute.xlu0 %137
    %v140 = vadd.f32 %v130, %v138
    %v141 = vtanh.pop %v140
    %143 = vrot.lane.b32.xlu0 %v141, 64
    %v144 = vpop.permute.xlu0 %143
    %v146 = vmul.f32 %v128, %v144
    %148 = vrot.lane.b32.xlu0 %v146, 32
    %v149 = vpop.permute.xlu0 %148
    %vm151 = vcmask 254976
    %152 = vst.msk [vmem:[#allocation3] sm:$0x3] %vm151, %v149
    %v153 = vld [vmem:[%s2] sm:$0xf]
    %v154 = vld [vmem:[%s2 + $0x4] sm:$0xf]
    %v155 = vld [vmem:[%s2 + $0x8] sm:$0xf]
    %v156 = vld [vmem:[%s2 + $0xc] sm:$0xf]
    %s157 = scalar_lea.vmem %s0, 2
    %v158 = vld [vmem:[%s157] sm:$0x3]
    %160 = vset.pattern.permute.xlu0 0
    %161 = vperm.xlu0 %160, %v158
    %v162 = vpop.permute.xlu0 %161
    %v164 = vmul.f32 %v162, %v58
    %v165 = vadd.f32 %v164, %v65
    %v166 = vpack.c.bf16 %v146, %v146
    %168 = vrot.lane.b32.xlu0 %v166, 32
    %v169 = vpop.permute.xlu0 %168
    %v174 = vunpack.c.l.b16 %v153
    %v175 = vunpack.c.l.b16 %v154
    %v176 = vunpack.c.l.b16 %v155
    %v177 = vunpack.c.l.b16 %v156
    %v178 = vpack.c.b16 %v175, %v174
    %v179 = vpack.c.b16 %v177, %v176
    %v183 = vsel %vm80, %v169, 0
    %185 = vmatprep.subr.bf16.mxu0 0
    %186 = vmatpush1.bf16.msra.mxu0 0
    %187 = vmatprep.subr.bf16.mxu0 0
    %188 = vmatpush1.bf16.msra.mxu0 0
    %189 = vmatprep.subr.bf16.mxu0 0
    %190 = vmatpush1.bf16.msra.mxu0 0
    %191 = vmatprep.subr.bf16.mxu0 0
    %192 = vmatpush1.bf16.msra.mxu0 0
    %193 = vmatprep.subr.bf16.mxu0 0
    %194 = vmatpush1.bf16.msra.mxu0 0
    %195 = vmatprep.subr.bf16.mxu0 0
    %196 = vmatpush1.bf16.msra.mxu0 0
    %197 = vmatprep.subr.bf16.mxu0 0
    %198 = vmatpush1.bf16.msra.mxu0 %v179
    %199 = vmatprep.subr.bf16.mxu0 0
    %200 = vmatpush1.bf16.msra.mxu0 %v178
    %201 = vmatprep.subr.bf16.mxu0 0
    %202 = vmatpush2.bf16.msra.mxu0 0
    %203 = vmatprep.subr.bf16.mxu0 0
    %204 = vmatpush2.bf16.msra.mxu0 0
    %205 = vmatprep.subr.bf16.mxu0 0
    %206 = vmatpush2.bf16.msra.mxu0 0
    %207 = vmatprep.subr.bf16.mxu0 0
    %208 = vmatpush2.bf16.msra.mxu0 0
    %209 = vmatprep.subr.bf16.mxu0 0
    %210 = vmatpush2.bf16.msra.mxu0 0
    %211 = vmatprep.subr.bf16.mxu0 0
    %212 = vmatpush2.bf16.msra.mxu0 0
    %213 = vmatprep.subr.bf16.mxu0 0
    %214 = vmatpush2.bf16.msra.mxu0 0
    %215 = vmatprep.subr.bf16.mxu0 0
    %216 = vmatpush2.bf16.msra.mxu0 0
    %217 = vmatprep.mubr.bf16.mxu0 0
    %218 = vmatmul.mubr.bf16.gmra.mxu0 %v183
    %v219 = vpop.f32.mrf.mxu0
    %v220 = vadd.f32 0.0, %v219
    %v221 = vpop.f32.mrf.mxu0
    %v222 = vpop.f32.mrf.mxu0
    %v223 = vpop.f32.mrf.mxu0
    %224 = vdwg.mxu0
    %v225 = vadd.f32 %v165, %v220
    %v226 = vmul.f32 %v225, 0.5
    %v227 = vtanh.pop %v226
    %v228 = vmul.f32 %v227, 0.5
    %v229 = vadd.f32 %v228, 0.5
    %v230 = vtanh.pop %v225
    %v231 = vmul.f32 %v229, %v140
    %233 = vrot.lane.b32.xlu0 %v230, 64
    %v234 = vpop.permute.xlu0 %233
    %v236 = vmul.f32 %v229, %v234
    %238 = vrot.lane.b32.xlu0 %v236, 32
    %v239 = vpop.permute.xlu0 %238
    %v241 = vadd.f32 %v231, %v239
    %v242 = vtanh.pop %v241
    %244 = vrot.lane.b32.xlu0 %v242, 64
    %v245 = vpop.permute.xlu0 %244
    %v247 = vmul.f32 %v229, %v245
    %249 = vrot.lane.b32.xlu0 %v247, 32
    %v250 = vpop.permute.xlu0 %249
    %s252 = scalar_lea.vmem [#allocation3], 2
    %253 = vst.msk [vmem:[%s252] sm:$0x3] %vm151, %v250
    %v254 = vld [vmem:[%s2] sm:$0xf]
    %v255 = vld [vmem:[%s2 + $0x4] sm:$0xf]
    %v256 = vld [vmem:[%s2 + $0x8] sm:$0xf]
    %v257 = vld [vmem:[%s2 + $0xc] sm:$0xf]
    %s258 = scalar_lea.vmem %s0, 4
    %v259 = vld [vmem:[%s258] sm:$0x3]
    %261 = vset.pattern.permute.xlu0 0
    %262 = vperm.xlu0 %261, %v259
    %v263 = vpop.permute.xlu0 %262
    %v265 = vmul.f32 %v263, %v58
    %v266 = vadd.f32 %v265, %v65
    %v267 = vpack.c.bf16 %v247, %v247
    %269 = vrot.lane.b32.xlu0 %v267, 32
    %v270 = vpop.permute.xlu0 %269
    %v275 = vunpack.c.l.b16 %v254
    %v276 = vunpack.c.l.b16 %v255
    %v277 = vunpack.c.l.b16 %v256
    %v278 = vunpack.c.l.b16 %v257
    %v279 = vpack.c.b16 %v276, %v275
    %v280 = vpack.c.b16 %v278, %v277
    %v284 = vsel %vm80, %v270, 0
    %286 = vmatprep.subr.bf16.mxu0 0
    %287 = vmatpush1.bf16.msra.mxu0 0
    %288 = vmatprep.subr.bf16.mxu0 0
    %289 = vmatpush1.bf16.msra.mxu0 0
    %290 = vmatprep.subr.bf16.mxu0 0
    %291 = vmatpush1.bf16.msra.mxu0 0
    %292 = vmatprep.subr.bf16.mxu0 0
    %293 = vmatpush1.bf16.msra.mxu0 0
    %294 = vmatprep.subr.bf16.mxu0 0
    %295 = vmatpush1.bf16.msra.mxu0 0
    %296 = vmatprep.subr.bf16.mxu0 0
    %297 = vmatpush1.bf16.msra.mxu0 0
    %298 = vmatprep.subr.bf16.mxu0 0
    %299 = vmatpush1.bf16.msra.mxu0 %v280
    %300 = vmatprep.subr.bf16.mxu0 0
    %301 = vmatpush1.bf16.msra.mxu0 %v279
    %302 = vmatprep.subr.bf16.mxu0 0
    %303 = vmatpush2.bf16.msra.mxu0 0
    %304 = vmatprep.subr.bf16.mxu0 0
    %305 = vmatpush2.bf16.msra.mxu0 0
    %306 = vmatprep.subr.bf16.mxu0 0
    %307 = vmatpush2.bf16.msra.mxu0 0
    %308 = vmatprep.subr.bf16.mxu0 0
    %309 = vmatpush2.bf16.msra.mxu0 0
    %310 = vmatprep.subr.bf16.mxu0 0
    %311 = vmatpush2.bf16.msra.mxu0 0
    %312 = vmatprep.subr.bf16.mxu0 0
    %313 = vmatpush2.bf16.msra.mxu0 0
    %314 = vmatprep.subr.bf16.mxu0 0
    %315 = vmatpush2.bf16.msra.mxu0 0
    %316 = vmatprep.subr.bf16.mxu0 0
    %317 = vmatpush2.bf16.msra.mxu0 0
    %318 = vmatprep.mubr.bf16.mxu0 0
    %319 = vmatmul.mubr.bf16.gmra.mxu0 %v284
    %v320 = vpop.f32.mrf.mxu0
    %v321 = vadd.f32 0.0, %v320
    %v322 = vpop.f32.mrf.mxu0
    %v323 = vpop.f32.mrf.mxu0
    %v324 = vpop.f32.mrf.mxu0
    %325 = vdwg.mxu0
    %v326 = vadd.f32 %v266, %v321
    %v327 = vmul.f32 %v326, 0.5
    %v328 = vtanh.pop %v327
    %v329 = vmul.f32 %v328, 0.5
    %v330 = vadd.f32 %v329, 0.5
    %v331 = vtanh.pop %v326
    %v332 = vmul.f32 %v330, %v241
    %334 = vrot.lane.b32.xlu0 %v331, 64
    %v335 = vpop.permute.xlu0 %334
    %v337 = vmul.f32 %v330, %v335
    %339 = vrot.lane.b32.xlu0 %v337, 32
    %v340 = vpop.permute.xlu0 %339
    %v342 = vadd.f32 %v332, %v340
    %v343 = vtanh.pop %v342
    %345 = vrot.lane.b32.xlu0 %v343, 64
    %v346 = vpop.permute.xlu0 %345
    %v348 = vmul.f32 %v330, %v346
    %350 = vrot.lane.b32.xlu0 %v348, 32
    %v351 = vpop.permute.xlu0 %350
    %s353 = scalar_lea.vmem [#allocation3], 4
    %354 = vst.msk [vmem:[%s353] sm:$0x3] %vm151, %v351
    %v355 = vld [vmem:[%s2] sm:$0xf]
    %v356 = vld [vmem:[%s2 + $0x4] sm:$0xf]
    %v357 = vld [vmem:[%s2 + $0x8] sm:$0xf]
    %v358 = vld [vmem:[%s2 + $0xc] sm:$0xf]
    %s359 = scalar_lea.vmem %s0, 6
    %v360 = vld [vmem:[%s359] sm:$0x3]
    %362 = vset.pattern.permute.xlu0 0
    %363 = vperm.xlu0 %362, %v360
    %v364 = vpop.permute.xlu0 %363
    %v366 = vmul.f32 %v364, %v58
    %v367 = vadd.f32 %v366, %v65
    %v368 = vpack.c.bf16 %v348, %v348
    %370 = vrot.lane.b32.xlu0 %v368, 32
    %v371 = vpop.permute.xlu0 %370
    %v376 = vunpack.c.l.b16 %v355
    %v377 = vunpack.c.l.b16 %v356
    %v378 = vunpack.c.l.b16 %v357
    %v379 = vunpack.c.l.b16 %v358
    %v380 = vpack.c.b16 %v377, %v376
    %v381 = vpack.c.b16 %v379, %v378
    %v385 = vsel %vm80, %v371, 0
    %387 = vmatprep.subr.bf16.mxu0 0
    %388 = vmatpush1.bf16.msra.mxu0 0
    %389 = vmatprep.subr.bf16.mxu0 0
    %390 = vmatpush1.bf16.msra.mxu0 0
    %391 = vmatprep.subr.bf16.mxu0 0
    %392 = vmatpush1.bf16.msra.mxu0 0
    %393 = vmatprep.subr.bf16.mxu0 0
    %394 = vmatpush1.bf16.msra.mxu0 0
    %395 = vmatprep.subr.bf16.mxu0 0
    %396 = vmatpush1.bf16.msra.mxu0 0
    %397 = vmatprep.subr.bf16.mxu0 0
    %398 = vmatpush1.bf16.msra.mxu0 0
    %399 = vmatprep.subr.bf16.mxu0 0
    %400 = vmatpush1.bf16.msra.mxu0 %v381
    %401 = vmatprep.subr.bf16.mxu0 0
    %402 = vmatpush1.bf16.msra.mxu0 %v380
    %403 = vmatprep.subr.bf16.mxu0 0
    %404 = vmatpush2.bf16.msra.mxu0 0
    %405 = vmatprep.subr.bf16.mxu0 0
    %406 = vmatpush2.bf16.msra.mxu0 0
    %407 = vmatprep.subr.bf16.mxu0 0
    %408 = vmatpush2.bf16.msra.mxu0 0
    %409 = vmatprep.subr.bf16.mxu0 0
    %410 = vmatpush2.bf16.msra.mxu0 0
    %411 = vmatprep.subr.bf16.mxu0 0
    %412 = vmatpush2.bf16.msra.mxu0 0
    %413 = vmatprep.subr.bf16.mxu0 0
    %414 = vmatpush2.bf16.msra.mxu0 0
    %415 = vmatprep.subr.bf16.mxu0 0
    %416 = vmatpush2.bf16.msra.mxu0 0
    %417 = vmatprep.subr.bf16.mxu0 0
    %418 = vmatpush2.bf16.msra.mxu0 0
    %419 = vmatprep.mubr.bf16.mxu0 0
    %420 = vmatmul.mubr.bf16.gmra.mxu0 %v385
    %v421 = vpop.f32.mrf.mxu0
    %v422 = vadd.f32 0.0, %v421
    %v423 = vpop.f32.mrf.mxu0
    %v424 = vpop.f32.mrf.mxu0
    %v425 = vpop.f32.mrf.mxu0
    %426 = vdwg.mxu0
    %v427 = vadd.f32 %v367, %v422
    %v428 = vmul.f32 %v427, 0.5
    %v429 = vtanh.pop %v428
    %v430 = vmul.f32 %v429, 0.5
    %v431 = vadd.f32 %v430, 0.5
    %v432 = vtanh.pop %v427
    %v433 = vmul.f32 %v431, %v342
    %435 = vrot.lane.b32.xlu0 %v432, 64
    %v436 = vpop.permute.xlu0 %435
    %v438 = vmul.f32 %v431, %v436
    %440 = vrot.lane.b32.xlu0 %v438, 32
    %v441 = vpop.permute.xlu0 %440
    %v443 = vadd.f32 %v433, %v441
    %v444 = vtanh.pop %v443
    %446 = vrot.lane.b32.xlu0 %v444, 64
    %v447 = vpop.permute.xlu0 %446
    %v449 = vmul.f32 %v431, %v447
    %451 = vrot.lane.b32.xlu0 %v449, 32
    %v452 = vpop.permute.xlu0 %451
    %s454 = scalar_lea.vmem [#allocation3], 6
    %455 = vst.msk [vmem:[%s454] sm:$0x3] %vm151, %v452
    %v456 = vld [vmem:[%s2] sm:$0xf]
    %v457 = vld [vmem:[%s2 + $0x4] sm:$0xf]
    %v458 = vld [vmem:[%s2 + $0x8] sm:$0xf]
    %v459 = vld [vmem:[%s2 + $0xc] sm:$0xf]
    %s460 = scalar_lea.vmem %s0, 8
    %v461 = vld [vmem:[%s460] sm:$0x3]
    %463 = vset.pattern.permute.xlu0 0
    %464 = vperm.xlu0 %463, %v461
    %v465 = vpop.permute.xlu0 %464
    %v467 = vmul.f32 %v465, %v58
    %v468 = vadd.f32 %v467, %v65
    %v469 = vpack.c.bf16 %v449, %v449
    %471 = vrot.lane.b32.xlu0 %v469, 32
    %v472 = vpop.permute.xlu0 %471
    %v477 = vunpack.c.l.b16 %v456
    %v478 = vunpack.c.l.b16 %v457
    %v479 = vunpack.c.l.b16 %v458
    %v480 = vunpack.c.l.b16 %v459
    %v481 = vpack.c.b16 %v478, %v477
    %v482 = vpack.c.b16 %v480, %v479
    %v486 = vsel %vm80, %v472, 0
    %488 = vmatprep.subr.bf16.mxu0 0
    %489 = vmatpush1.bf16.msra.mxu0 0
    %490 = vmatprep.subr.bf16.mxu0 0
    %491 = vmatpush1.bf16.msra.mxu0 0
    %492 = vmatprep.subr.bf16.mxu0 0
    %493 = vmatpush1.bf16.msra.mxu0 0
    %494 = vmatprep.subr.bf16.mxu0 0
    %495 = vmatpush1.bf16.msra.mxu0 0
    %496 = vmatprep.subr.bf16.mxu0 0
    %497 = vmatpush1.bf16.msra.mxu0 0
    %498 = vmatprep.subr.bf16.mxu0 0
    %499 = vmatpush1.bf16.msra.mxu0 0
    %500 = vmatprep.subr.bf16.mxu0 0
    %501 = vmatpush1.bf16.msra.mxu0 %v482
    %502 = vmatprep.subr.bf16.mxu0 0
    %503 = vmatpush1.bf16.msra.mxu0 %v481
    %504 = vmatprep.subr.bf16.mxu0 0
    %505 = vmatpush2.bf16.msra.mxu0 0
    %506 = vmatprep.subr.bf16.mxu0 0
    %507 = vmatpush2.bf16.msra.mxu0 0
    %508 = vmatprep.subr.bf16.mxu0 0
    %509 = vmatpush2.bf16.msra.mxu0 0
    %510 = vmatprep.subr.bf16.mxu0 0
    %511 = vmatpush2.bf16.msra.mxu0 0
    %512 = vmatprep.subr.bf16.mxu0 0
    %513 = vmatpush2.bf16.msra.mxu0 0
    %514 = vmatprep.subr.bf16.mxu0 0
    %515 = vmatpush2.bf16.msra.mxu0 0
    %516 = vmatprep.subr.bf16.mxu0 0
    %517 = vmatpush2.bf16.msra.mxu0 0
    %518 = vmatprep.subr.bf16.mxu0 0
    %519 = vmatpush2.bf16.msra.mxu0 0
    %520 = vmatprep.mubr.bf16.mxu0 0
    %521 = vmatmul.mubr.bf16.gmra.mxu0 %v486
    %v522 = vpop.f32.mrf.mxu0
    %v523 = vadd.f32 0.0, %v522
    %v524 = vpop.f32.mrf.mxu0
    %v525 = vpop.f32.mrf.mxu0
    %v526 = vpop.f32.mrf.mxu0
    %527 = vdwg.mxu0
    %v528 = vadd.f32 %v468, %v523
    %v529 = vmul.f32 %v528, 0.5
    %v530 = vtanh.pop %v529
    %v531 = vmul.f32 %v530, 0.5
    %v532 = vadd.f32 %v531, 0.5
    %v533 = vtanh.pop %v528
    %v534 = vmul.f32 %v532, %v443
    %536 = vrot.lane.b32.xlu0 %v533, 64
    %v537 = vpop.permute.xlu0 %536
    %v539 = vmul.f32 %v532, %v537
    %541 = vrot.lane.b32.xlu0 %v539, 32
    %v542 = vpop.permute.xlu0 %541
    %v544 = vadd.f32 %v534, %v542
    %v545 = vtanh.pop %v544
    %547 = vrot.lane.b32.xlu0 %v545, 64
    %v548 = vpop.permute.xlu0 %547
    %v550 = vmul.f32 %v532, %v548
    %552 = vrot.lane.b32.xlu0 %v550, 32
    %v553 = vpop.permute.xlu0 %552
    %s555 = scalar_lea.vmem [#allocation3], 8
    %556 = vst.msk [vmem:[%s555] sm:$0x3] %vm151, %v553
    %v557 = vld [vmem:[%s2] sm:$0xf]
    %v558 = vld [vmem:[%s2 + $0x4] sm:$0xf]
    %v559 = vld [vmem:[%s2 + $0x8] sm:$0xf]
    %v560 = vld [vmem:[%s2 + $0xc] sm:$0xf]
    %s561 = scalar_lea.vmem %s0, 10
    %v562 = vld [vmem:[%s561] sm:$0x3]
    %564 = vset.pattern.permute.xlu0 0
    %565 = vperm.xlu0 %564, %v562
    %v566 = vpop.permute.xlu0 %565
    %v568 = vmul.f32 %v566, %v58
    %v569 = vadd.f32 %v568, %v65
    %v570 = vpack.c.bf16 %v550, %v550
    %572 = vrot.lane.b32.xlu0 %v570, 32
    %v573 = vpop.permute.xlu0 %572
    %v578 = vunpack.c.l.b16 %v557
    %v579 = vunpack.c.l.b16 %v558
    %v580 = vunpack.c.l.b16 %v559
    %v581 = vunpack.c.l.b16 %v560
    %v582 = vpack.c.b16 %v579, %v578
    %v583 = vpack.c.b16 %v581, %v580
    %v587 = vsel %vm80, %v573, 0
    %589 = vmatprep.subr.bf16.mxu0 0
    %590 = vmatpush1.bf16.msra.mxu0 0
    %591 = vmatprep.subr.bf16.mxu0 0
    %592 = vmatpush1.bf16.msra.mxu0 0
    %593 = vmatprep.subr.bf16.mxu0 0
    %594 = vmatpush1.bf16.msra.mxu0 0
    %595 = vmatprep.subr.bf16.mxu0 0
    %596 = vmatpush1.bf16.msra.mxu0 0
    %597 = vmatprep.subr.bf16.mxu0 0
    %598 = vmatpush1.bf16.msra.mxu0 0
    %599 = vmatprep.subr.bf16.mxu0 0
    %600 = vmatpush1.bf16.msra.mxu0 0
    %601 = vmatprep.subr.bf16.mxu0 0
    %602 = vmatpush1.bf16.msra.mxu0 %v583
    %603 = vmatprep.subr.bf16.mxu0 0
    %604 = vmatpush1.bf16.msra.mxu0 %v582
    %605 = vmatprep.subr.bf16.mxu0 0
    %606 = vmatpush2.bf16.msra.mxu0 0
    %607 = vmatprep.subr.bf16.mxu0 0
    %608 = vmatpush2.bf16.msra.mxu0 0
    %609 = vmatprep.subr.bf16.mxu0 0
    %610 = vmatpush2.bf16.msra.mxu0 0
    %611 = vmatprep.subr.bf16.mxu0 0
    %612 = vmatpush2.bf16.msra.mxu0 0
    %613 = vmatprep.subr.bf16.mxu0 0
    %614 = vmatpush2.bf16.msra.mxu0 0
    %615 = vmatprep.subr.bf16.mxu0 0
    %616 = vmatpush2.bf16.msra.mxu0 0
    %617 = vmatprep.subr.bf16.mxu0 0
    %618 = vmatpush2.bf16.msra.mxu0 0
    %619 = vmatprep.subr.bf16.mxu0 0
    %620 = vmatpush2.bf16.msra.mxu0 0
    %621 = vmatprep.mubr.bf16.mxu0 0
    %622 = vmatmul.mubr.bf16.gmra.mxu0 %v587
    %v623 = vpop.f32.mrf.mxu0
    %v624 = vadd.f32 0.0, %v623
    %v625 = vpop.f32.mrf.mxu0
    %v626 = vpop.f32.mrf.mxu0
    %v627 = vpop.f32.mrf.mxu0
    %628 = vdwg.mxu0
    %v629 = vadd.f32 %v569, %v624
    %v630 = vmul.f32 %v629, 0.5
    %v631 = vtanh.pop %v630
    %v632 = vmul.f32 %v631, 0.5
    %v633 = vadd.f32 %v632, 0.5
    %v634 = vtanh.pop %v629
    %v635 = vmul.f32 %v633, %v544
    %637 = vrot.lane.b32.xlu0 %v634, 64
    %v638 = vpop.permute.xlu0 %637
    %v640 = vmul.f32 %v633, %v638
    %642 = vrot.lane.b32.xlu0 %v640, 32
    %v643 = vpop.permute.xlu0 %642
    %v645 = vadd.f32 %v635, %v643
    %v646 = vtanh.pop %v645
    %648 = vrot.lane.b32.xlu0 %v646, 64
    %v649 = vpop.permute.xlu0 %648
    %v651 = vmul.f32 %v633, %v649
    %653 = vrot.lane.b32.xlu0 %v651, 32
    %v654 = vpop.permute.xlu0 %653
    %s656 = scalar_lea.vmem [#allocation3], 10
    %657 = vst.msk [vmem:[%s656] sm:$0x3] %vm151, %v654
    %v658 = vld [vmem:[%s2] sm:$0xf]
    %v659 = vld [vmem:[%s2 + $0x4] sm:$0xf]
    %v660 = vld [vmem:[%s2 + $0x8] sm:$0xf]
    %v661 = vld [vmem:[%s2 + $0xc] sm:$0xf]
    %s662 = scalar_lea.vmem %s0, 12
    %v663 = vld [vmem:[%s662] sm:$0x3]
    %665 = vset.pattern.permute.xlu0 0
    %666 = vperm.xlu0 %665, %v663
    %v667 = vpop.permute.xlu0 %666
    %v669 = vmul.f32 %v667, %v58
    %v670 = vadd.f32 %v669, %v65
    %v671 = vpack.c.bf16 %v651, %v651
    %673 = vrot.lane.b32.xlu0 %v671, 32
    %v674 = vpop.permute.xlu0 %673
    %v679 = vunpack.c.l.b16 %v658
    %v680 = vunpack.c.l.b16 %v659
    %v681 = vunpack.c.l.b16 %v660
    %v682 = vunpack.c.l.b16 %v661
    %v683 = vpack.c.b16 %v680, %v679
    %v684 = vpack.c.b16 %v682, %v681
    %v688 = vsel %vm80, %v674, 0
    %690 = vmatprep.subr.bf16.mxu0 0
    %691 = vmatpush1.bf16.msra.mxu0 0
    %692 = vmatprep.subr.bf16.mxu0 0
    %693 = vmatpush1.bf16.msra.mxu0 0
    %694 = vmatprep.subr.bf16.mxu0 0
    %695 = vmatpush1.bf16.msra.mxu0 0
    %696 = vmatprep.subr.bf16.mxu0 0
    %697 = vmatpush1.bf16.msra.mxu0 0
    %698 = vmatprep.subr.bf16.mxu0 0
    %699 = vmatpush1.bf16.msra.mxu0 0
    %700 = vmatprep.subr.bf16.mxu0 0
    %701 = vmatpush1.bf16.msra.mxu0 0
    %702 = vmatprep.subr.bf16.mxu0 0
    %703 = vmatpush1.bf16.msra.mxu0 %v684
    %704 = vmatprep.subr.bf16.mxu0 0
    %705 = vmatpush1.bf16.msra.mxu0 %v683
    %706 = vmatprep.subr.bf16.mxu0 0
    %707 = vmatpush2.bf16.msra.mxu0 0
    %708 = vmatprep.subr.bf16.mxu0 0
    %709 = vmatpush2.bf16.msra.mxu0 0
    %710 = vmatprep.subr.bf16.mxu0 0
    %711 = vmatpush2.bf16.msra.mxu0 0
    %712 = vmatprep.subr.bf16.mxu0 0
    %713 = vmatpush2.bf16.msra.mxu0 0
    %714 = vmatprep.subr.bf16.mxu0 0
    %715 = vmatpush2.bf16.msra.mxu0 0
    %716 = vmatprep.subr.bf16.mxu0 0
    %717 = vmatpush2.bf16.msra.mxu0 0
    %718 = vmatprep.subr.bf16.mxu0 0
    %719 = vmatpush2.bf16.msra.mxu0 0
    %720 = vmatprep.subr.bf16.mxu0 0
    %721 = vmatpush2.bf16.msra.mxu0 0
    %722 = vmatprep.mubr.bf16.mxu0 0
    %723 = vmatmul.mubr.bf16.gmra.mxu0 %v688
    %v724 = vpop.f32.mrf.mxu0
    %v725 = vadd.f32 0.0, %v724
    %v726 = vpop.f32.mrf.mxu0
    %v727 = vpop.f32.mrf.mxu0
    %v728 = vpop.f32.mrf.mxu0
    %729 = vdwg.mxu0
    %v730 = vadd.f32 %v670, %v725
    %v731 = vmul.f32 %v730, 0.5
    %v732 = vtanh.pop %v731
    %v733 = vmul.f32 %v732, 0.5
    %v734 = vadd.f32 %v733, 0.5
    %v735 = vtanh.pop %v730
    %v736 = vmul.f32 %v734, %v645
    %738 = vrot.lane.b32.xlu0 %v735, 64
    %v739 = vpop.permute.xlu0 %738
    %v741 = vmul.f32 %v734, %v739
    %743 = vrot.lane.b32.xlu0 %v741, 32
    %v744 = vpop.permute.xlu0 %743
    %v746 = vadd.f32 %v736, %v744
    %v747 = vtanh.pop %v746
    %749 = vrot.lane.b32.xlu0 %v747, 64
    %v750 = vpop.permute.xlu0 %749
    %v752 = vmul.f32 %v734, %v750
    %754 = vrot.lane.b32.xlu0 %v752, 32
    %v755 = vpop.permute.xlu0 %754
    %s757 = scalar_lea.vmem [#allocation3], 12
    %758 = vst.msk [vmem:[%s757] sm:$0x3] %vm151, %v755
    %v759 = vld [vmem:[%s2] sm:$0xf]
    %v760 = vld [vmem:[%s2 + $0x4] sm:$0xf]
    %v761 = vld [vmem:[%s2 + $0x8] sm:$0xf]
    %v762 = vld [vmem:[%s2 + $0xc] sm:$0xf]
    %s763 = scalar_lea.vmem %s0, 14
    %v764 = vld [vmem:[%s763] sm:$0x3]
    %766 = vset.pattern.permute.xlu0 0
    %767 = vperm.xlu0 %766, %v764
    %v768 = vpop.permute.xlu0 %767
    %v770 = vmul.f32 %v768, %v58
    %v771 = vadd.f32 %v770, %v65
    %v772 = vpack.c.bf16 %v752, %v752
    %774 = vrot.lane.b32.xlu0 %v772, 32
    %v775 = vpop.permute.xlu0 %774
    %v780 = vunpack.c.l.b16 %v759
    %v781 = vunpack.c.l.b16 %v760
    %v782 = vunpack.c.l.b16 %v761
    %v783 = vunpack.c.l.b16 %v762
    %v784 = vpack.c.b16 %v781, %v780
    %v785 = vpack.c.b16 %v783, %v782
    %v789 = vsel %vm80, %v775, 0
    %791 = vmatprep.subr.bf16.mxu0 0
    %792 = vmatpush1.bf16.msra.mxu0 0
    %793 = vmatprep.subr.bf16.mxu0 0
    %794 = vmatpush1.bf16.msra.mxu0 0
    %795 = vmatprep.subr.bf16.mxu0 0
    %796 = vmatpush1.bf16.msra.mxu0 0
    %797 = vmatprep.subr.bf16.mxu0 0
    %798 = vmatpush1.bf16.msra.mxu0 0
    %799 = vmatprep.subr.bf16.mxu0 0
    %800 = vmatpush1.bf16.msra.mxu0 0
    %801 = vmatprep.subr.bf16.mxu0 0
    %802 = vmatpush1.bf16.msra.mxu0 0
    %803 = vmatprep.subr.bf16.mxu0 0
    %804 = vmatpush1.bf16.msra.mxu0 %v785
    %805 = vmatprep.subr.bf16.mxu0 0
    %806 = vmatpush1.bf16.msra.mxu0 %v784
    %807 = vmatprep.subr.bf16.mxu0 0
    %808 = vmatpush2.bf16.msra.mxu0 0
    %809 = vmatprep.subr.bf16.mxu0 0
    %810 = vmatpush2.bf16.msra.mxu0 0
    %811 = vmatprep.subr.bf16.mxu0 0
    %812 = vmatpush2.bf16.msra.mxu0 0
    %813 = vmatprep.subr.bf16.mxu0 0
    %814 = vmatpush2.bf16.msra.mxu0 0
    %815 = vmatprep.subr.bf16.mxu0 0
    %816 = vmatpush2.bf16.msra.mxu0 0
    %817 = vmatprep.subr.bf16.mxu0 0
    %818 = vmatpush2.bf16.msra.mxu0 0
    %819 = vmatprep.subr.bf16.mxu0 0
    %820 = vmatpush2.bf16.msra.mxu0 0
    %821 = vmatprep.subr.bf16.mxu0 0
    %822 = vmatpush2.bf16.msra.mxu0 0
    %823 = vmatprep.mubr.bf16.mxu0 0
    %824 = vmatmul.mubr.bf16.gmra.mxu0 %v789
    %v825 = vpop.f32.mrf.mxu0
    %v826 = vadd.f32 0.0, %v825
    %v827 = vpop.f32.mrf.mxu0
    %v828 = vpop.f32.mrf.mxu0
    %v829 = vpop.f32.mrf.mxu0
    %830 = vdwg.mxu0
    %v831 = vadd.f32 %v771, %v826
    %v832 = vmul.f32 %v831, 0.5
    %v833 = vtanh.pop %v832
    %v834 = vmul.f32 %v833, 0.5
    %v835 = vadd.f32 %v834, 0.5
    %v836 = vtanh.pop %v831
    %v837 = vmul.f32 %v835, %v746
    %839 = vrot.lane.b32.xlu0 %v836, 64
    %v840 = vpop.permute.xlu0 %839
    %v842 = vmul.f32 %v835, %v840
    %844 = vrot.lane.b32.xlu0 %v842, 32
    %v845 = vpop.permute.xlu0 %844
    %v847 = vadd.f32 %v837, %v845
    %v848 = vtanh.pop %v847
    %850 = vrot.lane.b32.xlu0 %v848, 64
    %v851 = vpop.permute.xlu0 %850
    %v853 = vmul.f32 %v835, %v851
    %855 = vrot.lane.b32.xlu0 %v853, 32
    %v856 = vpop.permute.xlu0 %855
    %s858 = scalar_lea.vmem [#allocation3], 14
    %859 = vst.msk [vmem:[%s858] sm:$0x3] %vm151, %v856
    %v860 = vld [vmem:[%s2] sm:$0xf]
    %v861 = vld [vmem:[%s2 + $0x4] sm:$0xf]
    %v862 = vld [vmem:[%s2 + $0x8] sm:$0xf]
    %v863 = vld [vmem:[%s2 + $0xc] sm:$0xf]
    %s864 = scalar_lea.vmem %s0, 16
    %v865 = vld [vmem:[%s864] sm:$0x3]
    %867 = vset.pattern.permute.xlu0 0
    %868 = vperm.xlu0 %867, %v865
    %v869 = vpop.permute.xlu0 %868
    %v871 = vmul.f32 %v869, %v58
    %v872 = vadd.f32 %v871, %v65
    %v873 = vpack.c.bf16 %v853, %v853
    %875 = vrot.lane.b32.xlu0 %v873, 32
    %v876 = vpop.permute.xlu0 %875
    %v881 = vunpack.c.l.b16 %v860
    %v882 = vunpack.c.l.b16 %v861
    %v883 = vunpack.c.l.b16 %v862
    %v884 = vunpack.c.l.b16 %v863
    %v885 = vpack.c.b16 %v882, %v881
    %v886 = vpack.c.b16 %v884, %v883
    %v890 = vsel %vm80, %v876, 0
    %892 = vmatprep.subr.bf16.mxu0 0
    %893 = vmatpush1.bf16.msra.mxu0 0
    %894 = vmatprep.subr.bf16.mxu0 0
    %895 = vmatpush1.bf16.msra.mxu0 0
    %896 = vmatprep.subr.bf16.mxu0 0
    %897 = vmatpush1.bf16.msra.mxu0 0
    %898 = vmatprep.subr.bf16.mxu0 0
    %899 = vmatpush1.bf16.msra.mxu0 0
    %900 = vmatprep.subr.bf16.mxu0 0
    %901 = vmatpush1.bf16.msra.mxu0 0
    %902 = vmatprep.subr.bf16.mxu0 0
    %903 = vmatpush1.bf16.msra.mxu0 0
    %904 = vmatprep.subr.bf16.mxu0 0
    %905 = vmatpush1.bf16.msra.mxu0 %v886
    %906 = vmatprep.subr.bf16.mxu0 0
    %907 = vmatpush1.bf16.msra.mxu0 %v885
    %908 = vmatprep.subr.bf16.mxu0 0
    %909 = vmatpush2.bf16.msra.mxu0 0
    %910 = vmatprep.subr.bf16.mxu0 0
    %911 = vmatpush2.bf16.msra.mxu0 0
    %912 = vmatprep.subr.bf16.mxu0 0
    %913 = vmatpush2.bf16.msra.mxu0 0
    %914 = vmatprep.subr.bf16.mxu0 0
    %915 = vmatpush2.bf16.msra.mxu0 0
    %916 = vmatprep.subr.bf16.mxu0 0
    %917 = vmatpush2.bf16.msra.mxu0 0
    %918 = vmatprep.subr.bf16.mxu0 0
    %919 = vmatpush2.bf16.msra.mxu0 0
    %920 = vmatprep.subr.bf16.mxu0 0
    %921 = vmatpush2.bf16.msra.mxu0 0
    %922 = vmatprep.subr.bf16.mxu0 0
    %923 = vmatpush2.bf16.msra.mxu0 0
    %924 = vmatprep.mubr.bf16.mxu0 0
    %925 = vmatmul.mubr.bf16.gmra.mxu0 %v890
    %v926 = vpop.f32.mrf.mxu0
    %v927 = vadd.f32 0.0, %v926
    %v928 = vpop.f32.mrf.mxu0
    %v929 = vpop.f32.mrf.mxu0
    %v930 = vpop.f32.mrf.mxu0
    %931 = vdwg.mxu0
    %v932 = vadd.f32 %v872, %v927
    %v933 = vmul.f32 %v932, 0.5
    %v934 = vtanh.pop %v933
    %v935 = vmul.f32 %v934, 0.5
    %v936 = vadd.f32 %v935, 0.5
    %v937 = vtanh.pop %v932
    %v938 = vmul.f32 %v936, %v847
    %940 = vrot.lane.b32.xlu0 %v937, 64
    %v941 = vpop.permute.xlu0 %940
    %v943 = vmul.f32 %v936, %v941
    %945 = vrot.lane.b32.xlu0 %v943, 32
    %v946 = vpop.permute.xlu0 %945
    %v948 = vadd.f32 %v938, %v946
    %v949 = vtanh.pop %v948
    %951 = vrot.lane.b32.xlu0 %v949, 64
    %v952 = vpop.permute.xlu0 %951
    %v954 = vmul.f32 %v936, %v952
    %956 = vrot.lane.b32.xlu0 %v954, 32
    %v957 = vpop.permute.xlu0 %956
    %s959 = scalar_lea.vmem [#allocation3], 16
    %960 = vst.msk [vmem:[%s959] sm:$0x3] %vm151, %v957
    %v961 = vld [vmem:[%s2] sm:$0xf]
    %v962 = vld [vmem:[%s2 + $0x4] sm:$0xf]
    %v963 = vld [vmem:[%s2 + $0x8] sm:$0xf]
    %v964 = vld [vmem:[%s2 + $0xc] sm:$0xf]
    %s965 = scalar_lea.vmem %s0, 18
    %v966 = vld [vmem:[%s965] sm:$0x3]
    %968 = vset.pattern.permute.xlu0 0
    %969 = vperm.xlu0 %968, %v966
    %v970 = vpop.permute.xlu0 %969
    %v972 = vmul.f32 %v970, %v58
    %v973 = vadd.f32 %v972, %v65
    %v974 = vpack.c.bf16 %v954, %v954
    %976 = vrot.lane.b32.xlu0 %v974, 32
    %v977 = vpop.permute.xlu0 %976
    %v982 = vunpack.c.l.b16 %v961
    %v983 = vunpack.c.l.b16 %v962
    %v984 = vunpack.c.l.b16 %v963
    %v985 = vunpack.c.l.b16 %v964
    %v986 = vpack.c.b16 %v983, %v982
    %v987 = vpack.c.b16 %v985, %v984
    %v991 = vsel %vm80, %v977, 0
    %993 = vmatprep.subr.bf16.mxu0 0
    %994 = vmatpush1.bf16.msra.mxu0 0
    %995 = vmatprep.subr.bf16.mxu0 0
    %996 = vmatpush1.bf16.msra.mxu0 0
    %997 = vmatprep.subr.bf16.mxu0 0
    %998 = vmatpush1.bf16.msra.mxu0 0
    %999 = vmatprep.subr.bf16.mxu0 0
    %1000 = vmatpush1.bf16.msra.mxu0 0
    %1001 = vmatprep.subr.bf16.mxu0 0
    %1002 = vmatpush1.bf16.msra.mxu0 0
    %1003 = vmatprep.subr.bf16.mxu0 0
    %1004 = vmatpush1.bf16.msra.mxu0 0
    %1005 = vmatprep.subr.bf16.mxu0 0
    %1006 = vmatpush1.bf16.msra.mxu0 %v987
    %1007 = vmatprep.subr.bf16.mxu0 0
    %1008 = vmatpush1.bf16.msra.mxu0 %v986
    %1009 = vmatprep.subr.bf16.mxu0 0
    %1010 = vmatpush2.bf16.msra.mxu0 0
    %1011 = vmatprep.subr.bf16.mxu0 0
    %1012 = vmatpush2.bf16.msra.mxu0 0
    %1013 = vmatprep.subr.bf16.mxu0 0
    %1014 = vmatpush2.bf16.msra.mxu0 0
    %1015 = vmatprep.subr.bf16.mxu0 0
    %1016 = vmatpush2.bf16.msra.mxu0 0
    %1017 = vmatprep.subr.bf16.mxu0 0
    %1018 = vmatpush2.bf16.msra.mxu0 0
    %1019 = vmatprep.subr.bf16.mxu0 0
    %1020 = vmatpush2.bf16.msra.mxu0 0
    %1021 = vmatprep.subr.bf16.mxu0 0
    %1022 = vmatpush2.bf16.msra.mxu0 0
    %1023 = vmatprep.subr.bf16.mxu0 0
    %1024 = vmatpush2.bf16.msra.mxu0 0
    %1025 = vmatprep.mubr.bf16.mxu0 0
    %1026 = vmatmul.mubr.bf16.gmra.mxu0 %v991
    %v1027 = vpop.f32.mrf.mxu0
    %v1028 = vadd.f32 0.0, %v1027
    %v1029 = vpop.f32.mrf.mxu0
    %v1030 = vpop.f32.mrf.mxu0
    %v1031 = vpop.f32.mrf.mxu0
    %1032 = vdwg.mxu0
    %v1033 = vadd.f32 %v973, %v1028
    %v1034 = vmul.f32 %v1033, 0.5
    %v1035 = vtanh.pop %v1034
    %v1036 = vmul.f32 %v1035, 0.5
    %v1037 = vadd.f32 %v1036, 0.5
    %v1038 = vtanh.pop %v1033
    %v1039 = vmul.f32 %v1037, %v948
    %1041 = vrot.lane.b32.xlu0 %v1038, 64
    %v1042 = vpop.permute.xlu0 %1041
    %v1044 = vmul.f32 %v1037, %v1042
    %1046 = vrot.lane.b32.xlu0 %v1044, 32
    %v1047 = vpop.permute.xlu0 %1046
    %v1049 = vadd.f32 %v1039, %v1047
    %v1050 = vtanh.pop %v1049
    %1052 = vrot.lane.b32.xlu0 %v1050, 64
    %v1053 = vpop.permute.xlu0 %1052
    %v1055 = vmul.f32 %v1037, %v1053
    %1057 = vrot.lane.b32.xlu0 %v1055, 32
    %v1058 = vpop.permute.xlu0 %1057
    %s1060 = scalar_lea.vmem [#allocation3], 18
    %1061 = vst.msk [vmem:[%s1060] sm:$0x3] %vm151, %v1058
    %v1062 = vld [vmem:[%s2] sm:$0xf]
    %v1063 = vld [vmem:[%s2 + $0x4] sm:$0xf]
    %v1064 = vld [vmem:[%s2 + $0x8] sm:$0xf]
    %v1065 = vld [vmem:[%s2 + $0xc] sm:$0xf]
    %s1066 = scalar_lea.vmem %s0, 20
    %v1067 = vld [vmem:[%s1066] sm:$0x3]
    %1069 = vset.pattern.permute.xlu0 0
    %1070 = vperm.xlu0 %1069, %v1067
    %v1071 = vpop.permute.xlu0 %1070
    %v1073 = vmul.f32 %v1071, %v58
    %v1074 = vadd.f32 %v1073, %v65
    %v1075 = vpack.c.bf16 %v1055, %v1055
    %1077 = vrot.lane.b32.xlu0 %v1075, 32
    %v1078 = vpop.permute.xlu0 %1077
    %v1083 = vunpack.c.l.b16 %v1062
    %v1084 = vunpack.c.l.b16 %v1063
    %v1085 = vunpack.c.l.b16 %v1064
    %v1086 = vunpack.c.l.b16 %v1065
    %v1087 = vpack.c.b16 %v1084, %v1083
    %v1088 = vpack.c.b16 %v1086, %v1085
    %v1092 = vsel %vm80, %v1078, 0
    %1094 = vmatprep.subr.bf16.mxu0 0
    %1095 = vmatpush1.bf16.msra.mxu0 0
    %1096 = vmatprep.subr.bf16.mxu0 0
    %1097 = vmatpush1.bf16.msra.mxu0 0
    %1098 = vmatprep.subr.bf16.mxu0 0
    %1099 = vmatpush1.bf16.msra.mxu0 0
    %1100 = vmatprep.subr.bf16.mxu0 0
    %1101 = vmatpush1.bf16.msra.mxu0 0
    %1102 = vmatprep.subr.bf16.mxu0 0
    %1103 = vmatpush1.bf16.msra.mxu0 0
    %1104 = vmatprep.subr.bf16.mxu0 0
    %1105 = vmatpush1.bf16.msra.mxu0 0
    %1106 = vmatprep.subr.bf16.mxu0 0
    %1107 = vmatpush1.bf16.msra.mxu0 %v1088
    %1108 = vmatprep.subr.bf16.mxu0 0
    %1109 = vmatpush1.bf16.msra.mxu0 %v1087
    %1110 = vmatprep.subr.bf16.mxu0 0
    %1111 = vmatpush2.bf16.msra.mxu0 0
    %1112 = vmatprep.subr.bf16.mxu0 0
    %1113 = vmatpush2.bf16.msra.mxu0 0
    %1114 = vmatprep.subr.bf16.mxu0 0
    %1115 = vmatpush2.bf16.msra.mxu0 0
    %1116 = vmatprep.subr.bf16.mxu0 0
    %1117 = vmatpush2.bf16.msra.mxu0 0
    %1118 = vmatprep.subr.bf16.mxu0 0
    %1119 = vmatpush2.bf16.msra.mxu0 0
    %1120 = vmatprep.subr.bf16.mxu0 0
    %1121 = vmatpush2.bf16.msra.mxu0 0
    %1122 = vmatprep.subr.bf16.mxu0 0
    %1123 = vmatpush2.bf16.msra.mxu0 0
    %1124 = vmatprep.subr.bf16.mxu0 0
    %1125 = vmatpush2.bf16.msra.mxu0 0
    %1126 = vmatprep.mubr.bf16.mxu0 0
    %1127 = vmatmul.mubr.bf16.gmra.mxu0 %v1092
    %v1128 = vpop.f32.mrf.mxu0
    %v1129 = vadd.f32 0.0, %v1128
    %v1130 = vpop.f32.mrf.mxu0
    %v1131 = vpop.f32.mrf.mxu0
    %v1132 = vpop.f32.mrf.mxu0
    %1133 = vdwg.mxu0
    %v1134 = vadd.f32 %v1074, %v1129
    %v1135 = vmul.f32 %v1134, 0.5
    %v1136 = vtanh.pop %v1135
    %v1137 = vmul.f32 %v1136, 0.5
    %v1138 = vadd.f32 %v1137, 0.5
    %v1139 = vtanh.pop %v1134
    %v1140 = vmul.f32 %v1138, %v1049
    %1142 = vrot.lane.b32.xlu0 %v1139, 64
    %v1143 = vpop.permute.xlu0 %1142
    %v1145 = vmul.f32 %v1138, %v1143
    %1147 = vrot.lane.b32.xlu0 %v1145, 32
    %v1148 = vpop.permute.xlu0 %1147
    %v1150 = vadd.f32 %v1140, %v1148
    %v1151 = vtanh.pop %v1150
    %1153 = vrot.lane.b32.xlu0 %v1151, 64
    %v1154 = vpop.permute.xlu0 %1153
    %v1156 = vmul.f32 %v1138, %v1154
    %1158 = vrot.lane.b32.xlu0 %v1156, 32
    %v1159 = vpop.permute.xlu0 %1158
    %s1161 = scalar_lea.vmem [#allocation3], 20
    %1162 = vst.msk [vmem:[%s1161] sm:$0x3] %vm151, %v1159
    %v1163 = vld [vmem:[%s2] sm:$0xf]
    %v1164 = vld [vmem:[%s2 + $0x4] sm:$0xf]
    %v1165 = vld [vmem:[%s2 + $0x8] sm:$0xf]
    %v1166 = vld [vmem:[%s2 + $0xc] sm:$0xf]
    %s1167 = scalar_lea.vmem %s0, 22
    %v1168 = vld [vmem:[%s1167] sm:$0x3]
    %1170 = vset.pattern.permute.xlu0 0
    %1171 = vperm.xlu0 %1170, %v1168
    %v1172 = vpop.permute.xlu0 %1171
    %v1174 = vmul.f32 %v1172, %v58
    %v1175 = vadd.f32 %v1174, %v65
    %v1176 = vpack.c.bf16 %v1156, %v1156
    %1178 = vrot.lane.b32.xlu0 %v1176, 32
    %v1179 = vpop.permute.xlu0 %1178
    %v1184 = vunpack.c.l.b16 %v1163
    %v1185 = vunpack.c.l.b16 %v1164
    %v1186 = vunpack.c.l.b16 %v1165
    %v1187 = vunpack.c.l.b16 %v1166
    %v1188 = vpack.c.b16 %v1185, %v1184
    %v1189 = vpack.c.b16 %v1187, %v1186
    %v1193 = vsel %vm80, %v1179, 0
    %1195 = vmatprep.subr.bf16.mxu0 0
    %1196 = vmatpush1.bf16.msra.mxu0 0
    %1197 = vmatprep.subr.bf16.mxu0 0
    %1198 = vmatpush1.bf16.msra.mxu0 0
    %1199 = vmatprep.subr.bf16.mxu0 0
    %1200 = vmatpush1.bf16.msra.mxu0 0
    %1201 = vmatprep.subr.bf16.mxu0 0
    %1202 = vmatpush1.bf16.msra.mxu0 0
    %1203 = vmatprep.subr.bf16.mxu0 0
    %1204 = vmatpush1.bf16.msra.mxu0 0
    %1205 = vmatprep.subr.bf16.mxu0 0
    %1206 = vmatpush1.bf16.msra.mxu0 0
    %1207 = vmatprep.subr.bf16.mxu0 0
    %1208 = vmatpush1.bf16.msra.mxu0 %v1189
    %1209 = vmatprep.subr.bf16.mxu0 0
    %1210 = vmatpush1.bf16.msra.mxu0 %v1188
    %1211 = vmatprep.subr.bf16.mxu0 0
    %1212 = vmatpush2.bf16.msra.mxu0 0
    %1213 = vmatprep.subr.bf16.mxu0 0
    %1214 = vmatpush2.bf16.msra.mxu0 0
    %1215 = vmatprep.subr.bf16.mxu0 0
    %1216 = vmatpush2.bf16.msra.mxu0 0
    %1217 = vmatprep.subr.bf16.mxu0 0
    %1218 = vmatpush2.bf16.msra.mxu0 0
    %1219 = vmatprep.subr.bf16.mxu0 0
    %1220 = vmatpush2.bf16.msra.mxu0 0
    %1221 = vmatprep.subr.bf16.mxu0 0
    %1222 = vmatpush2.bf16.msra.mxu0 0
    %1223 = vmatprep.subr.bf16.mxu0 0
    %1224 = vmatpush2.bf16.msra.mxu0 0
    %1225 = vmatprep.subr.bf16.mxu0 0
    %1226 = vmatpush2.bf16.msra.mxu0 0
    %1227 = vmatprep.mubr.bf16.mxu0 0
    %1228 = vmatmul.mubr.bf16.gmra.mxu0 %v1193
    %v1229 = vpop.f32.mrf.mxu0
    %v1230 = vadd.f32 0.0, %v1229
    %v1231 = vpop.f32.mrf.mxu0
    %v1232 = vpop.f32.mrf.mxu0
    %v1233 = vpop.f32.mrf.mxu0
    %1234 = vdwg.mxu0
    %v1235 = vadd.f32 %v1175, %v1230
    %v1236 = vmul.f32 %v1235, 0.5
    %v1237 = vtanh.pop %v1236
    %v1238 = vmul.f32 %v1237, 0.5
    %v1239 = vadd.f32 %v1238, 0.5
    %v1240 = vtanh.pop %v1235
    %v1241 = vmul.f32 %v1239, %v1150
    %1243 = vrot.lane.b32.xlu0 %v1240, 64
    %v1244 = vpop.permute.xlu0 %1243
    %v1246 = vmul.f32 %v1239, %v1244
    %1248 = vrot.lane.b32.xlu0 %v1246, 32
    %v1249 = vpop.permute.xlu0 %1248
    %v1251 = vadd.f32 %v1241, %v1249
    %v1252 = vtanh.pop %v1251
    %1254 = vrot.lane.b32.xlu0 %v1252, 64
    %v1255 = vpop.permute.xlu0 %1254
    %v1257 = vmul.f32 %v1239, %v1255
    %1259 = vrot.lane.b32.xlu0 %v1257, 32
    %v1260 = vpop.permute.xlu0 %1259
    %s1262 = scalar_lea.vmem [#allocation3], 22
    %1263 = vst.msk [vmem:[%s1262] sm:$0x3] %vm151, %v1260
    %v1264 = vld [vmem:[%s2] sm:$0xf]
    %v1265 = vld [vmem:[%s2 + $0x4] sm:$0xf]
    %v1266 = vld [vmem:[%s2 + $0x8] sm:$0xf]
    %v1267 = vld [vmem:[%s2 + $0xc] sm:$0xf]
    %s1268 = scalar_lea.vmem %s0, 24
    %v1269 = vld [vmem:[%s1268] sm:$0x3]
    %1271 = vset.pattern.permute.xlu0 0
    %1272 = vperm.xlu0 %1271, %v1269
    %v1273 = vpop.permute.xlu0 %1272
    %v1275 = vmul.f32 %v1273, %v58
    %v1276 = vadd.f32 %v1275, %v65
    %v1277 = vpack.c.bf16 %v1257, %v1257
    %1279 = vrot.lane.b32.xlu0 %v1277, 32
    %v1280 = vpop.permute.xlu0 %1279
    %v1285 = vunpack.c.l.b16 %v1264
    %v1286 = vunpack.c.l.b16 %v1265
    %v1287 = vunpack.c.l.b16 %v1266
    %v1288 = vunpack.c.l.b16 %v1267
    %v1289 = vpack.c.b16 %v1286, %v1285
    %v1290 = vpack.c.b16 %v1288, %v1287
    %v1294 = vsel %vm80, %v1280, 0
    %1296 = vmatprep.subr.bf16.mxu0 0
    %1297 = vmatpush1.bf16.msra.mxu0 0
    %1298 = vmatprep.subr.bf16.mxu0 0
    %1299 = vmatpush1.bf16.msra.mxu0 0
    %1300 = vmatprep.subr.bf16.mxu0 0
    %1301 = vmatpush1.bf16.msra.mxu0 0
    %1302 = vmatprep.subr.bf16.mxu0 0
    %1303 = vmatpush1.bf16.msra.mxu0 0
    %1304 = vmatprep.subr.bf16.mxu0 0
    %1305 = vmatpush1.bf16.msra.mxu0 0
    %1306 = vmatprep.subr.bf16.mxu0 0
    %1307 = vmatpush1.bf16.msra.mxu0 0
    %1308 = vmatprep.subr.bf16.mxu0 0
    %1309 = vmatpush1.bf16.msra.mxu0 %v1290
    %1310 = vmatprep.subr.bf16.mxu0 0
    %1311 = vmatpush1.bf16.msra.mxu0 %v1289
    %1312 = vmatprep.subr.bf16.mxu0 0
    %1313 = vmatpush2.bf16.msra.mxu0 0
    %1314 = vmatprep.subr.bf16.mxu0 0
    %1315 = vmatpush2.bf16.msra.mxu0 0
    %1316 = vmatprep.subr.bf16.mxu0 0
    %1317 = vmatpush2.bf16.msra.mxu0 0
    %1318 = vmatprep.subr.bf16.mxu0 0
    %1319 = vmatpush2.bf16.msra.mxu0 0
    %1320 = vmatprep.subr.bf16.mxu0 0
    %1321 = vmatpush2.bf16.msra.mxu0 0
    %1322 = vmatprep.subr.bf16.mxu0 0
    %1323 = vmatpush2.bf16.msra.mxu0 0
    %1324 = vmatprep.subr.bf16.mxu0 0
    %1325 = vmatpush2.bf16.msra.mxu0 0
    %1326 = vmatprep.subr.bf16.mxu0 0
    %1327 = vmatpush2.bf16.msra.mxu0 0
    %1328 = vmatprep.mubr.bf16.mxu0 0
    %1329 = vmatmul.mubr.bf16.gmra.mxu0 %v1294
    %v1330 = vpop.f32.mrf.mxu0
    %v1331 = vadd.f32 0.0, %v1330
    %v1332 = vpop.f32.mrf.mxu0
    %v1333 = vpop.f32.mrf.mxu0
    %v1334 = vpop.f32.mrf.mxu0
    %1335 = vdwg.mxu0
    %v1336 = vadd.f32 %v1276, %v1331
    %v1337 = vmul.f32 %v1336, 0.5
    %v1338 = vtanh.pop %v1337
    %v1339 = vmul.f32 %v1338, 0.5
    %v1340 = vadd.f32 %v1339, 0.5
    %v1341 = vtanh.pop %v1336
    %v1342 = vmul.f32 %v1340, %v1251
    %1344 = vrot.lane.b32.xlu0 %v1341, 64
    %v1345 = vpop.permute.xlu0 %1344
    %v1347 = vmul.f32 %v1340, %v1345
    %1349 = vrot.lane.b32.xlu0 %v1347, 32
    %v1350 = vpop.permute.xlu0 %1349
    %v1352 = vadd.f32 %v1342, %v1350
    %v1353 = vtanh.pop %v1352
    %1355 = vrot.lane.b32.xlu0 %v1353, 64
    %v1356 = vpop.permute.xlu0 %1355
    %v1358 = vmul.f32 %v1340, %v1356
    %1360 = vrot.lane.b32.xlu0 %v1358, 32
    %v1361 = vpop.permute.xlu0 %1360
    %s1363 = scalar_lea.vmem [#allocation3], 24
    %1364 = vst.msk [vmem:[%s1363] sm:$0x3] %vm151, %v1361
    %v1365 = vld [vmem:[%s2] sm:$0xf]
    %v1366 = vld [vmem:[%s2 + $0x4] sm:$0xf]
    %v1367 = vld [vmem:[%s2 + $0x8] sm:$0xf]
    %v1368 = vld [vmem:[%s2 + $0xc] sm:$0xf]
    %s1369 = scalar_lea.vmem %s0, 26
    %v1370 = vld [vmem:[%s1369] sm:$0x3]
    %1372 = vset.pattern.permute.xlu0 0
    %1373 = vperm.xlu0 %1372, %v1370
    %v1374 = vpop.permute.xlu0 %1373
    %v1376 = vmul.f32 %v1374, %v58
    %v1377 = vadd.f32 %v1376, %v65
    %v1378 = vpack.c.bf16 %v1358, %v1358
    %1380 = vrot.lane.b32.xlu0 %v1378, 32
    %v1381 = vpop.permute.xlu0 %1380
    %v1386 = vunpack.c.l.b16 %v1365
    %v1387 = vunpack.c.l.b16 %v1366
    %v1388 = vunpack.c.l.b16 %v1367
    %v1389 = vunpack.c.l.b16 %v1368
    %v1390 = vpack.c.b16 %v1387, %v1386
    %v1391 = vpack.c.b16 %v1389, %v1388
    %v1395 = vsel %vm80, %v1381, 0
    %1397 = vmatprep.subr.bf16.mxu0 0
    %1398 = vmatpush1.bf16.msra.mxu0 0
    %1399 = vmatprep.subr.bf16.mxu0 0
    %1400 = vmatpush1.bf16.msra.mxu0 0
    %1401 = vmatprep.subr.bf16.mxu0 0
    %1402 = vmatpush1.bf16.msra.mxu0 0
    %1403 = vmatprep.subr.bf16.mxu0 0
    %1404 = vmatpush1.bf16.msra.mxu0 0
    %1405 = vmatprep.subr.bf16.mxu0 0
    %1406 = vmatpush1.bf16.msra.mxu0 0
    %1407 = vmatprep.subr.bf16.mxu0 0
    %1408 = vmatpush1.bf16.msra.mxu0 0
    %1409 = vmatprep.subr.bf16.mxu0 0
    %1410 = vmatpush1.bf16.msra.mxu0 %v1391
    %1411 = vmatprep.subr.bf16.mxu0 0
    %1412 = vmatpush1.bf16.msra.mxu0 %v1390
    %1413 = vmatprep.subr.bf16.mxu0 0
    %1414 = vmatpush2.bf16.msra.mxu0 0
    %1415 = vmatprep.subr.bf16.mxu0 0
    %1416 = vmatpush2.bf16.msra.mxu0 0
    %1417 = vmatprep.subr.bf16.mxu0 0
    %1418 = vmatpush2.bf16.msra.mxu0 0
    %1419 = vmatprep.subr.bf16.mxu0 0
    %1420 = vmatpush2.bf16.msra.mxu0 0
    %1421 = vmatprep.subr.bf16.mxu0 0
    %1422 = vmatpush2.bf16.msra.mxu0 0
    %1423 = vmatprep.subr.bf16.mxu0 0
    %1424 = vmatpush2.bf16.msra.mxu0 0
    %1425 = vmatprep.subr.bf16.mxu0 0
    %1426 = vmatpush2.bf16.msra.mxu0 0
    %1427 = vmatprep.subr.bf16.mxu0 0
    %1428 = vmatpush2.bf16.msra.mxu0 0
    %1429 = vmatprep.mubr.bf16.mxu0 0
    %1430 = vmatmul.mubr.bf16.gmra.mxu0 %v1395
    %v1431 = vpop.f32.mrf.mxu0
    %v1432 = vadd.f32 0.0, %v1431
    %v1433 = vpop.f32.mrf.mxu0
    %v1434 = vpop.f32.mrf.mxu0
    %v1435 = vpop.f32.mrf.mxu0
    %1436 = vdwg.mxu0
    %v1437 = vadd.f32 %v1377, %v1432
    %v1438 = vmul.f32 %v1437, 0.5
    %v1439 = vtanh.pop %v1438
    %v1440 = vmul.f32 %v1439, 0.5
    %v1441 = vadd.f32 %v1440, 0.5
    %v1442 = vtanh.pop %v1437
    %v1443 = vmul.f32 %v1441, %v1352
    %1445 = vrot.lane.b32.xlu0 %v1442, 64
    %v1446 = vpop.permute.xlu0 %1445
    %v1448 = vmul.f32 %v1441, %v1446
    %1450 = vrot.lane.b32.xlu0 %v1448, 32
    %v1451 = vpop.permute.xlu0 %1450
    %v1453 = vadd.f32 %v1443, %v1451
    %v1454 = vtanh.pop %v1453
    %1456 = vrot.lane.b32.xlu0 %v1454, 64
    %v1457 = vpop.permute.xlu0 %1456
    %v1459 = vmul.f32 %v1441, %v1457
    %1461 = vrot.lane.b32.xlu0 %v1459, 32
    %v1462 = vpop.permute.xlu0 %1461
    %s1464 = scalar_lea.vmem [#allocation3], 26
    %1465 = vst.msk [vmem:[%s1464] sm:$0x3] %vm151, %v1462
    %v1466 = vld [vmem:[%s2] sm:$0xf]
    %v1467 = vld [vmem:[%s2 + $0x4] sm:$0xf]
    %v1468 = vld [vmem:[%s2 + $0x8] sm:$0xf]
    %v1469 = vld [vmem:[%s2 + $0xc] sm:$0xf]
    %s1470 = scalar_lea.vmem %s0, 28
    %v1471 = vld [vmem:[%s1470] sm:$0x3]
    %1473 = vset.pattern.permute.xlu0 0
    %1474 = vperm.xlu0 %1473, %v1471
    %v1475 = vpop.permute.xlu0 %1474
    %v1477 = vmul.f32 %v1475, %v58
    %v1478 = vadd.f32 %v1477, %v65
    %v1479 = vpack.c.bf16 %v1459, %v1459
    %1481 = vrot.lane.b32.xlu0 %v1479, 32
    %v1482 = vpop.permute.xlu0 %1481
    %v1487 = vunpack.c.l.b16 %v1466
    %v1488 = vunpack.c.l.b16 %v1467
    %v1489 = vunpack.c.l.b16 %v1468
    %v1490 = vunpack.c.l.b16 %v1469
    %v1491 = vpack.c.b16 %v1488, %v1487
    %v1492 = vpack.c.b16 %v1490, %v1489
    %v1496 = vsel %vm80, %v1482, 0
    %1498 = vmatprep.subr.bf16.mxu0 0
    %1499 = vmatpush1.bf16.msra.mxu0 0
    %1500 = vmatprep.subr.bf16.mxu0 0
    %1501 = vmatpush1.bf16.msra.mxu0 0
    %1502 = vmatprep.subr.bf16.mxu0 0
    %1503 = vmatpush1.bf16.msra.mxu0 0
    %1504 = vmatprep.subr.bf16.mxu0 0
    %1505 = vmatpush1.bf16.msra.mxu0 0
    %1506 = vmatprep.subr.bf16.mxu0 0
    %1507 = vmatpush1.bf16.msra.mxu0 0
    %1508 = vmatprep.subr.bf16.mxu0 0
    %1509 = vmatpush1.bf16.msra.mxu0 0
    %1510 = vmatprep.subr.bf16.mxu0 0
    %1511 = vmatpush1.bf16.msra.mxu0 %v1492
    %1512 = vmatprep.subr.bf16.mxu0 0
    %1513 = vmatpush1.bf16.msra.mxu0 %v1491
    %1514 = vmatprep.subr.bf16.mxu0 0
    %1515 = vmatpush2.bf16.msra.mxu0 0
    %1516 = vmatprep.subr.bf16.mxu0 0
    %1517 = vmatpush2.bf16.msra.mxu0 0
    %1518 = vmatprep.subr.bf16.mxu0 0
    %1519 = vmatpush2.bf16.msra.mxu0 0
    %1520 = vmatprep.subr.bf16.mxu0 0
    %1521 = vmatpush2.bf16.msra.mxu0 0
    %1522 = vmatprep.subr.bf16.mxu0 0
    %1523 = vmatpush2.bf16.msra.mxu0 0
    %1524 = vmatprep.subr.bf16.mxu0 0
    %1525 = vmatpush2.bf16.msra.mxu0 0
    %1526 = vmatprep.subr.bf16.mxu0 0
    %1527 = vmatpush2.bf16.msra.mxu0 0
    %1528 = vmatprep.subr.bf16.mxu0 0
    %1529 = vmatpush2.bf16.msra.mxu0 0
    %1530 = vmatprep.mubr.bf16.mxu0 0
    %1531 = vmatmul.mubr.bf16.gmra.mxu0 %v1496
    %v1532 = vpop.f32.mrf.mxu0
    %v1533 = vadd.f32 0.0, %v1532
    %v1534 = vpop.f32.mrf.mxu0
    %v1535 = vpop.f32.mrf.mxu0
    %v1536 = vpop.f32.mrf.mxu0
    %1537 = vdwg.mxu0
    %v1538 = vadd.f32 %v1478, %v1533
    %v1539 = vmul.f32 %v1538, 0.5
    %v1540 = vtanh.pop %v1539
    %v1541 = vmul.f32 %v1540, 0.5
    %v1542 = vadd.f32 %v1541, 0.5
    %v1543 = vtanh.pop %v1538
    %v1544 = vmul.f32 %v1542, %v1453
    %1546 = vrot.lane.b32.xlu0 %v1543, 64
    %v1547 = vpop.permute.xlu0 %1546
    %v1549 = vmul.f32 %v1542, %v1547
    %1551 = vrot.lane.b32.xlu0 %v1549, 32
    %v1552 = vpop.permute.xlu0 %1551
    %v1554 = vadd.f32 %v1544, %v1552
    %v1555 = vtanh.pop %v1554
    %1557 = vrot.lane.b32.xlu0 %v1555, 64
    %v1558 = vpop.permute.xlu0 %1557
    %v1560 = vmul.f32 %v1542, %v1558
    %1562 = vrot.lane.b32.xlu0 %v1560, 32
    %v1563 = vpop.permute.xlu0 %1562
    %s1565 = scalar_lea.vmem [#allocation3], 28
    %1566 = vst.msk [vmem:[%s1565] sm:$0x3] %vm151, %v1563
    %v1567 = vld [vmem:[%s2] sm:$0xf]
    %v1568 = vld [vmem:[%s2 + $0x4] sm:$0xf]
    %v1569 = vld [vmem:[%s2 + $0x8] sm:$0xf]
    %v1570 = vld [vmem:[%s2 + $0xc] sm:$0xf]
    %s1571 = scalar_lea.vmem %s0, 30
    %v1572 = vld [vmem:[%s1571] sm:$0x3]
    %1574 = vset.pattern.permute.xlu0 0
    %1575 = vperm.xlu0 %1574, %v1572
    %v1576 = vpop.permute.xlu0 %1575
    %v1578 = vmul.f32 %v1576, %v58
    %v1579 = vadd.f32 %v1578, %v65
    %v1580 = vpack.c.bf16 %v1560, %v1560
    %1582 = vrot.lane.b32.xlu0 %v1580, 32
    %v1583 = vpop.permute.xlu0 %1582
    %v1588 = vunpack.c.l.b16 %v1567
    %v1589 = vunpack.c.l.b16 %v1568
    %v1590 = vunpack.c.l.b16 %v1569
    %v1591 = vunpack.c.l.b16 %v1570
    %v1592 = vpack.c.b16 %v1589, %v1588
    %v1593 = vpack.c.b16 %v1591, %v1590
    %v1597 = vsel %vm80, %v1583, 0
    %1599 = vmatprep.subr.bf16.mxu0 0
    %1600 = vmatpush1.bf16.msra.mxu0 0
    %1601 = vmatprep.subr.bf16.mxu0 0
    %1602 = vmatpush1.bf16.msra.mxu0 0
    %1603 = vmatprep.subr.bf16.mxu0 0
    %1604 = vmatpush1.bf16.msra.mxu0 0
    %1605 = vmatprep.subr.bf16.mxu0 0
    %1606 = vmatpush1.bf16.msra.mxu0 0
    %1607 = vmatprep.subr.bf16.mxu0 0
    %1608 = vmatpush1.bf16.msra.mxu0 0
    %1609 = vmatprep.subr.bf16.mxu0 0
    %1610 = vmatpush1.bf16.msra.mxu0 0
    %1611 = vmatprep.subr.bf16.mxu0 0
    %1612 = vmatpush1.bf16.msra.mxu0 %v1593
    %1613 = vmatprep.subr.bf16.mxu0 0
    %1614 = vmatpush1.bf16.msra.mxu0 %v1592
    %1615 = vmatprep.subr.bf16.mxu0 0
    %1616 = vmatpush2.bf16.msra.mxu0 0
    %1617 = vmatprep.subr.bf16.mxu0 0
    %1618 = vmatpush2.bf16.msra.mxu0 0
    %1619 = vmatprep.subr.bf16.mxu0 0
    %1620 = vmatpush2.bf16.msra.mxu0 0
    %1621 = vmatprep.subr.bf16.mxu0 0
    %1622 = vmatpush2.bf16.msra.mxu0 0
    %1623 = vmatprep.subr.bf16.mxu0 0
    %1624 = vmatpush2.bf16.msra.mxu0 0
    %1625 = vmatprep.subr.bf16.mxu0 0
    %1626 = vmatpush2.bf16.msra.mxu0 0
    %1627 = vmatprep.subr.bf16.mxu0 0
    %1628 = vmatpush2.bf16.msra.mxu0 0
    %1629 = vmatprep.subr.bf16.mxu0 0
    %1630 = vmatpush2.bf16.msra.mxu0 0
    %1631 = vmatprep.mubr.bf16.mxu0 0
    %1632 = vmatmul.mubr.bf16.gmra.mxu0 %v1597
    %v1633 = vpop.f32.mrf.mxu0
    %v1634 = vadd.f32 0.0, %v1633
    %v1635 = vpop.f32.mrf.mxu0
    %v1636 = vpop.f32.mrf.mxu0
    %v1637 = vpop.f32.mrf.mxu0
    %1638 = vdwg.mxu0
    %v1639 = vadd.f32 %v1579, %v1634
    %v1640 = vmul.f32 %v1639, 0.5
    %v1641 = vtanh.pop %v1640
    %v1642 = vmul.f32 %v1641, 0.5
    %v1643 = vadd.f32 %v1642, 0.5
    %v1644 = vtanh.pop %v1639
    %v1645 = vmul.f32 %v1643, %v1554
    %1647 = vrot.lane.b32.xlu0 %v1644, 64
    %v1648 = vpop.permute.xlu0 %1647
    %v1650 = vmul.f32 %v1643, %v1648
    %1652 = vrot.lane.b32.xlu0 %v1650, 32
    %v1653 = vpop.permute.xlu0 %1652
    %v1655 = vadd.f32 %v1645, %v1653
    %v1656 = vtanh.pop %v1655
    %1658 = vrot.lane.b32.xlu0 %v1656, 64
    %v1659 = vpop.permute.xlu0 %1658
    %v1661 = vmul.f32 %v1643, %v1659
    %1663 = vrot.lane.b32.xlu0 %v1661, 32
    %v1664 = vpop.permute.xlu0 %1663
    %s1666 = scalar_lea.vmem [#allocation3], 30
    %1667 = vst.msk [vmem:[%s1666] sm:$0x3] %vm151, %v1664
    %v1668 = vld [vmem:[#allocation3] sm:$0x3]
    %v1669 = vld [vmem:[#allocation3 + $0x2] sm:$0x3]
    %v1670 = vld [vmem:[#allocation3 + $0x4] sm:$0x3]
    %v1671 = vld [vmem:[#allocation3 + $0x6] sm:$0x3]
    %v1672 = vld [vmem:[#allocation3 + $0x8] sm:$0x3]
    %v1673 = vld [vmem:[#allocation3 + $0xa] sm:$0x3]
    %v1674 = vld [vmem:[#allocation3 + $0xc] sm:$0x3]
    %v1675 = vld [vmem:[#allocation3 + $0xe] sm:$0x3]
    %v1676 = vld [vmem:[#allocation3 + $0x10] sm:$0x3]
    %v1677 = vld [vmem:[#allocation3 + $0x12] sm:$0x3]
    %v1678 = vld [vmem:[#allocation3 + $0x14] sm:$0x3]
    %v1679 = vld [vmem:[#allocation3 + $0x16] sm:$0x3]
    %v1680 = vld [vmem:[#allocation3 + $0x18] sm:$0x3]
    %v1681 = vld [vmem:[#allocation3 + $0x1a] sm:$0x3]
    %v1682 = vld [vmem:[#allocation3 + $0x1c] sm:$0x3]
    %v1683 = vld [vmem:[#allocation3 + $0x1e] sm:$0x3]
    %v1700 = vcombine.low %v1668, %v1669
    %v1701 = vcombine.low %v1670, %v1671
    %v1703 = vunpack.c.l.s4 1983009808
    %v1704 = vunpack.c.0.s8 %v1703
    %v1705 = vlaneseq
    %v1706 = vshrl.u32 %v1705, 7
    %v1707 = vsub.s32 %v1704, %v1706
    %v1708 = vrot.slane %v1700, %v1707
    %v1710 = vunpack.c.l.s4 1983009808
    %v1711 = vunpack.c.0.s8 %v1710
    %v1712 = vlaneseq
    %v1713 = vshrl.u32 %v1712, 7
    %v1714 = vsub.s32 %v1711, %v1713
    %v1715 = vrot.slane %v1701, %v1714
    %v1716 = vcombine.low %v1708, %v1715
    %v1717 = vcombine.low %v1672, %v1673
    %v1718 = vcombine.low %v1674, %v1675
    %v1720 = vunpack.c.l.s4 1983009808
    %v1721 = vunpack.c.0.s8 %v1720
    %v1722 = vlaneseq
    %v1723 = vshrl.u32 %v1722, 7
    %v1724 = vsub.s32 %v1721, %v1723
    %v1725 = vrot.slane %v1717, %v1724
    %v1727 = vunpack.c.l.s4 1983009808
    %v1728 = vunpack.c.0.s8 %v1727
    %v1729 = vlaneseq
    %v1730 = vshrl.u32 %v1729, 7
    %v1731 = vsub.s32 %v1728, %v1730
    %v1732 = vrot.slane %v1718, %v1731
    %v1733 = vcombine.low %v1725, %v1732
    %v1734 = vcombine.low %v1676, %v1677
    %v1735 = vcombine.low %v1678, %v1679
    %v1737 = vunpack.c.l.s4 1983009808
    %v1738 = vunpack.c.0.s8 %v1737
    %v1739 = vlaneseq
    %v1740 = vshrl.u32 %v1739, 7
    %v1741 = vsub.s32 %v1738, %v1740
    %v1742 = vrot.slane %v1734, %v1741
    %v1744 = vunpack.c.l.s4 1983009808
    %v1745 = vunpack.c.0.s8 %v1744
    %v1746 = vlaneseq
    %v1747 = vshrl.u32 %v1746, 7
    %v1748 = vsub.s32 %v1745, %v1747
    %v1749 = vrot.slane %v1735, %v1748
    %v1750 = vcombine.low %v1742, %v1749
    %v1751 = vcombine.low %v1680, %v1681
    %v1752 = vcombine.low %v1682, %v1683
    %v1754 = vunpack.c.l.s4 1983009808
    %v1755 = vunpack.c.0.s8 %v1754
    %v1756 = vlaneseq
    %v1757 = vshrl.u32 %v1756, 7
    %v1758 = vsub.s32 %v1755, %v1757
    %v1759 = vrot.slane %v1751, %v1758
    %v1761 = vunpack.c.l.s4 1983009808
    %v1762 = vunpack.c.0.s8 %v1761
    %v1763 = vlaneseq
    %v1764 = vshrl.u32 %v1763, 7
    %v1765 = vsub.s32 %v1762, %v1764
    %v1766 = vrot.slane %v1752, %v1765
    %v1767 = vcombine.low %v1759, %v1766
    %v1772 = vpack.c.bf16 %v1733, %v1716
    %v1773 = vpack.c.bf16 %v1767, %v1750
    %v1774 = vld [vmem:[%s4] sm:$0xf]
    %v1775 = vld [vmem:[%s4 + $0x4] sm:$0xf]
    %v1776 = vld [vmem:[%s4 + $0x8] sm:$0xf]
    %v1777 = vld [vmem:[%s4 + $0xc] sm:$0xf]
    %v1778 = vld [vmem:[%s6] sm:$0x1]
    %v1780 = vlaneseq
    %v1781 = vshrl.u32 %v1780, 7
    %v1782 = vsub.s32 0, %v1781
    %v1783 = vrot.slane %v1778, %v1782
    %v1789 = vunpack.c.l.b16 %v1774
    %v1790 = vunpack.c.l.b16 %v1775
    %v1791 = vunpack.c.l.b16 %v1776
    %v1792 = vunpack.c.l.b16 %v1777
    %v1793 = vpack.c.b16 %v1790, %v1789
    %v1794 = vpack.c.b16 %v1792, %v1791
    %v1798 = vsel %vm80, %v1772, 0
    %v1801 = vsel %vm80, %v1773, 0
    %1803 = vmatprep.subr.bf16.mxu0 0
    %1804 = vmatpush1.bf16.msra.mxu0 0
    %1805 = vmatprep.subr.bf16.mxu0 0
    %1806 = vmatpush1.bf16.msra.mxu0 0
    %1807 = vmatprep.subr.bf16.mxu0 0
    %1808 = vmatpush1.bf16.msra.mxu0 0
    %1809 = vmatprep.subr.bf16.mxu0 0
    %1810 = vmatpush1.bf16.msra.mxu0 0
    %1811 = vmatprep.subr.bf16.mxu0 0
    %1812 = vmatpush1.bf16.msra.mxu0 0
    %1813 = vmatprep.subr.bf16.mxu0 0
    %1814 = vmatpush1.bf16.msra.mxu0 0
    %1815 = vmatprep.subr.bf16.mxu0 0
    %1816 = vmatpush1.bf16.msra.mxu0 %v1794
    %1817 = vmatprep.subr.bf16.mxu0 0
    %1818 = vmatpush1.bf16.msra.mxu0 %v1793
    %1819 = vmatprep.subr.bf16.mxu0 0
    %1820 = vmatpush2.bf16.msra.mxu0 0
    %1821 = vmatprep.subr.bf16.mxu0 0
    %1822 = vmatpush2.bf16.msra.mxu0 0
    %1823 = vmatprep.subr.bf16.mxu0 0
    %1824 = vmatpush2.bf16.msra.mxu0 0
    %1825 = vmatprep.subr.bf16.mxu0 0
    %1826 = vmatpush2.bf16.msra.mxu0 0
    %1827 = vmatprep.subr.bf16.mxu0 0
    %1828 = vmatpush2.bf16.msra.mxu0 0
    %1829 = vmatprep.subr.bf16.mxu0 0
    %1830 = vmatpush2.bf16.msra.mxu0 0
    %1831 = vmatprep.subr.bf16.mxu0 0
    %1832 = vmatpush2.bf16.msra.mxu0 0
    %1833 = vmatprep.subr.bf16.mxu0 0
    %1834 = vmatpush2.bf16.msra.mxu0 0
    %1835 = vmatprep.mubr.bf16.mxu0 0
    %1836 = vmatmul.mubr.bf16.gmra.mxu0 %v1798
    %v1837 = vpop.f32.mrf.mxu0
    %v1838 = vadd.f32 %v1783, %v1837
    %v1839 = vpop.f32.mrf.mxu0
    %v1840 = vpop.f32.mrf.mxu0
    %v1841 = vadd.f32 %v1783, %v1840
    %v1842 = vpop.f32.mrf.mxu0
    %1843 = vmatprep.mubr.bf16.mxu0 0
    %1844 = vmatmul.mubr.bf16.gmra.mxu0 %v1801
    %v1845 = vpop.f32.mrf.mxu0
    %v1846 = vadd.f32 %v1783, %v1845
    %v1847 = vpop.f32.mrf.mxu0
    %v1848 = vpop.f32.mrf.mxu0
    %v1849 = vadd.f32 %v1783, %v1848
    %v1850 = vpop.f32.mrf.mxu0
    %1851 = vdwg.mxu0
    %v1856 = vcombine.high %v1838, %v1838
    %v1858 = vunpack.c.l.s4 1983009808
    %v1859 = vunpack.c.0.s8 %v1858
    %v1860 = vlaneseq
    %v1861 = vshrl.u32 %v1860, 7
    %v1862 = vsub.s32 %v1859, %v1861
    %v1863 = vrot.slane %v1838, %v1862
    %v1865 = vunpack.c.l.s4 1983009808
    %v1866 = vunpack.c.0.s8 %v1865
    %v1867 = vlaneseq
    %v1868 = vshrl.u32 %v1867, 7
    %v1869 = vsub.s32 %v1866, %v1868
    %v1870 = vrot.slane %v1856, %v1869
    %v1871 = vcombine.high %v1863, %v1863
    %v1872 = vcombine.high %v1870, %v1870
    %v1873 = vcombine.high %v1841, %v1841
    %v1875 = vunpack.c.l.s4 1983009808
    %v1876 = vunpack.c.0.s8 %v1875
    %v1877 = vlaneseq
    %v1878 = vshrl.u32 %v1877, 7
    %v1879 = vsub.s32 %v1876, %v1878
    %v1880 = vrot.slane %v1841, %v1879
    %v1882 = vunpack.c.l.s4 1983009808
    %v1883 = vunpack.c.0.s8 %v1882
    %v1884 = vlaneseq
    %v1885 = vshrl.u32 %v1884, 7
    %v1886 = vsub.s32 %v1883, %v1885
    %v1887 = vrot.slane %v1873, %v1886
    %v1888 = vcombine.high %v1880, %v1880
    %v1889 = vcombine.high %v1887, %v1887
    %v1890 = vcombine.high %v1846, %v1846
    %v1892 = vunpack.c.l.s4 1983009808
    %v1893 = vunpack.c.0.s8 %v1892
    %v1894 = vlaneseq
    %v1895 = vshrl.u32 %v1894, 7
    %v1896 = vsub.s32 %v1893, %v1895
    %v1897 = vrot.slane %v1846, %v1896
    %v1899 = vunpack.c.l.s4 1983009808
    %v1900 = vunpack.c.0.s8 %v1899
    %v1901 = vlaneseq
    %v1902 = vshrl.u32 %v1901, 7
    %v1903 = vsub.s32 %v1900, %v1902
    %v1904 = vrot.slane %v1890, %v1903
    %v1905 = vcombine.high %v1897, %v1897
    %v1906 = vcombine.high %v1904, %v1904
    %v1907 = vcombine.high %v1849, %v1849
    %v1909 = vunpack.c.l.s4 1983009808
    %v1910 = vunpack.c.0.s8 %v1909
    %v1911 = vlaneseq
    %v1912 = vshrl.u32 %v1911, 7
    %v1913 = vsub.s32 %v1910, %v1912
    %v1914 = vrot.slane %v1849, %v1913
    %v1916 = vunpack.c.l.s4 1983009808
    %v1917 = vunpack.c.0.s8 %v1916
    %v1918 = vlaneseq
    %v1919 = vshrl.u32 %v1918, 7
    %v1920 = vsub.s32 %v1917, %v1919
    %v1921 = vrot.slane %v1907, %v1920
    %v1922 = vcombine.high %v1914, %v1914
    %v1923 = vcombine.high %v1921, %v1921
    %1940 = vst [vmem:[#allocation2] sm:$0x3] %v1863
    %1941 = vst [vmem:[#allocation2 + $0x2] sm:$0x3] %v1871
    %1942 = vst [vmem:[#allocation2 + $0x4] sm:$0x3] %v1870
    %1943 = vst [vmem:[#allocation2 + $0x6] sm:$0x3] %v1872
    %1944 = vst [vmem:[#allocation2 + $0x8] sm:$0x3] %v1880
    %1945 = vst [vmem:[#allocation2 + $0xa] sm:$0x3] %v1888
    %1946 = vst [vmem:[#allocation2 + $0xc] sm:$0x3] %v1887
    %1947 = vst [vmem:[#allocation2 + $0xe] sm:$0x3] %v1889
    %1948 = vst [vmem:[#allocation2 + $0x10] sm:$0x3] %v1897
    %1949 = vst [vmem:[#allocation2 + $0x12] sm:$0x3] %v1905
    %1950 = vst [vmem:[#allocation2 + $0x14] sm:$0x3] %v1904
    %1951 = vst [vmem:[#allocation2 + $0x16] sm:$0x3] %v1906
    %1952 = vst [vmem:[#allocation2 + $0x18] sm:$0x3] %v1914
    %1953 = vst [vmem:[#allocation2 + $0x1a] sm:$0x3] %v1922
    %1954 = vst [vmem:[#allocation2 + $0x1c] sm:$0x3] %v1921
    %1955 = vst [vmem:[#allocation2 + $0x1e] sm:$0x3] %v1923
    %v1956 = vld [vmem:[#allocation4] sm:$0xf]
    %v1957 = vld [vmem:[#allocation4 + $0x4] sm:$0xf]
    %v1958 = vld [vmem:[#allocation4 + $0x8] sm:$0xf]
    %v1959 = vld [vmem:[#allocation4 + $0xc] sm:$0xf]
    %v1960 = vld [vmem:[#allocation2] sm:$0x3]
    %v1965 = vunpack.c.l.b16 %v1956
    %v1966 = vunpack.c.l.b16 %v1957
    %v1967 = vunpack.c.l.b16 %v1958
    %v1968 = vunpack.c.l.b16 %v1959
    %v1969 = vpack.c.b16 %v1966, %v1965
    %v1970 = vpack.c.b16 %v1968, %v1967
    %1973 = vmatprep.subr.bf16.mxu0 0
    %1974 = vmatpush1.bf16.msra.mxu0 0
    %1975 = vmatprep.subr.bf16.mxu0 0
    %1976 = vmatpush1.bf16.msra.mxu0 0
    %1977 = vmatprep.subr.bf16.mxu0 0
    %1978 = vmatpush1.bf16.msra.mxu0 0
    %1979 = vmatprep.subr.bf16.mxu0 0
    %1980 = vmatpush1.bf16.msra.mxu0 0
    %1981 = vmatprep.subr.bf16.mxu0 0
    %1982 = vmatpush1.bf16.msra.mxu0 0
    %1983 = vmatprep.subr.bf16.mxu0 0
    %1984 = vmatpush1.bf16.msra.mxu0 0
    %1985 = vmatprep.subr.bf16.mxu0 0
    %1986 = vmatpush1.bf16.msra.mxu0 %v1970
    %1987 = vmatprep.subr.bf16.mxu0 0
    %1988 = vmatpush1.bf16.msra.mxu0 %v1969
    %1989 = vmatprep.subr.bf16.mxu0 0
    %1990 = vmatpush2.bf16.msra.mxu0 0
    %1991 = vmatprep.subr.bf16.mxu0 0
    %1992 = vmatpush2.bf16.msra.mxu0 0
    %1993 = vmatprep.subr.bf16.mxu0 0
    %1994 = vmatpush2.bf16.msra.mxu0 0
    %1995 = vmatprep.subr.bf16.mxu0 0
    %1996 = vmatpush2.bf16.msra.mxu0 0
    %1997 = vmatprep.subr.bf16.mxu0 0
    %1998 = vmatpush2.bf16.msra.mxu0 0
    %1999 = vmatprep.subr.bf16.mxu0 0
    %2000 = vmatpush2.bf16.msra.mxu0 0
    %2001 = vmatprep.subr.bf16.mxu0 0
    %2002 = vmatpush2.bf16.msra.mxu0 0
    %2003 = vmatprep.subr.bf16.mxu0 0
    %2004 = vmatpush2.bf16.msra.mxu0 0
    %2005 = vmatprep.mubr.bf16.mxu0 0
    %2006 = vmatmul.mubr.bf16.gmra.mxu0 %v82
    %v2007 = vpop.f32.mrf.mxu0
    %v2008 = vadd.f32 0.0, %v2007
    %v2009 = vpop.f32.mrf.mxu0
    %v2010 = vpop.f32.mrf.mxu0
    %v2011 = vpop.f32.mrf.mxu0
    %2012 = vdwg.mxu0
    %v2013 = vadd.f32 %v1960, %v2008
    %v2014 = vmul.f32 %v2013, 0.5
    %v2015 = vtanh.pop %v2014
    %v2016 = vmul.f32 %v2015, 0.5
    %v2017 = vadd.f32 %v2016, 0.5
    %v2018 = vtanh.pop %v2013
    %v2019 = vmul.f32 %v2017, 0.0
    %2021 = vrot.lane.b32.xlu0 %v2018, 64
    %v2022 = vpop.permute.xlu0 %2021
    %v2024 = vmul.f32 %v2017, %v2022
    %2026 = vrot.lane.b32.xlu0 %v2024, 32
    %v2027 = vpop.permute.xlu0 %2026
    %v2029 = vadd.f32 %v2019, %v2027
    %v2030 = vtanh.pop %v2029
    %2032 = vrot.lane.b32.xlu0 %v2030, 64
    %v2033 = vpop.permute.xlu0 %2032
    %v2035 = vmul.f32 %v2017, %v2033
    %s2036 = scalar_lea.vmem [#allocation2], 2
    %v2037 = vld [vmem:[%s2036] sm:$0x3]
    %v2038 = vpack.c.bf16 %v2035, %v2035
    %2040 = vrot.lane.b32.xlu0 %v2038, 32
    %v2041 = vpop.permute.xlu0 %2040
    %v2043 = vsel %vm80, %v2041, 0
    %2045 = vmatprep.subr.bf16.mxu0 0
    %2046 = vmatpush1.bf16.msra.mxu0 0
    %2047 = vmatprep.subr.bf16.mxu0 0
    %2048 = vmatpush1.bf16.msra.mxu0 0
    %2049 = vmatprep.subr.bf16.mxu0 0
    %2050 = vmatpush1.bf16.msra.mxu0 0
    %2051 = vmatprep.subr.bf16.mxu0 0
    %2052 = vmatpush1.bf16.msra.mxu0 0
    %2053 = vmatprep.subr.bf16.mxu0 0
    %2054 = vmatpush1.bf16.msra.mxu0 0
    %2055 = vmatprep.subr.bf16.mxu0 0
    %2056 = vmatpush1.bf16.msra.mxu0 0
    %2057 = vmatprep.subr.bf16.mxu0 0
    %2058 = vmatpush1.bf16.msra.mxu0 %v1970
    %2059 = vmatprep.subr.bf16.mxu0 0
    %2060 = vmatpush1.bf16.msra.mxu0 %v1969
    %2061 = vmatprep.subr.bf16.mxu0 0
    %2062 = vmatpush2.bf16.msra.mxu0 0
    %2063 = vmatprep.subr.bf16.mxu0 0
    %2064 = vmatpush2.bf16.msra.mxu0 0
    %2065 = vmatprep.subr.bf16.mxu0 0
    %2066 = vmatpush2.bf16.msra.mxu0 0
    %2067 = vmatprep.subr.bf16.mxu0 0
    %2068 = vmatpush2.bf16.msra.mxu0 0
    %2069 = vmatprep.subr.bf16.mxu0 0
    %2070 = vmatpush2.bf16.msra.mxu0 0
    %2071 = vmatprep.subr.bf16.mxu0 0
    %2072 = vmatpush2.bf16.msra.mxu0 0
    %2073 = vmatprep.subr.bf16.mxu0 0
    %2074 = vmatpush2.bf16.msra.mxu0 0
    %2075 = vmatprep.subr.bf16.mxu0 0
    %2076 = vmatpush2.bf16.msra.mxu0 0
    %2077 = vmatprep.mubr.bf16.mxu0 0
    %2078 = vmatmul.mubr.bf16.gmra.mxu0 %v2043
    %v2079 = vpop.f32.mrf.mxu0
    %v2080 = vadd.f32 0.0, %v2079
    %v2081 = vpop.f32.mrf.mxu0
    %v2082 = vpop.f32.mrf.mxu0
    %v2083 = vpop.f32.mrf.mxu0
    %2084 = vdwg.mxu0
    %v2085 = vadd.f32 %v2037, %v2080
    %v2086 = vmul.f32 %v2085, 0.5
    %v2087 = vtanh.pop %v2086
    %v2088 = vmul.f32 %v2087, 0.5
    %v2089 = vadd.f32 %v2088, 0.5
    %v2090 = vtanh.pop %v2085
    %v2091 = vmul.f32 %v2089, %v2029
    %2093 = vrot.lane.b32.xlu0 %v2090, 64
    %v2094 = vpop.permute.xlu0 %2093
    %v2096 = vmul.f32 %v2089, %v2094
    %2098 = vrot.lane.b32.xlu0 %v2096, 32
    %v2099 = vpop.permute.xlu0 %2098
    %v2101 = vadd.f32 %v2091, %v2099
    %v2102 = vtanh.pop %v2101
    %2104 = vrot.lane.b32.xlu0 %v2102, 64
    %v2105 = vpop.permute.xlu0 %2104
    %v2107 = vmul.f32 %v2089, %v2105
    %s2108 = scalar_lea.vmem [#allocation2], 4
    %v2109 = vld [vmem:[%s2108] sm:$0x3]
    %v2110 = vpack.c.bf16 %v2107, %v2107
    %2112 = vrot.lane.b32.xlu0 %v2110, 32
    %v2113 = vpop.permute.xlu0 %2112
    %v2115 = vsel %vm80, %v2113, 0
    %2117 = vmatprep.subr.bf16.mxu0 0
    %2118 = vmatpush1.bf16.msra.mxu0 0
    %2119 = vmatprep.subr.bf16.mxu0 0
    %2120 = vmatpush1.bf16.msra.mxu0 0
    %2121 = vmatprep.subr.bf16.mxu0 0
    %2122 = vmatpush1.bf16.msra.mxu0 0
    %2123 = vmatprep.subr.bf16.mxu0 0
    %2124 = vmatpush1.bf16.msra.mxu0 0
    %2125 = vmatprep.subr.bf16.mxu0 0
    %2126 = vmatpush1.bf16.msra.mxu0 0
    %2127 = vmatprep.subr.bf16.mxu0 0
    %2128 = vmatpush1.bf16.msra.mxu0 0
    %2129 = vmatprep.subr.bf16.mxu0 0
    %2130 = vmatpush1.bf16.msra.mxu0 %v1970
    %2131 = vmatprep.subr.bf16.mxu0 0
    %2132 = vmatpush1.bf16.msra.mxu0 %v1969
    %2133 = vmatprep.subr.bf16.mxu0 0
    %2134 = vmatpush2.bf16.msra.mxu0 0
    %2135 = vmatprep.subr.bf16.mxu0 0
    %2136 = vmatpush2.bf16.msra.mxu0 0
    %2137 = vmatprep.subr.bf16.mxu0 0
    %2138 = vmatpush2.bf16.msra.mxu0 0
    %2139 = vmatprep.subr.bf16.mxu0 0
    %2140 = vmatpush2.bf16.msra.mxu0 0
    %2141 = vmatprep.subr.bf16.mxu0 0
    %2142 = vmatpush2.bf16.msra.mxu0 0
    %2143 = vmatprep.subr.bf16.mxu0 0
    %2144 = vmatpush2.bf16.msra.mxu0 0
    %2145 = vmatprep.subr.bf16.mxu0 0
    %2146 = vmatpush2.bf16.msra.mxu0 0
    %2147 = vmatprep.subr.bf16.mxu0 0
    %2148 = vmatpush2.bf16.msra.mxu0 0
    %2149 = vmatprep.mubr.bf16.mxu0 0
    %2150 = vmatmul.mubr.bf16.gmra.mxu0 %v2115
    %v2151 = vpop.f32.mrf.mxu0
    %v2152 = vadd.f32 0.0, %v2151
    %v2153 = vpop.f32.mrf.mxu0
    %v2154 = vpop.f32.mrf.mxu0
    %v2155 = vpop.f32.mrf.mxu0
    %2156 = vdwg.mxu0
    %v2157 = vadd.f32 %v2109, %v2152
    %v2158 = vmul.f32 %v2157, 0.5
    %v2159 = vtanh.pop %v2158
    %v2160 = vmul.f32 %v2159, 0.5
    %v2161 = vadd.f32 %v2160, 0.5
    %v2162 = vtanh.pop %v2157
    %v2163 = vmul.f32 %v2161, %v2101
    %2165 = vrot.lane.b32.xlu0 %v2162, 64
    %v2166 = vpop.permute.xlu0 %2165
    %v2168 = vmul.f32 %v2161, %v2166
    %2170 = vrot.lane.b32.xlu0 %v2168, 32
    %v2171 = vpop.permute.xlu0 %2170
    %v2173 = vadd.f32 %v2163, %v2171
    %v2174 = vtanh.pop %v2173
    %2176 = vrot.lane.b32.xlu0 %v2174, 64
    %v2177 = vpop.permute.xlu0 %2176
    %v2179 = vmul.f32 %v2161, %v2177
    %s2180 = scalar_lea.vmem [#allocation2], 6
    %v2181 = vld [vmem:[%s2180] sm:$0x3]
    %v2182 = vpack.c.bf16 %v2179, %v2179
    %2184 = vrot.lane.b32.xlu0 %v2182, 32
    %v2185 = vpop.permute.xlu0 %2184
    %v2187 = vsel %vm80, %v2185, 0
    %2189 = vmatprep.subr.bf16.mxu0 0
    %2190 = vmatpush1.bf16.msra.mxu0 0
    %2191 = vmatprep.subr.bf16.mxu0 0
    %2192 = vmatpush1.bf16.msra.mxu0 0
    %2193 = vmatprep.subr.bf16.mxu0 0
    %2194 = vmatpush1.bf16.msra.mxu0 0
    %2195 = vmatprep.subr.bf16.mxu0 0
    %2196 = vmatpush1.bf16.msra.mxu0 0
    %2197 = vmatprep.subr.bf16.mxu0 0
    %2198 = vmatpush1.bf16.msra.mxu0 0
    %2199 = vmatprep.subr.bf16.mxu0 0
    %2200 = vmatpush1.bf16.msra.mxu0 0
    %2201 = vmatprep.subr.bf16.mxu0 0
    %2202 = vmatpush1.bf16.msra.mxu0 %v1970
    %2203 = vmatprep.subr.bf16.mxu0 0
    %2204 = vmatpush1.bf16.msra.mxu0 %v1969
    %2205 = vmatprep.subr.bf16.mxu0 0
    %2206 = vmatpush2.bf16.msra.mxu0 0
    %2207 = vmatprep.subr.bf16.mxu0 0
    %2208 = vmatpush2.bf16.msra.mxu0 0
    %2209 = vmatprep.subr.bf16.mxu0 0
    %2210 = vmatpush2.bf16.msra.mxu0 0
    %2211 = vmatprep.subr.bf16.mxu0 0
    %2212 = vmatpush2.bf16.msra.mxu0 0
    %2213 = vmatprep.subr.bf16.mxu0 0
    %2214 = vmatpush2.bf16.msra.mxu0 0
    %2215 = vmatprep.subr.bf16.mxu0 0
    %2216 = vmatpush2.bf16.msra.mxu0 0
    %2217 = vmatprep.subr.bf16.mxu0 0
    %2218 = vmatpush2.bf16.msra.mxu0 0
    %2219 = vmatprep.subr.bf16.mxu0 0
    %2220 = vmatpush2.bf16.msra.mxu0 0
    %2221 = vmatprep.mubr.bf16.mxu0 0
    %2222 = vmatmul.mubr.bf16.gmra.mxu0 %v2187
    %v2223 = vpop.f32.mrf.mxu0
    %v2224 = vadd.f32 0.0, %v2223
    %v2225 = vpop.f32.mrf.mxu0
    %v2226 = vpop.f32.mrf.mxu0
    %v2227 = vpop.f32.mrf.mxu0
    %2228 = vdwg.mxu0
    %v2229 = vadd.f32 %v2181, %v2224
    %v2230 = vmul.f32 %v2229, 0.5
    %v2231 = vtanh.pop %v2230
    %v2232 = vmul.f32 %v2231, 0.5
    %v2233 = vadd.f32 %v2232, 0.5
    %v2234 = vtanh.pop %v2229
    %v2235 = vmul.f32 %v2233, %v2173
    %2237 = vrot.lane.b32.xlu0 %v2234, 64
    %v2238 = vpop.permute.xlu0 %2237
    %v2240 = vmul.f32 %v2233, %v2238
    %2242 = vrot.lane.b32.xlu0 %v2240, 32
    %v2243 = vpop.permute.xlu0 %2242
    %v2245 = vadd.f32 %v2235, %v2243
    %v2246 = vtanh.pop %v2245
    %2248 = vrot.lane.b32.xlu0 %v2246, 64
    %v2249 = vpop.permute.xlu0 %2248
    %v2251 = vmul.f32 %v2233, %v2249
    %s2252 = scalar_lea.vmem [#allocation2], 8
    %v2253 = vld [vmem:[%s2252] sm:$0x3]
    %v2254 = vpack.c.bf16 %v2251, %v2251
    %2256 = vrot.lane.b32.xlu0 %v2254, 32
    %v2257 = vpop.permute.xlu0 %2256
    %v2259 = vsel %vm80, %v2257, 0
    %2261 = vmatprep.subr.bf16.mxu0 0
    %2262 = vmatpush1.bf16.msra.mxu0 0
    %2263 = vmatprep.subr.bf16.mxu0 0
    %2264 = vmatpush1.bf16.msra.mxu0 0
    %2265 = vmatprep.subr.bf16.mxu0 0
    %2266 = vmatpush1.bf16.msra.mxu0 0
    %2267 = vmatprep.subr.bf16.mxu0 0
    %2268 = vmatpush1.bf16.msra.mxu0 0
    %2269 = vmatprep.subr.bf16.mxu0 0
    %2270 = vmatpush1.bf16.msra.mxu0 0
    %2271 = vmatprep.subr.bf16.mxu0 0
    %2272 = vmatpush1.bf16.msra.mxu0 0
    %2273 = vmatprep.subr.bf16.mxu0 0
    %2274 = vmatpush1.bf16.msra.mxu0 %v1970
    %2275 = vmatprep.subr.bf16.mxu0 0
    %2276 = vmatpush1.bf16.msra.mxu0 %v1969
    %2277 = vmatprep.subr.bf16.mxu0 0
    %2278 = vmatpush2.bf16.msra.mxu0 0
    %2279 = vmatprep.subr.bf16.mxu0 0
    %2280 = vmatpush2.bf16.msra.mxu0 0
    %2281 = vmatprep.subr.bf16.mxu0 0
    %2282 = vmatpush2.bf16.msra.mxu0 0
    %2283 = vmatprep.subr.bf16.mxu0 0
    %2284 = vmatpush2.bf16.msra.mxu0 0
    %2285 = vmatprep.subr.bf16.mxu0 0
    %2286 = vmatpush2.bf16.msra.mxu0 0
    %2287 = vmatprep.subr.bf16.mxu0 0
    %2288 = vmatpush2.bf16.msra.mxu0 0
    %2289 = vmatprep.subr.bf16.mxu0 0
    %2290 = vmatpush2.bf16.msra.mxu0 0
    %2291 = vmatprep.subr.bf16.mxu0 0
    %2292 = vmatpush2.bf16.msra.mxu0 0
    %2293 = vmatprep.mubr.bf16.mxu0 0
    %2294 = vmatmul.mubr.bf16.gmra.mxu0 %v2259
    %v2295 = vpop.f32.mrf.mxu0
    %v2296 = vadd.f32 0.0, %v2295
    %v2297 = vpop.f32.mrf.mxu0
    %v2298 = vpop.f32.mrf.mxu0
    %v2299 = vpop.f32.mrf.mxu0
    %2300 = vdwg.mxu0
    %v2301 = vadd.f32 %v2253, %v2296
    %v2302 = vmul.f32 %v2301, 0.5
    %v2303 = vtanh.pop %v2302
    %v2304 = vmul.f32 %v2303, 0.5
    %v2305 = vadd.f32 %v2304, 0.5
    %v2306 = vtanh.pop %v2301
    %v2307 = vmul.f32 %v2305, %v2245
    %2309 = vrot.lane.b32.xlu0 %v2306, 64
    %v2310 = vpop.permute.xlu0 %2309
    %v2312 = vmul.f32 %v2305, %v2310
    %2314 = vrot.lane.b32.xlu0 %v2312, 32
    %v2315 = vpop.permute.xlu0 %2314
    %v2317 = vadd.f32 %v2307, %v2315
    %v2318 = vtanh.pop %v2317
    %2320 = vrot.lane.b32.xlu0 %v2318, 64
    %v2321 = vpop.permute.xlu0 %2320
    %v2323 = vmul.f32 %v2305, %v2321
    %s2324 = scalar_lea.vmem [#allocation2], 10
    %v2325 = vld [vmem:[%s2324] sm:$0x3]
    %v2326 = vpack.c.bf16 %v2323, %v2323
    %2328 = vrot.lane.b32.xlu0 %v2326, 32
    %v2329 = vpop.permute.xlu0 %2328
    %v2331 = vsel %vm80, %v2329, 0
    %2333 = vmatprep.subr.bf16.mxu0 0
    %2334 = vmatpush1.bf16.msra.mxu0 0
    %2335 = vmatprep.subr.bf16.mxu0 0
    %2336 = vmatpush1.bf16.msra.mxu0 0
    %2337 = vmatprep.subr.bf16.mxu0 0
    %2338 = vmatpush1.bf16.msra.mxu0 0
    %2339 = vmatprep.subr.bf16.mxu0 0
    %2340 = vmatpush1.bf16.msra.mxu0 0
    %2341 = vmatprep.subr.bf16.mxu0 0
    %2342 = vmatpush1.bf16.msra.mxu0 0
    %2343 = vmatprep.subr.bf16.mxu0 0
    %2344 = vmatpush1.bf16.msra.mxu0 0
    %2345 = vmatprep.subr.bf16.mxu0 0
    %2346 = vmatpush1.bf16.msra.mxu0 %v1970
    %2347 = vmatprep.subr.bf16.mxu0 0
    %2348 = vmatpush1.bf16.msra.mxu0 %v1969
    %2349 = vmatprep.subr.bf16.mxu0 0
    %2350 = vmatpush2.bf16.msra.mxu0 0
    %2351 = vmatprep.subr.bf16.mxu0 0
    %2352 = vmatpush2.bf16.msra.mxu0 0
    %2353 = vmatprep.subr.bf16.mxu0 0
    %2354 = vmatpush2.bf16.msra.mxu0 0
    %2355 = vmatprep.subr.bf16.mxu0 0
    %2356 = vmatpush2.bf16.msra.mxu0 0
    %2357 = vmatprep.subr.bf16.mxu0 0
    %2358 = vmatpush2.bf16.msra.mxu0 0
    %2359 = vmatprep.subr.bf16.mxu0 0
    %2360 = vmatpush2.bf16.msra.mxu0 0
    %2361 = vmatprep.subr.bf16.mxu0 0
    %2362 = vmatpush2.bf16.msra.mxu0 0
    %2363 = vmatprep.subr.bf16.mxu0 0
    %2364 = vmatpush2.bf16.msra.mxu0 0
    %2365 = vmatprep.mubr.bf16.mxu0 0
    %2366 = vmatmul.mubr.bf16.gmra.mxu0 %v2331
    %v2367 = vpop.f32.mrf.mxu0
    %v2368 = vadd.f32 0.0, %v2367
    %v2369 = vpop.f32.mrf.mxu0
    %v2370 = vpop.f32.mrf.mxu0
    %v2371 = vpop.f32.mrf.mxu0
    %2372 = vdwg.mxu0
    %v2373 = vadd.f32 %v2325, %v2368
    %v2374 = vmul.f32 %v2373, 0.5
    %v2375 = vtanh.pop %v2374
    %v2376 = vmul.f32 %v2375, 0.5
    %v2377 = vadd.f32 %v2376, 0.5
    %v2378 = vtanh.pop %v2373
    %v2379 = vmul.f32 %v2377, %v2317
    %2381 = vrot.lane.b32.xlu0 %v2378, 64
    %v2382 = vpop.permute.xlu0 %2381
    %v2384 = vmul.f32 %v2377, %v2382
    %2386 = vrot.lane.b32.xlu0 %v2384, 32
    %v2387 = vpop.permute.xlu0 %2386
    %v2389 = vadd.f32 %v2379, %v2387
    %v2390 = vtanh.pop %v2389
    %2392 = vrot.lane.b32.xlu0 %v2390, 64
    %v2393 = vpop.permute.xlu0 %2392
    %v2395 = vmul.f32 %v2377, %v2393
    %s2396 = scalar_lea.vmem [#allocation2], 12
    %v2397 = vld [vmem:[%s2396] sm:$0x3]
    %v2398 = vpack.c.bf16 %v2395, %v2395
    %2400 = vrot.lane.b32.xlu0 %v2398, 32
    %v2401 = vpop.permute.xlu0 %2400
    %v2403 = vsel %vm80, %v2401, 0
    %2405 = vmatprep.subr.bf16.mxu0 0
    %2406 = vmatpush1.bf16.msra.mxu0 0
    %2407 = vmatprep.subr.bf16.mxu0 0
    %2408 = vmatpush1.bf16.msra.mxu0 0
    %2409 = vmatprep.subr.bf16.mxu0 0
    %2410 = vmatpush1.bf16.msra.mxu0 0
    %2411 = vmatprep.subr.bf16.mxu0 0
    %2412 = vmatpush1.bf16.msra.mxu0 0
    %2413 = vmatprep.subr.bf16.mxu0 0
    %2414 = vmatpush1.bf16.msra.mxu0 0
    %2415 = vmatprep.subr.bf16.mxu0 0
    %2416 = vmatpush1.bf16.msra.mxu0 0
    %2417 = vmatprep.subr.bf16.mxu0 0
    %2418 = vmatpush1.bf16.msra.mxu0 %v1970
    %2419 = vmatprep.subr.bf16.mxu0 0
    %2420 = vmatpush1.bf16.msra.mxu0 %v1969
    %2421 = vmatprep.subr.bf16.mxu0 0
    %2422 = vmatpush2.bf16.msra.mxu0 0
    %2423 = vmatprep.subr.bf16.mxu0 0
    %2424 = vmatpush2.bf16.msra.mxu0 0
    %2425 = vmatprep.subr.bf16.mxu0 0
    %2426 = vmatpush2.bf16.msra.mxu0 0
    %2427 = vmatprep.subr.bf16.mxu0 0
    %2428 = vmatpush2.bf16.msra.mxu0 0
    %2429 = vmatprep.subr.bf16.mxu0 0
    %2430 = vmatpush2.bf16.msra.mxu0 0
    %2431 = vmatprep.subr.bf16.mxu0 0
    %2432 = vmatpush2.bf16.msra.mxu0 0
    %2433 = vmatprep.subr.bf16.mxu0 0
    %2434 = vmatpush2.bf16.msra.mxu0 0
    %2435 = vmatprep.subr.bf16.mxu0 0
    %2436 = vmatpush2.bf16.msra.mxu0 0
    %2437 = vmatprep.mubr.bf16.mxu0 0
    %2438 = vmatmul.mubr.bf16.gmra.mxu0 %v2403
    %v2439 = vpop.f32.mrf.mxu0
    %v2440 = vadd.f32 0.0, %v2439
    %v2441 = vpop.f32.mrf.mxu0
    %v2442 = vpop.f32.mrf.mxu0
    %v2443 = vpop.f32.mrf.mxu0
    %2444 = vdwg.mxu0
    %v2445 = vadd.f32 %v2397, %v2440
    %v2446 = vmul.f32 %v2445, 0.5
    %v2447 = vtanh.pop %v2446
    %v2448 = vmul.f32 %v2447, 0.5
    %v2449 = vadd.f32 %v2448, 0.5
    %v2450 = vtanh.pop %v2445
    %v2451 = vmul.f32 %v2449, %v2389
    %2453 = vrot.lane.b32.xlu0 %v2450, 64
    %v2454 = vpop.permute.xlu0 %2453
    %v2456 = vmul.f32 %v2449, %v2454
    %2458 = vrot.lane.b32.xlu0 %v2456, 32
    %v2459 = vpop.permute.xlu0 %2458
    %v2461 = vadd.f32 %v2451, %v2459
    %v2462 = vtanh.pop %v2461
    %2464 = vrot.lane.b32.xlu0 %v2462, 64
    %v2465 = vpop.permute.xlu0 %2464
    %v2467 = vmul.f32 %v2449, %v2465
    %s2468 = scalar_lea.vmem [#allocation2], 14
    %v2469 = vld [vmem:[%s2468] sm:$0x3]
    %v2470 = vpack.c.bf16 %v2467, %v2467
    %2472 = vrot.lane.b32.xlu0 %v2470, 32
    %v2473 = vpop.permute.xlu0 %2472
    %v2475 = vsel %vm80, %v2473, 0
    %2477 = vmatprep.subr.bf16.mxu0 0
    %2478 = vmatpush1.bf16.msra.mxu0 0
    %2479 = vmatprep.subr.bf16.mxu0 0
    %2480 = vmatpush1.bf16.msra.mxu0 0
    %2481 = vmatprep.subr.bf16.mxu0 0
    %2482 = vmatpush1.bf16.msra.mxu0 0
    %2483 = vmatprep.subr.bf16.mxu0 0
    %2484 = vmatpush1.bf16.msra.mxu0 0
    %2485 = vmatprep.subr.bf16.mxu0 0
    %2486 = vmatpush1.bf16.msra.mxu0 0
    %2487 = vmatprep.subr.bf16.mxu0 0
    %2488 = vmatpush1.bf16.msra.mxu0 0
    %2489 = vmatprep.subr.bf16.mxu0 0
    %2490 = vmatpush1.bf16.msra.mxu0 %v1970
    %2491 = vmatprep.subr.bf16.mxu0 0
    %2492 = vmatpush1.bf16.msra.mxu0 %v1969
    %2493 = vmatprep.subr.bf16.mxu0 0
    %2494 = vmatpush2.bf16.msra.mxu0 0
    %2495 = vmatprep.subr.bf16.mxu0 0
    %2496 = vmatpush2.bf16.msra.mxu0 0
    %2497 = vmatprep.subr.bf16.mxu0 0
    %2498 = vmatpush2.bf16.msra.mxu0 0
    %2499 = vmatprep.subr.bf16.mxu0 0
    %2500 = vmatpush2.bf16.msra.mxu0 0
    %2501 = vmatprep.subr.bf16.mxu0 0
    %2502 = vmatpush2.bf16.msra.mxu0 0
    %2503 = vmatprep.subr.bf16.mxu0 0
    %2504 = vmatpush2.bf16.msra.mxu0 0
    %2505 = vmatprep.subr.bf16.mxu0 0
    %2506 = vmatpush2.bf16.msra.mxu0 0
    %2507 = vmatprep.subr.bf16.mxu0 0
    %2508 = vmatpush2.bf16.msra.mxu0 0
    %2509 = vmatprep.mubr.bf16.mxu0 0
    %2510 = vmatmul.mubr.bf16.gmra.mxu0 %v2475
    %v2511 = vpop.f32.mrf.mxu0
    %v2512 = vadd.f32 0.0, %v2511
    %v2513 = vpop.f32.mrf.mxu0
    %v2514 = vpop.f32.mrf.mxu0
    %v2515 = vpop.f32.mrf.mxu0
    %2516 = vdwg.mxu0
    %v2517 = vadd.f32 %v2469, %v2512
    %v2518 = vmul.f32 %v2517, 0.5
    %v2519 = vtanh.pop %v2518
    %v2520 = vmul.f32 %v2519, 0.5
    %v2521 = vadd.f32 %v2520, 0.5
    %v2522 = vtanh.pop %v2517
    %v2523 = vmul.f32 %v2521, %v2461
    %2525 = vrot.lane.b32.xlu0 %v2522, 64
    %v2526 = vpop.permute.xlu0 %2525
    %v2528 = vmul.f32 %v2521, %v2526
    %2530 = vrot.lane.b32.xlu0 %v2528, 32
    %v2531 = vpop.permute.xlu0 %2530
    %v2533 = vadd.f32 %v2523, %v2531
    %v2534 = vtanh.pop %v2533
    %2536 = vrot.lane.b32.xlu0 %v2534, 64
    %v2537 = vpop.permute.xlu0 %2536
    %v2539 = vmul.f32 %v2521, %v2537
    %s2540 = scalar_lea.vmem [#allocation2], 16
    %v2541 = vld [vmem:[%s2540] sm:$0x3]
    %v2542 = vpack.c.bf16 %v2539, %v2539
    %2544 = vrot.lane.b32.xlu0 %v2542, 32
    %v2545 = vpop.permute.xlu0 %2544
    %v2547 = vsel %vm80, %v2545, 0
    %2549 = vmatprep.subr.bf16.mxu0 0
    %2550 = vmatpush1.bf16.msra.mxu0 0
    %2551 = vmatprep.subr.bf16.mxu0 0
    %2552 = vmatpush1.bf16.msra.mxu0 0
    %2553 = vmatprep.subr.bf16.mxu0 0
    %2554 = vmatpush1.bf16.msra.mxu0 0
    %2555 = vmatprep.subr.bf16.mxu0 0
    %2556 = vmatpush1.bf16.msra.mxu0 0
    %2557 = vmatprep.subr.bf16.mxu0 0
    %2558 = vmatpush1.bf16.msra.mxu0 0
    %2559 = vmatprep.subr.bf16.mxu0 0
    %2560 = vmatpush1.bf16.msra.mxu0 0
    %2561 = vmatprep.subr.bf16.mxu0 0
    %2562 = vmatpush1.bf16.msra.mxu0 %v1970
    %2563 = vmatprep.subr.bf16.mxu0 0
    %2564 = vmatpush1.bf16.msra.mxu0 %v1969
    %2565 = vmatprep.subr.bf16.mxu0 0
    %2566 = vmatpush2.bf16.msra.mxu0 0
    %2567 = vmatprep.subr.bf16.mxu0 0
    %2568 = vmatpush2.bf16.msra.mxu0 0
    %2569 = vmatprep.subr.bf16.mxu0 0
    %2570 = vmatpush2.bf16.msra.mxu0 0
    %2571 = vmatprep.subr.bf16.mxu0 0
    %2572 = vmatpush2.bf16.msra.mxu0 0
    %2573 = vmatprep.subr.bf16.mxu0 0
    %2574 = vmatpush2.bf16.msra.mxu0 0
    %2575 = vmatprep.subr.bf16.mxu0 0
    %2576 = vmatpush2.bf16.msra.mxu0 0
    %2577 = vmatprep.subr.bf16.mxu0 0
    %2578 = vmatpush2.bf16.msra.mxu0 0
    %2579 = vmatprep.subr.bf16.mxu0 0
    %2580 = vmatpush2.bf16.msra.mxu0 0
    %2581 = vmatprep.mubr.bf16.mxu0 0
    %2582 = vmatmul.mubr.bf16.gmra.mxu0 %v2547
    %v2583 = vpop.f32.mrf.mxu0
    %v2584 = vadd.f32 0.0, %v2583
    %v2585 = vpop.f32.mrf.mxu0
    %v2586 = vpop.f32.mrf.mxu0
    %v2587 = vpop.f32.mrf.mxu0
    %2588 = vdwg.mxu0
    %v2589 = vadd.f32 %v2541, %v2584
    %v2590 = vmul.f32 %v2589, 0.5
    %v2591 = vtanh.pop %v2590
    %v2592 = vmul.f32 %v2591, 0.5
    %v2593 = vadd.f32 %v2592, 0.5
    %v2594 = vtanh.pop %v2589
    %v2595 = vmul.f32 %v2593, %v2533
    %2597 = vrot.lane.b32.xlu0 %v2594, 64
    %v2598 = vpop.permute.xlu0 %2597
    %v2600 = vmul.f32 %v2593, %v2598
    %2602 = vrot.lane.b32.xlu0 %v2600, 32
    %v2603 = vpop.permute.xlu0 %2602
    %v2605 = vadd.f32 %v2595, %v2603
    %v2606 = vtanh.pop %v2605
    %2608 = vrot.lane.b32.xlu0 %v2606, 64
    %v2609 = vpop.permute.xlu0 %2608
    %v2611 = vmul.f32 %v2593, %v2609
    %s2612 = scalar_lea.vmem [#allocation2], 18
    %v2613 = vld [vmem:[%s2612] sm:$0x3]
    %v2614 = vpack.c.bf16 %v2611, %v2611
    %2616 = vrot.lane.b32.xlu0 %v2614, 32
    %v2617 = vpop.permute.xlu0 %2616
    %v2619 = vsel %vm80, %v2617, 0
    %2621 = vmatprep.subr.bf16.mxu0 0
    %2622 = vmatpush1.bf16.msra.mxu0 0
    %2623 = vmatprep.subr.bf16.mxu0 0
    %2624 = vmatpush1.bf16.msra.mxu0 0
    %2625 = vmatprep.subr.bf16.mxu0 0
    %2626 = vmatpush1.bf16.msra.mxu0 0
    %2627 = vmatprep.subr.bf16.mxu0 0
    %2628 = vmatpush1.bf16.msra.mxu0 0
    %2629 = vmatprep.subr.bf16.mxu0 0
    %2630 = vmatpush1.bf16.msra.mxu0 0
    %2631 = vmatprep.subr.bf16.mxu0 0
    %2632 = vmatpush1.bf16.msra.mxu0 0
    %2633 = vmatprep.subr.bf16.mxu0 0
    %2634 = vmatpush1.bf16.msra.mxu0 %v1970
    %2635 = vmatprep.subr.bf16.mxu0 0
    %2636 = vmatpush1.bf16.msra.mxu0 %v1969
    %2637 = vmatprep.subr.bf16.mxu0 0
    %2638 = vmatpush2.bf16.msra.mxu0 0
    %2639 = vmatprep.subr.bf16.mxu0 0
    %2640 = vmatpush2.bf16.msra.mxu0 0
    %2641 = vmatprep.subr.bf16.mxu0 0
    %2642 = vmatpush2.bf16.msra.mxu0 0
    %2643 = vmatprep.subr.bf16.mxu0 0
    %2644 = vmatpush2.bf16.msra.mxu0 0
    %2645 = vmatprep.subr.bf16.mxu0 0
    %2646 = vmatpush2.bf16.msra.mxu0 0
    %2647 = vmatprep.subr.bf16.mxu0 0
    %2648 = vmatpush2.bf16.msra.mxu0 0
    %2649 = vmatprep.subr.bf16.mxu0 0
    %2650 = vmatpush2.bf16.msra.mxu0 0
    %2651 = vmatprep.subr.bf16.mxu0 0
    %2652 = vmatpush2.bf16.msra.mxu0 0
    %2653 = vmatprep.mubr.bf16.mxu0 0
    %2654 = vmatmul.mubr.bf16.gmra.mxu0 %v2619
    %v2655 = vpop.f32.mrf.mxu0
    %v2656 = vadd.f32 0.0, %v2655
    %v2657 = vpop.f32.mrf.mxu0
    %v2658 = vpop.f32.mrf.mxu0
    %v2659 = vpop.f32.mrf.mxu0
    %2660 = vdwg.mxu0
    %v2661 = vadd.f32 %v2613, %v2656
    %v2662 = vmul.f32 %v2661, 0.5
    %v2663 = vtanh.pop %v2662
    %v2664 = vmul.f32 %v2663, 0.5
    %v2665 = vadd.f32 %v2664, 0.5
    %v2666 = vtanh.pop %v2661
    %v2667 = vmul.f32 %v2665, %v2605
    %2669 = vrot.lane.b32.xlu0 %v2666, 64
    %v2670 = vpop.permute.xlu0 %2669
    %v2672 = vmul.f32 %v2665, %v2670
    %2674 = vrot.lane.b32.xlu0 %v2672, 32
    %v2675 = vpop.permute.xlu0 %2674
    %v2677 = vadd.f32 %v2667, %v2675
    %v2678 = vtanh.pop %v2677
    %2680 = vrot.lane.b32.xlu0 %v2678, 64
    %v2681 = vpop.permute.xlu0 %2680
    %v2683 = vmul.f32 %v2665, %v2681
    %s2684 = scalar_lea.vmem [#allocation2], 20
    %v2685 = vld [vmem:[%s2684] sm:$0x3]
    %v2686 = vpack.c.bf16 %v2683, %v2683
    %2688 = vrot.lane.b32.xlu0 %v2686, 32
    %v2689 = vpop.permute.xlu0 %2688
    %v2691 = vsel %vm80, %v2689, 0
    %2693 = vmatprep.subr.bf16.mxu0 0
    %2694 = vmatpush1.bf16.msra.mxu0 0
    %2695 = vmatprep.subr.bf16.mxu0 0
    %2696 = vmatpush1.bf16.msra.mxu0 0
    %2697 = vmatprep.subr.bf16.mxu0 0
    %2698 = vmatpush1.bf16.msra.mxu0 0
    %2699 = vmatprep.subr.bf16.mxu0 0
    %2700 = vmatpush1.bf16.msra.mxu0 0
    %2701 = vmatprep.subr.bf16.mxu0 0
    %2702 = vmatpush1.bf16.msra.mxu0 0
    %2703 = vmatprep.subr.bf16.mxu0 0
    %2704 = vmatpush1.bf16.msra.mxu0 0
    %2705 = vmatprep.subr.bf16.mxu0 0
    %2706 = vmatpush1.bf16.msra.mxu0 %v1970
    %2707 = vmatprep.subr.bf16.mxu0 0
    %2708 = vmatpush1.bf16.msra.mxu0 %v1969
    %2709 = vmatprep.subr.bf16.mxu0 0
    %2710 = vmatpush2.bf16.msra.mxu0 0
    %2711 = vmatprep.subr.bf16.mxu0 0
    %2712 = vmatpush2.bf16.msra.mxu0 0
    %2713 = vmatprep.subr.bf16.mxu0 0
    %2714 = vmatpush2.bf16.msra.mxu0 0
    %2715 = vmatprep.subr.bf16.mxu0 0
    %2716 = vmatpush2.bf16.msra.mxu0 0
    %2717 = vmatprep.subr.bf16.mxu0 0
    %2718 = vmatpush2.bf16.msra.mxu0 0
    %2719 = vmatprep.subr.bf16.mxu0 0
    %2720 = vmatpush2.bf16.msra.mxu0 0
    %2721 = vmatprep.subr.bf16.mxu0 0
    %2722 = vmatpush2.bf16.msra.mxu0 0
    %2723 = vmatprep.subr.bf16.mxu0 0
    %2724 = vmatpush2.bf16.msra.mxu0 0
    %2725 = vmatprep.mubr.bf16.mxu0 0
    %2726 = vmatmul.mubr.bf16.gmra.mxu0 %v2691
    %v2727 = vpop.f32.mrf.mxu0
    %v2728 = vadd.f32 0.0, %v2727
    %v2729 = vpop.f32.mrf.mxu0
    %v2730 = vpop.f32.mrf.mxu0
    %v2731 = vpop.f32.mrf.mxu0
    %2732 = vdwg.mxu0
    %v2733 = vadd.f32 %v2685, %v2728
    %v2734 = vmul.f32 %v2733, 0.5
    %v2735 = vtanh.pop %v2734
    %v2736 = vmul.f32 %v2735, 0.5
    %v2737 = vadd.f32 %v2736, 0.5
    %v2738 = vtanh.pop %v2733
    %v2739 = vmul.f32 %v2737, %v2677
    %2741 = vrot.lane.b32.xlu0 %v2738, 64
    %v2742 = vpop.permute.xlu0 %2741
    %v2744 = vmul.f32 %v2737, %v2742
    %2746 = vrot.lane.b32.xlu0 %v2744, 32
    %v2747 = vpop.permute.xlu0 %2746
    %v2749 = vadd.f32 %v2739, %v2747
    %v2750 = vtanh.pop %v2749
    %2752 = vrot.lane.b32.xlu0 %v2750, 64
    %v2753 = vpop.permute.xlu0 %2752
    %v2755 = vmul.f32 %v2737, %v2753
    %s2756 = scalar_lea.vmem [#allocation2], 22
    %v2757 = vld [vmem:[%s2756] sm:$0x3]
    %v2758 = vpack.c.bf16 %v2755, %v2755
    %2760 = vrot.lane.b32.xlu0 %v2758, 32
    %v2761 = vpop.permute.xlu0 %2760
    %v2763 = vsel %vm80, %v2761, 0
    %2765 = vmatprep.subr.bf16.mxu0 0
    %2766 = vmatpush1.bf16.msra.mxu0 0
    %2767 = vmatprep.subr.bf16.mxu0 0
    %2768 = vmatpush1.bf16.msra.mxu0 0
    %2769 = vmatprep.subr.bf16.mxu0 0
    %2770 = vmatpush1.bf16.msra.mxu0 0
    %2771 = vmatprep.subr.bf16.mxu0 0
    %2772 = vmatpush1.bf16.msra.mxu0 0
    %2773 = vmatprep.subr.bf16.mxu0 0
    %2774 = vmatpush1.bf16.msra.mxu0 0
    %2775 = vmatprep.subr.bf16.mxu0 0
    %2776 = vmatpush1.bf16.msra.mxu0 0
    %2777 = vmatprep.subr.bf16.mxu0 0
    %2778 = vmatpush1.bf16.msra.mxu0 %v1970
    %2779 = vmatprep.subr.bf16.mxu0 0
    %2780 = vmatpush1.bf16.msra.mxu0 %v1969
    %2781 = vmatprep.subr.bf16.mxu0 0
    %2782 = vmatpush2.bf16.msra.mxu0 0
    %2783 = vmatprep.subr.bf16.mxu0 0
    %2784 = vmatpush2.bf16.msra.mxu0 0
    %2785 = vmatprep.subr.bf16.mxu0 0
    %2786 = vmatpush2.bf16.msra.mxu0 0
    %2787 = vmatprep.subr.bf16.mxu0 0
    %2788 = vmatpush2.bf16.msra.mxu0 0
    %2789 = vmatprep.subr.bf16.mxu0 0
    %2790 = vmatpush2.bf16.msra.mxu0 0
    %2791 = vmatprep.subr.bf16.mxu0 0
    %2792 = vmatpush2.bf16.msra.mxu0 0
    %2793 = vmatprep.subr.bf16.mxu0 0
    %2794 = vmatpush2.bf16.msra.mxu0 0
    %2795 = vmatprep.subr.bf16.mxu0 0
    %2796 = vmatpush2.bf16.msra.mxu0 0
    %2797 = vmatprep.mubr.bf16.mxu0 0
    %2798 = vmatmul.mubr.bf16.gmra.mxu0 %v2763
    %v2799 = vpop.f32.mrf.mxu0
    %v2800 = vadd.f32 0.0, %v2799
    %v2801 = vpop.f32.mrf.mxu0
    %v2802 = vpop.f32.mrf.mxu0
    %v2803 = vpop.f32.mrf.mxu0
    %2804 = vdwg.mxu0
    %v2805 = vadd.f32 %v2757, %v2800
    %v2806 = vmul.f32 %v2805, 0.5
    %v2807 = vtanh.pop %v2806
    %v2808 = vmul.f32 %v2807, 0.5
    %v2809 = vadd.f32 %v2808, 0.5
    %v2810 = vtanh.pop %v2805
    %v2811 = vmul.f32 %v2809, %v2749
    %2813 = vrot.lane.b32.xlu0 %v2810, 64
    %v2814 = vpop.permute.xlu0 %2813
    %v2816 = vmul.f32 %v2809, %v2814
    %2818 = vrot.lane.b32.xlu0 %v2816, 32
    %v2819 = vpop.permute.xlu0 %2818
    %v2821 = vadd.f32 %v2811, %v2819
    %v2822 = vtanh.pop %v2821
    %2824 = vrot.lane.b32.xlu0 %v2822, 64
    %v2825 = vpop.permute.xlu0 %2824
    %v2827 = vmul.f32 %v2809, %v2825
    %s2828 = scalar_lea.vmem [#allocation2], 24
    %v2829 = vld [vmem:[%s2828] sm:$0x3]
    %v2830 = vpack.c.bf16 %v2827, %v2827
    %2832 = vrot.lane.b32.xlu0 %v2830, 32
    %v2833 = vpop.permute.xlu0 %2832
    %v2835 = vsel %vm80, %v2833, 0
    %2837 = vmatprep.subr.bf16.mxu0 0
    %2838 = vmatpush1.bf16.msra.mxu0 0
    %2839 = vmatprep.subr.bf16.mxu0 0
    %2840 = vmatpush1.bf16.msra.mxu0 0
    %2841 = vmatprep.subr.bf16.mxu0 0
    %2842 = vmatpush1.bf16.msra.mxu0 0
    %2843 = vmatprep.subr.bf16.mxu0 0
    %2844 = vmatpush1.bf16.msra.mxu0 0
    %2845 = vmatprep.subr.bf16.mxu0 0
    %2846 = vmatpush1.bf16.msra.mxu0 0
    %2847 = vmatprep.subr.bf16.mxu0 0
    %2848 = vmatpush1.bf16.msra.mxu0 0
    %2849 = vmatprep.subr.bf16.mxu0 0
    %2850 = vmatpush1.bf16.msra.mxu0 %v1970
    %2851 = vmatprep.subr.bf16.mxu0 0
    %2852 = vmatpush1.bf16.msra.mxu0 %v1969
    %2853 = vmatprep.subr.bf16.mxu0 0
    %2854 = vmatpush2.bf16.msra.mxu0 0
    %2855 = vmatprep.subr.bf16.mxu0 0
    %2856 = vmatpush2.bf16.msra.mxu0 0
    %2857 = vmatprep.subr.bf16.mxu0 0
    %2858 = vmatpush2.bf16.msra.mxu0 0
    %2859 = vmatprep.subr.bf16.mxu0 0
    %2860 = vmatpush2.bf16.msra.mxu0 0
    %2861 = vmatprep.subr.bf16.mxu0 0
    %2862 = vmatpush2.bf16.msra.mxu0 0
    %2863 = vmatprep.subr.bf16.mxu0 0
    %2864 = vmatpush2.bf16.msra.mxu0 0
    %2865 = vmatprep.subr.bf16.mxu0 0
    %2866 = vmatpush2.bf16.msra.mxu0 0
    %2867 = vmatprep.subr.bf16.mxu0 0
    %2868 = vmatpush2.bf16.msra.mxu0 0
    %2869 = vmatprep.mubr.bf16.mxu0 0
    %2870 = vmatmul.mubr.bf16.gmra.mxu0 %v2835
    %v2871 = vpop.f32.mrf.mxu0
    %v2872 = vadd.f32 0.0, %v2871
    %v2873 = vpop.f32.mrf.mxu0
    %v2874 = vpop.f32.mrf.mxu0
    %v2875 = vpop.f32.mrf.mxu0
    %2876 = vdwg.mxu0
    %v2877 = vadd.f32 %v2829, %v2872
    %v2878 = vmul.f32 %v2877, 0.5
    %v2879 = vtanh.pop %v2878
    %v2880 = vmul.f32 %v2879, 0.5
    %v2881 = vadd.f32 %v2880, 0.5
    %v2882 = vtanh.pop %v2877
    %v2883 = vmul.f32 %v2881, %v2821
    %2885 = vrot.lane.b32.xlu0 %v2882, 64
    %v2886 = vpop.permute.xlu0 %2885
    %v2888 = vmul.f32 %v2881, %v2886
    %2890 = vrot.lane.b32.xlu0 %v2888, 32
    %v2891 = vpop.permute.xlu0 %2890
    %v2893 = vadd.f32 %v2883, %v2891
    %v2894 = vtanh.pop %v2893
    %2896 = vrot.lane.b32.xlu0 %v2894, 64
    %v2897 = vpop.permute.xlu0 %2896
    %v2899 = vmul.f32 %v2881, %v2897
    %s2900 = scalar_lea.vmem [#allocation2], 26
    %v2901 = vld [vmem:[%s2900] sm:$0x3]
    %v2902 = vpack.c.bf16 %v2899, %v2899
    %2904 = vrot.lane.b32.xlu0 %v2902, 32
    %v2905 = vpop.permute.xlu0 %2904
    %v2907 = vsel %vm80, %v2905, 0
    %2909 = vmatprep.subr.bf16.mxu0 0
    %2910 = vmatpush1.bf16.msra.mxu0 0
    %2911 = vmatprep.subr.bf16.mxu0 0
    %2912 = vmatpush1.bf16.msra.mxu0 0
    %2913 = vmatprep.subr.bf16.mxu0 0
    %2914 = vmatpush1.bf16.msra.mxu0 0
    %2915 = vmatprep.subr.bf16.mxu0 0
    %2916 = vmatpush1.bf16.msra.mxu0 0
    %2917 = vmatprep.subr.bf16.mxu0 0
    %2918 = vmatpush1.bf16.msra.mxu0 0
    %2919 = vmatprep.subr.bf16.mxu0 0
    %2920 = vmatpush1.bf16.msra.mxu0 0
    %2921 = vmatprep.subr.bf16.mxu0 0
    %2922 = vmatpush1.bf16.msra.mxu0 %v1970
    %2923 = vmatprep.subr.bf16.mxu0 0
    %2924 = vmatpush1.bf16.msra.mxu0 %v1969
    %2925 = vmatprep.subr.bf16.mxu0 0
    %2926 = vmatpush2.bf16.msra.mxu0 0
    %2927 = vmatprep.subr.bf16.mxu0 0
    %2928 = vmatpush2.bf16.msra.mxu0 0
    %2929 = vmatprep.subr.bf16.mxu0 0
    %2930 = vmatpush2.bf16.msra.mxu0 0
    %2931 = vmatprep.subr.bf16.mxu0 0
    %2932 = vmatpush2.bf16.msra.mxu0 0
    %2933 = vmatprep.subr.bf16.mxu0 0
    %2934 = vmatpush2.bf16.msra.mxu0 0
    %2935 = vmatprep.subr.bf16.mxu0 0
    %2936 = vmatpush2.bf16.msra.mxu0 0
    %2937 = vmatprep.subr.bf16.mxu0 0
    %2938 = vmatpush2.bf16.msra.mxu0 0
    %2939 = vmatprep.subr.bf16.mxu0 0
    %2940 = vmatpush2.bf16.msra.mxu0 0
    %2941 = vmatprep.mubr.bf16.mxu0 0
    %2942 = vmatmul.mubr.bf16.gmra.mxu0 %v2907
    %v2943 = vpop.f32.mrf.mxu0
    %v2944 = vadd.f32 0.0, %v2943
    %v2945 = vpop.f32.mrf.mxu0
    %v2946 = vpop.f32.mrf.mxu0
    %v2947 = vpop.f32.mrf.mxu0
    %2948 = vdwg.mxu0
    %v2949 = vadd.f32 %v2901, %v2944
    %v2950 = vmul.f32 %v2949, 0.5
    %v2951 = vtanh.pop %v2950
    %v2952 = vmul.f32 %v2951, 0.5
    %v2953 = vadd.f32 %v2952, 0.5
    %v2954 = vtanh.pop %v2949
    %v2955 = vmul.f32 %v2953, %v2893
    %2957 = vrot.lane.b32.xlu0 %v2954, 64
    %v2958 = vpop.permute.xlu0 %2957
    %v2960 = vmul.f32 %v2953, %v2958
    %2962 = vrot.lane.b32.xlu0 %v2960, 32
    %v2963 = vpop.permute.xlu0 %2962
    %v2965 = vadd.f32 %v2955, %v2963
    %v2966 = vtanh.pop %v2965
    %2968 = vrot.lane.b32.xlu0 %v2966, 64
    %v2969 = vpop.permute.xlu0 %2968
    %v2971 = vmul.f32 %v2953, %v2969
    %s2972 = scalar_lea.vmem [#allocation2], 28
    %v2973 = vld [vmem:[%s2972] sm:$0x3]
    %v2974 = vpack.c.bf16 %v2971, %v2971
    %2976 = vrot.lane.b32.xlu0 %v2974, 32
    %v2977 = vpop.permute.xlu0 %2976
    %v2979 = vsel %vm80, %v2977, 0
    %2981 = vmatprep.subr.bf16.mxu0 0
    %2982 = vmatpush1.bf16.msra.mxu0 0
    %2983 = vmatprep.subr.bf16.mxu0 0
    %2984 = vmatpush1.bf16.msra.mxu0 0
    %2985 = vmatprep.subr.bf16.mxu0 0
    %2986 = vmatpush1.bf16.msra.mxu0 0
    %2987 = vmatprep.subr.bf16.mxu0 0
    %2988 = vmatpush1.bf16.msra.mxu0 0
    %2989 = vmatprep.subr.bf16.mxu0 0
    %2990 = vmatpush1.bf16.msra.mxu0 0
    %2991 = vmatprep.subr.bf16.mxu0 0
    %2992 = vmatpush1.bf16.msra.mxu0 0
    %2993 = vmatprep.subr.bf16.mxu0 0
    %2994 = vmatpush1.bf16.msra.mxu0 %v1970
    %2995 = vmatprep.subr.bf16.mxu0 0
    %2996 = vmatpush1.bf16.msra.mxu0 %v1969
    %2997 = vmatprep.subr.bf16.mxu0 0
    %2998 = vmatpush2.bf16.msra.mxu0 0
    %2999 = vmatprep.subr.bf16.mxu0 0
    %3000 = vmatpush2.bf16.msra.mxu0 0
    %3001 = vmatprep.subr.bf16.mxu0 0
    %3002 = vmatpush2.bf16.msra.mxu0 0
    %3003 = vmatprep.subr.bf16.mxu0 0
    %3004 = vmatpush2.bf16.msra.mxu0 0
    %3005 = vmatprep.subr.bf16.mxu0 0
    %3006 = vmatpush2.bf16.msra.mxu0 0
    %3007 = vmatprep.subr.bf16.mxu0 0
    %3008 = vmatpush2.bf16.msra.mxu0 0
    %3009 = vmatprep.subr.bf16.mxu0 0
    %3010 = vmatpush2.bf16.msra.mxu0 0
    %3011 = vmatprep.subr.bf16.mxu0 0
    %3012 = vmatpush2.bf16.msra.mxu0 0
    %3013 = vmatprep.mubr.bf16.mxu0 0
    %3014 = vmatmul.mubr.bf16.gmra.mxu0 %v2979
    %v3015 = vpop.f32.mrf.mxu0
    %v3016 = vadd.f32 0.0, %v3015
    %v3017 = vpop.f32.mrf.mxu0
    %v3018 = vpop.f32.mrf.mxu0
    %v3019 = vpop.f32.mrf.mxu0
    %3020 = vdwg.mxu0
    %v3021 = vadd.f32 %v2973, %v3016
    %v3022 = vmul.f32 %v3021, 0.5
    %v3023 = vtanh.pop %v3022
    %v3024 = vmul.f32 %v3023, 0.5
    %v3025 = vadd.f32 %v3024, 0.5
    %v3026 = vtanh.pop %v3021
    %v3027 = vmul.f32 %v3025, %v2965
    %3029 = vrot.lane.b32.xlu0 %v3026, 64
    %v3030 = vpop.permute.xlu0 %3029
    %v3032 = vmul.f32 %v3025, %v3030
    %3034 = vrot.lane.b32.xlu0 %v3032, 32
    %v3035 = vpop.permute.xlu0 %3034
    %v3037 = vadd.f32 %v3027, %v3035
    %v3038 = vtanh.pop %v3037
    %3040 = vrot.lane.b32.xlu0 %v3038, 64
    %v3041 = vpop.permute.xlu0 %3040
    %v3043 = vmul.f32 %v3025, %v3041
    %s3044 = scalar_lea.vmem [#allocation2], 30
    %v3045 = vld [vmem:[%s3044] sm:$0x3]
    %v3046 = vpack.c.bf16 %v3043, %v3043
    %3048 = vrot.lane.b32.xlu0 %v3046, 32
    %v3049 = vpop.permute.xlu0 %3048
    %v3051 = vsel %vm80, %v3049, 0
    %3053 = vmatprep.subr.bf16.mxu0 0
    %3054 = vmatpush1.bf16.msra.mxu0 0
    %3055 = vmatprep.subr.bf16.mxu0 0
    %3056 = vmatpush1.bf16.msra.mxu0 0
    %3057 = vmatprep.subr.bf16.mxu0 0
    %3058 = vmatpush1.bf16.msra.mxu0 0
    %3059 = vmatprep.subr.bf16.mxu0 0
    %3060 = vmatpush1.bf16.msra.mxu0 0
    %3061 = vmatprep.subr.bf16.mxu0 0
    %3062 = vmatpush1.bf16.msra.mxu0 0
    %3063 = vmatprep.subr.bf16.mxu0 0
    %3064 = vmatpush1.bf16.msra.mxu0 0
    %3065 = vmatprep.subr.bf16.mxu0 0
    %3066 = vmatpush1.bf16.msra.mxu0 %v1970
    %3067 = vmatprep.subr.bf16.mxu0 0
    %3068 = vmatpush1.bf16.msra.mxu0 %v1969
    %3069 = vmatprep.subr.bf16.mxu0 0
    %3070 = vmatpush2.bf16.msra.mxu0 0
    %3071 = vmatprep.subr.bf16.mxu0 0
    %3072 = vmatpush2.bf16.msra.mxu0 0
    %3073 = vmatprep.subr.bf16.mxu0 0
    %3074 = vmatpush2.bf16.msra.mxu0 0
    %3075 = vmatprep.subr.bf16.mxu0 0
    %3076 = vmatpush2.bf16.msra.mxu0 0
    %3077 = vmatprep.subr.bf16.mxu0 0
    %3078 = vmatpush2.bf16.msra.mxu0 0
    %3079 = vmatprep.subr.bf16.mxu0 0
    %3080 = vmatpush2.bf16.msra.mxu0 0
    %3081 = vmatprep.subr.bf16.mxu0 0
    %3082 = vmatpush2.bf16.msra.mxu0 0
    %3083 = vmatprep.subr.bf16.mxu0 0
    %3084 = vmatpush2.bf16.msra.mxu0 0
    %3085 = vmatprep.mubr.bf16.mxu0 0
    %3086 = vmatmul.mubr.bf16.gmra.mxu0 %v3051
    %v3087 = vpop.f32.mrf.mxu0
    %v3088 = vadd.f32 0.0, %v3087
    %v3089 = vpop.f32.mrf.mxu0
    %v3090 = vpop.f32.mrf.mxu0
    %v3091 = vpop.f32.mrf.mxu0
    %3092 = vdwg.mxu0
    %v3093 = vadd.f32 %v3045, %v3088
    %v3094 = vmul.f32 %v3093, 0.5
    %v3095 = vtanh.pop %v3094
    %v3096 = vmul.f32 %v3095, 0.5
    %v3097 = vadd.f32 %v3096, 0.5
    %v3098 = vtanh.pop %v3093
    %v3099 = vmul.f32 %v3097, %v3037
    %3101 = vrot.lane.b32.xlu0 %v3098, 64
    %v3102 = vpop.permute.xlu0 %3101
    %v3104 = vmul.f32 %v3097, %v3102
    %3106 = vrot.lane.b32.xlu0 %v3104, 32
    %v3107 = vpop.permute.xlu0 %3106
    %v3109 = vadd.f32 %v3099, %v3107
    %v3110 = vtanh.pop %v3109
    %3112 = vrot.lane.b32.xlu0 %v3110, 64
    %v3113 = vpop.permute.xlu0 %3112
    %v3115 = vmul.f32 %v3097, %v3113
    %3117 = vrot.lane.b32.xlu0 %v3115, 32
    %v3118 = vpop.permute.xlu0 %3117
    %3120 = vst.msk [vmem:[#allocation7] sm:$0x3] %vm151, %v3118
    // Predicated region
    $region34: #{_lambda_.1} parent=1 // pred_check
      _
    $region35: #{_lambda_.1} parent=1 // pred_check_branch
      %3122 = sbr.rel (0) target = $region37
    $region36: #{_lambda_.1} parent=1 // pred_region
      %s3124 = ssub.s32 32, 32
      %3125 = vsyncadd [#allocation6], %s3124
      %s3127 = sshll.u32 [#allocation7], 4
      %s3128 = int_to_ptr.vmem [resolvable:$true] %s3127
      %3130 = dma.vmem_to_hbm [thread:$0]  %s3128, 32, %s7, [#allocation6]
    $region37: #{_lambda_.1} parent=1 // pred_fallthru
      _
    // Predicated region
    $region38: #{_lambda_.1} parent=1 // pred_check
      _
    $region39: #{_lambda_.1} parent=1 // pred_check_branch
      %3132 = sbr.rel (0) target = $region41
    $region40: #{_lambda_.1} parent=1 // pred_region
      %3133 = dma.done [#allocation6], 32
    $region41: #{_lambda_.1} parent=1 // pred_fallthru
      _
    %3134 = vsyncpa [#allocation5], 1
    %3135 = vsyncpa [#allocation6], 1

</llo_original>
